<compile_context>
chip_gen: v7x
topology: tpu7x:2x2x1
jax: 0.10.0
libtpu: 0.0.40
codegen_flags: <defaults>
</compile_context>

<pallas_src>
import jax
import jax.numpy as jnp
from jax.experimental import pallas as pl
from jax.experimental.pallas import tpu as pltpu

EPS = 1e-5  # BatchNorm2d default eps


# ---------------------------------------------------------------------------
# Fused BiFPN forward (NHWC in / NHWC out) via a single Pallas kernel
# ---------------------------------------------------------------------------
def bifpn_pallas(in2, in3, in4, in5, blocks, fusion):
    f32 = jnp.float32
    N, H2, W2, C = in2.shape
    H3, W3 = in3.shape[1], in3.shape[2]
    H4, W4 = in4.shape[1], in4.shape[2]
    H5, W5 = in5.shape[1], in5.shape[2]

    # ---- fusion coefficients (relu + /sum, preserving the [0]-reuse quirk) --
    def norm(w, idx):
        w = jnp.maximum(w, 0.0)
        s = jnp.sum(w)
        return [w[i] / s for i in idx]

    coeffs = jnp.stack(
        norm(fusion["pt4_w"], (0, 1))
        + norm(fusion["pt3_w"], (0, 0))      # pt3_w[0] used twice (module quirk)
        + norm(fusion["out2_w"], (0, 0))     # out2_w[0] used twice (module quirk)
        + norm(fusion["out3_w"], (0, 1, 2))
        + norm(fusion["out4_w"], (0, 1, 2))
        + norm(fusion["out5_w"], (0, 1))
    ).astype(f32)                            # (14,)

    # ---- per-stage conv slabs: (3, (W+2)*C, W*C) with BN scale folded, and a
    #      (1, W*C) shift row (conv bias + BN shift); column order = w*C + co.
    def conv_mats(p, W):
        s = p["gamma"] / jnp.sqrt(p["var"] + EPS)                 # (C,)
        shift = (p["b"] - p["mean"]) * s + p["beta"]              # (C,)
        wt = jnp.transpose(p["w"], (2, 3, 1, 0)).astype(f32)      # (kh, kw, Ci, Co)
        kw = jnp.arange(3)[:, None, None]
        blk = jnp.arange(W + 2)[None, :, None]
        ww = jnp.arange(W)[None, None, :]
        # Stored lane block b holds input column b; blocks W, W+1 stay zero.
        # Padded position p = w + kw maps to block (p - 1) mod (W + 2), so both
        # halo columns hit the zero blocks and the interior store is at lane
        # offset 0 (lane-aligned).
        mask = (blk == (ww + kw - 1) % (W + 2)).astype(f32)       # (3, W+2, W)
        m = jnp.einsum("kbw,hkio->hbiwo", mask, wt)               # (3, W+2, Ci, W, Co)
        m = m.reshape(3, (W + 2) * C, W * C) * jnp.tile(s, W)[None, None, :]
        return m, jnp.tile(shift, W)[None, :].astype(f32)

    m_pt4, sh_pt4 = conv_mats(blocks["pt4"], W4)
    m_pt3, sh_pt3 = conv_mats(blocks["pt3"], W3)
    m_o2, sh_o2 = conv_mats(blocks["out2_d"], W2)
    m_o3, sh_o3 = conv_mats(blocks["out3_d"], W3)
    m_o4, sh_o4 = conv_mats(blocks["out4_d"], W4)
    m_o5, sh_o5 = conv_mats(blocks["out5_d"], W5)

    # ---- exact nearest-resize selection matrices (applied as R @ x @ Cmat) --
    def up_mats(Hs, Ws):     # (Hs, Ws*C) -> (2Hs, 2Ws*C)
        r = (jnp.arange(Hs)[None, :] == jnp.arange(2 * Hs)[:, None] // 2).astype(f32)
        j = jnp.arange(Ws * C)[:, None]
        q = jnp.arange(2 * Ws * C)[None, :]
        c = ((j % C == q % C) & (j // C == (q // C) // 2)).astype(f32)
        return r, c

    def down_mats(Hs, Ws):   # (Hs, Ws*C) -> (Hs//2, (Ws//2)*C)
        r = (jnp.arange(Hs)[None, :] == 2 * jnp.arange(Hs // 2)[:, None]).astype(f32)
        j = jnp.arange(Ws * C)[:, None]
        q = jnp.arange((Ws // 2) * C)[None, :]
        c = ((j % C == q % C) & (j // C == 2 * (q // C))).astype(f32)
        return r, c

    u54r, u54c = up_mats(H5, W5)     # level5 -> level4
    u43r, u43c = up_mats(H4, W4)     # level4 -> level3
    u32r, u32c = up_mats(H3, W3)     # level3 -> level2
    d23r, d23c = down_mats(H2, W2)   # level2 -> level3
    d34r, d34c = down_mats(H3, W3)   # level3 -> level4
    d45r, d45c = down_mats(H4, W4)   # level4 -> level5

    # ---- lane-dense flattened activations (N, H, W*C) -----------------------
    i2 = in2.reshape(N, H2, W2 * C).astype(f32)
    i3 = in3.reshape(N, H3, W3 * C).astype(f32)
    i4 = in4.reshape(N, H4, W4 * C).astype(f32)
    i5 = in5.reshape(N, H5, W5 * C).astype(f32)

    # ---- the fused kernel ----------------------------------------------------
    def kernel(coef,
               i2r, i3r, i4r, i5r,
               mp4, mp3, mo2, mo3, mo4, mo5,
               sp4, sp3, so2, so3, so4, so5,
               u54r_, u54c_, u43r_, u43c_, u32r_, u32c_,
               d23r_, d23c_, d34r_, d34c_, d45r_, d45c_,
               o2, o3, o4, o5,
               xp2, xp3, xp4, xp5):
        # Zero the padded-row scratches once per grid step; only interiors are
        # rewritten below, so the conv halo (rows 0/H+1, last 2 lane blocks)
        # stays zero across both uses of each scratch.  (Per-step zeroing keeps
        # correctness independent of how the parallel batch axis is sharded
        # across TensorCores; cost is negligible vs. the stage matmuls.)
        xp2[...] = jnp.zeros_like(xp2)
        xp3[...] = jnp.zeros_like(xp3)
        xp4[...] = jnp.zeros_like(xp4)
        xp5[...] = jnp.zeros_like(xp5)

        def cbr(x, xp, m, sh, H, W):
            # fused Conv2d(3x3, pad=1) + BN(eval) + ReLU on a (H, W*C) slab:
            # three kh-tap matmuls against the padded slab, then shift + relu.
            xp[1:H + 1, 0:W * C] = x
            acc = jnp.dot(xp[0:H, :], m[0], preferred_element_type=jnp.float32)
            acc = acc + jnp.dot(xp[1:H + 1, :], m[1],
                                preferred_element_type=jnp.float32)
            acc = acc + jnp.dot(xp[2:H + 2, :], m[2],
                                preferred_element_type=jnp.float32)
            return jnp.maximum(acc + sh[...], 0.0)

        def resize(x, r, c):
            # exact nearest up/down-sampling as two 0/1 selection matmuls
            t = jnp.dot(r[...], x, preferred_element_type=jnp.float32)
            return jnp.dot(t, c[...], preferred_element_type=jnp.float32)

        x2, x3, x4, x5 = i2r[0], i3r[0], i4r[0], i5r[0]

        pt4 = cbr(coef[0] * x4 + coef[1] * resize(x5, u54r_, u54c_),
                  xp4, mp4, sp4, H4, W4)
        pt3 = cbr(coef[2] * x3 + coef[3] * resize(pt4, u43r_, u43c_),
                  xp3, mp3, sp3, H3, W3)
        o2v = cbr(coef[4] * x2 + coef[5] * resize(pt3, u32r_, u32c_),
                  xp2, mo2, so2, H2, W2)
        o2[0] = o2v
        o3v = cbr(coef[6] * x3 + coef[7] * pt3
                  + coef[8] * resize(o2v, d23r_, d23c_),
                  xp3, mo3, so3, H3, W3)
        o3[0] = o3v
        o4v = cbr(coef[9] * x4 + coef[10] * pt4
                  + coef[11] * resize(o3v, d34r_, d34c_),
                  xp4, mo4, so4, H4, W4)
        o4[0] = o4v
        o5v = cbr(coef[12] * x5 + coef[13] * resize(o4v, d45r_, d45c_),
                  xp5, mo5, so5, H5, W5)
        o5[0] = o5v

    # ---- specs ---------------------------------------------------------------
    def per_n(shape):
        nd = len(shape)
        return pl.BlockSpec((1,) + tuple(shape[1:]),
                            lambda n, _nd=nd: (n,) + (0,) * (_nd - 1))

    def shared(arr):
        # Constant block index across the grid -> Pallas keeps it resident in
        # VMEM and does not re-DMA it every batch step.
        nd = arr.ndim
        return pl.BlockSpec(tuple(arr.shape), lambda n, _nd=nd: (0,) * _nd)

    weight_args = (m_pt4, m_pt3, m_o2, m_o3, m_o4, m_o5,
                   sh_pt4, sh_pt3, sh_o2, sh_o3, sh_o4, sh_o5,
                   u54r, u54c, u43r, u43c, u32r, u32c,
                   d23r, d23c, d34r, d34c, d45r, d45c)

    in_specs = ([pl.BlockSpec(memory_space=pltpu.MemorySpace.SMEM)]
                + [per_n(a.shape) for a in (i2, i3, i4, i5)]
                + [shared(a) for a in weight_args])

    out_shape = (jax.ShapeDtypeStruct((N, H2, W2 * C), f32),
                 jax.ShapeDtypeStruct((N, H3, W3 * C), f32),
                 jax.ShapeDtypeStruct((N, H4, W4 * C), f32),
                 jax.ShapeDtypeStruct((N, H5, W5 * C), f32))
    out_specs = tuple(per_n(s.shape) for s in out_shape)

    scratch_shapes = [pltpu.VMEM((H2 + 2, (W2 + 2) * C), f32),
                      pltpu.VMEM((H3 + 2, (W3 + 2) * C), f32),
                      pltpu.VMEM((H4 + 2, (W4 + 2) * C), f32),
                      pltpu.VMEM((H5 + 2, (W5 + 2) * C), f32)]

    o2f, o3f, o4f, o5f = pl.pallas_call(
        kernel,
        out_shape=out_shape,
        grid=(N,),
        in_specs=in_specs,
        out_specs=out_specs,
        scratch_shapes=scratch_shapes,
        compiler_params=pltpu.CompilerParams(
            dimension_semantics=("parallel",)),
    )(coeffs, i2, i3, i4, i5, *weight_args)

    return (o2f.reshape(N, H2, W2, C), o3f.reshape(N, H3, W3, C),
            o4f.reshape(N, H4, W4, C), o5f.reshape(N, H5, W5, C))


# ---------------------------------------------------------------------------
# Pure-JAX reference (independent path: XLA conv + exact nearest resizes)
# ---------------------------------------------------------------------------
def conv_block_ref(x_nhwc, p):
    y = jax.lax.conv_general_dilated(
        x_nhwc, jnp.transpose(p["w"], (2, 3, 1, 0)),
        window_strides=(1, 1), padding=((1, 1), (1, 1)),
        dimension_numbers=("NHWC", "HWIO", "NHWC"),
        precision=jax.lax.Precision.HIGHEST)
    y = y + p["b"]
    y = (y - p["mean"]) / jnp.sqrt(p["var"] + EPS) * p["gamma"] + p["beta"]
    return jnp.maximum(y, 0.0)


def up2(x):    # nn.Upsample(scale_factor=2, mode='nearest')
    return jnp.repeat(jnp.repeat(x, 2, axis=1), 2, axis=2)


def down2(x):  # F.interpolate(x, scale_factor=0.5) (nearest)
    return x[:, ::2, ::2, :]


def bifpn_ref(in2, in3, in4, in5, blocks, fusion):
    relu = lambda v: jnp.maximum(v, 0.0)
    pt4_w = relu(fusion["pt4_w"])
    pt4 = conv_block_ref((pt4_w[0] * in4 + pt4_w[1] * up2(in5)) / jnp.sum(pt4_w),
                         blocks["pt4"])
    pt3_w = relu(fusion["pt3_w"])
    pt3 = conv_block_ref((pt3_w[0] * in3 + pt3_w[0] * up2(pt4)) / jnp.sum(pt3_w),
                         blocks["pt3"])  # pt3_w[0] used twice, as in the original
    out2_w = relu(fusion["out2_w"])
    out2_d = conv_block_ref((out2_w[0] * in2 + out2_w[0] * up2(pt3)) / jnp.sum(out2_w),
                            blocks["out2_d"])  # out2_w[0] used twice, as in the original
    out3_w = relu(fusion["out3_w"])
    out3_d = conv_block_ref((out3_w[0] * in3 + out3_w[1] * pt3
                             + out3_w[2] * down2(out2_d)) / jnp.sum(out3_w),
                            blocks["out3_d"])
    out4_w = relu(fusion["out4_w"])
    out4_d = conv_block_ref((out4_w[0] * in4 + out4_w[1] * pt4
                             + out4_w[2] * down2(out3_d)) / jnp.sum(out4_w),
                            blocks["out4_d"])
    out5_w = relu(fusion["out5_w"])
    out5_d = conv_block_ref((out5_w[0] * in5 + out5_w[1] * down2(out4_d))
                            / jnp.sum(out5_w), blocks["out5_d"])
    return out2_d, out3_d, out4_d, out5_d


# ---------------------------------------------------------------------------
# Deterministic parameter init (shapes from the module's __init__)
# ---------------------------------------------------------------------------
def init_params(key, C, bias=True):
    # TODO(synk): BatchNorm2d is implemented in inference mode (running stats);
    # training-mode batch statistics are not reproduced.
    blocks = {}
    for i, name in enumerate(["pt3", "pt4", "out5_d", "out4_d", "out3_d", "out2_d"]):
        k = jax.random.fold_in(key, i)
        kw_, kb, kg, kbe, km, kv = jax.random.split(k, 6)
        blocks[name] = dict(
            w=0.1 * jax.random.normal(kw_, (C, C, 3, 3), jnp.float32),
            b=(0.05 * jax.random.normal(kb, (C,), jnp.float32)
               if bias else jnp.zeros((C,), jnp.float32)),
            gamma=1.0 + 0.1 * jax.random.normal(kg, (C,), jnp.float32),
            beta=0.05 * jax.random.normal(kbe, (C,), jnp.float32),
            mean=0.05 * jax.random.normal(km, (C,), jnp.float32),
            var=1.0 + 0.1 * jnp.abs(jax.random.normal(kv, (C,), jnp.float32)),
        )
    fusion = {  # initialized to ones, exactly as in the PyTorch __init__
        "pt4_w": jnp.ones((2,), jnp.float32),
        "pt3_w": jnp.ones((2,), jnp.float32),
        "out2_w": jnp.ones((2,), jnp.float32),
        "out3_w": jnp.ones((3,), jnp.float32),
        "out4_w": jnp.ones((3,), jnp.float32),
        "out5_w": jnp.ones((2,), jnp.float32),
    }
    return blocks, fusion


if __name__ == "__main__":
    key = jax.random.PRNGKey(0)
    N, C, H = 2, 8, 16  # inner_channels=8, bias=True, weighted=True
    k1, k2, k3, k4, kp = jax.random.split(key, 5)

    # PyTorch-style NCHW inputs at the 4 pyramid scales
    in2 = jax.random.normal(k1, (N, C, H, H), jnp.float32)
    in3 = jax.random.normal(k2, (N, C, H // 2, H // 2), jnp.float32)
    in4 = jax.random.normal(k3, (N, C, H // 4, H // 4), jnp.float32)
    in5 = jax.random.normal(k4, (N, C, H // 8, H // 8), jnp.float32)

    blocks, fusion = init_params(kp, C, bias=True)

    to_nhwc = lambda x: jnp.transpose(x, (0, 2, 3, 1))
    to_nchw = lambda x: jnp.transpose(x, (0, 3, 1, 2))
    ins_nhwc = [to_nhwc(x) for x in (in2, in3, in4, in5)]

    run = jax.jit(bifpn_pallas)
    outs = run(*ins_nhwc, blocks, fusion)          # NHWC
    outs_nchw = [to_nchw(o) for o in outs]         # NCHW (PyTorch convention)
    jax.block_until_ready(outs_nchw)

    refs = bifpn_ref(*ins_nhwc, blocks, fusion)
    for o, r in zip(outs, refs):
        assert o.shape == r.shape, (o.shape, r.shape)
        assert jnp.allclose(o, r, atol=1e-3, rtol=1e-3), \
            float(jnp.max(jnp.abs(o - r)))

    print("KERNEL_OK")
</pallas_src>

<mosaic_0001>
module attributes {stable_mosaic.version = 11 : i64} {
  func.func @kernel(%arg0: i32, %arg1: memref<14xf32, #tpu.memory_space<smem>>, %arg2: memref<1x16x128xf32, #tpu.memory_space<vmem>>, %arg3: memref<1x8x64xf32, #tpu.memory_space<vmem>>, %arg4: memref<1x4x32xf32, #tpu.memory_space<vmem>>, %arg5: memref<1x2x16xf32, #tpu.memory_space<vmem>>, %arg6: memref<3x48x32xf32, #tpu.memory_space<vmem>>, %arg7: memref<3x80x64xf32, #tpu.memory_space<vmem>>, %arg8: memref<3x144x128xf32, #tpu.memory_space<vmem>>, %arg9: memref<3x80x64xf32, #tpu.memory_space<vmem>>, %arg10: memref<3x48x32xf32, #tpu.memory_space<vmem>>, %arg11: memref<3x32x16xf32, #tpu.memory_space<vmem>>, %arg12: memref<1x32xf32, #tpu.memory_space<vmem>>, %arg13: memref<1x64xf32, #tpu.memory_space<vmem>>, %arg14: memref<1x128xf32, #tpu.memory_space<vmem>>, %arg15: memref<1x64xf32, #tpu.memory_space<vmem>>, %arg16: memref<1x32xf32, #tpu.memory_space<vmem>>, %arg17: memref<1x16xf32, #tpu.memory_space<vmem>>, %arg18: memref<4x2xf32, #tpu.memory_space<vmem>>, %arg19: memref<16x32xf32, #tpu.memory_space<vmem>>, %arg20: memref<8x4xf32, #tpu.memory_space<vmem>>, %arg21: memref<32x64xf32, #tpu.memory_space<vmem>>, %arg22: memref<16x8xf32, #tpu.memory_space<vmem>>, %arg23: memref<64x128xf32, #tpu.memory_space<vmem>>, %arg24: memref<8x16xf32, #tpu.memory_space<vmem>>, %arg25: memref<128x64xf32, #tpu.memory_space<vmem>>, %arg26: memref<4x8xf32, #tpu.memory_space<vmem>>, %arg27: memref<64x32xf32, #tpu.memory_space<vmem>>, %arg28: memref<2x4xf32, #tpu.memory_space<vmem>>, %arg29: memref<32x16xf32, #tpu.memory_space<vmem>>, %arg30: memref<1x16x128xf32, #tpu.memory_space<vmem>>, %arg31: memref<1x8x64xf32, #tpu.memory_space<vmem>>, %arg32: memref<1x4x32xf32, #tpu.memory_space<vmem>>, %arg33: memref<1x2x16xf32, #tpu.memory_space<vmem>>, %arg34: memref<18x144xf32, #tpu.memory_space<vmem>>, %arg35: memref<10x80xf32, #tpu.memory_space<vmem>>, %arg36: memref<6x48xf32, #tpu.memory_space<vmem>>, %arg37: memref<4x32xf32, #tpu.memory_space<vmem>>) attributes {dimension_semantics = [#tpu.dimension_semantics<parallel>], iteration_bounds = array<i64: 2>, scalar_prefetch = 0 : i64, scratch_operands = 4 : i64, tpu.core_type = #tpu.core_type<tc>, window_params = [{transform_indices = @transform_0, window_bounds = array<i64: 14>}, {transform_indices = @transform_1, window_bounds = array<i64: 1, 16, 128>}, {transform_indices = @transform_2, window_bounds = array<i64: 1, 8, 64>}, {transform_indices = @transform_3, window_bounds = array<i64: 1, 4, 32>}, {transform_indices = @transform_4, window_bounds = array<i64: 1, 2, 16>}, {pipeline_mode = #tpu.pipeline_mode<synchronous>, transform_indices = @transform_5, window_bounds = array<i64: 3, 48, 32>}, {pipeline_mode = #tpu.pipeline_mode<synchronous>, transform_indices = @transform_6, window_bounds = array<i64: 3, 80, 64>}, {pipeline_mode = #tpu.pipeline_mode<synchronous>, transform_indices = @transform_7, window_bounds = array<i64: 3, 144, 128>}, {pipeline_mode = #tpu.pipeline_mode<synchronous>, transform_indices = @transform_8, window_bounds = array<i64: 3, 80, 64>}, {pipeline_mode = #tpu.pipeline_mode<synchronous>, transform_indices = @transform_9, window_bounds = array<i64: 3, 48, 32>}, {pipeline_mode = #tpu.pipeline_mode<synchronous>, transform_indices = @transform_10, window_bounds = array<i64: 3, 32, 16>}, {pipeline_mode = #tpu.pipeline_mode<synchronous>, transform_indices = @transform_11, window_bounds = array<i64: 1, 32>}, {pipeline_mode = #tpu.pipeline_mode<synchronous>, transform_indices = @transform_12, window_bounds = array<i64: 1, 64>}, {pipeline_mode = #tpu.pipeline_mode<synchronous>, transform_indices = @transform_13, window_bounds = array<i64: 1, 128>}, {pipeline_mode = #tpu.pipeline_mode<synchronous>, transform_indices = @transform_14, window_bounds = array<i64: 1, 64>}, {pipeline_mode = #tpu.pipeline_mode<synchronous>, transform_indices = @transform_15, window_bounds = array<i64: 1, 32>}, {pipeline_mode = #tpu.pipeline_mode<synchronous>, transform_indices = @transform_16, window_bounds = array<i64: 1, 16>}, {pipeline_mode = #tpu.pipeline_mode<synchronous>, transform_indices = @transform_17, window_bounds = array<i64: 4, 2>}, {pipeline_mode = #tpu.pipeline_mode<synchronous>, transform_indices = @transform_18, window_bounds = array<i64: 16, 32>}, {pipeline_mode = #tpu.pipeline_mode<synchronous>, transform_indices = @transform_19, window_bounds = array<i64: 8, 4>}, {pipeline_mode = #tpu.pipeline_mode<synchronous>, transform_indices = @transform_20, window_bounds = array<i64: 32, 64>}, {pipeline_mode = #tpu.pipeline_mode<synchronous>, transform_indices = @transform_21, window_bounds = array<i64: 16, 8>}, {pipeline_mode = #tpu.pipeline_mode<synchronous>, transform_indices = @transform_22, window_bounds = array<i64: 64, 128>}, {pipeline_mode = #tpu.pipeline_mode<synchronous>, transform_indices = @transform_23, window_bounds = array<i64: 8, 16>}, {pipeline_mode = #tpu.pipeline_mode<synchronous>, transform_indices = @transform_24, window_bounds = array<i64: 128, 64>}, {pipeline_mode = #tpu.pipeline_mode<synchronous>, transform_indices = @transform_25, window_bounds = array<i64: 4, 8>}, {pipeline_mode = #tpu.pipeline_mode<synchronous>, transform_indices = @transform_26, window_bounds = array<i64: 64, 32>}, {pipeline_mode = #tpu.pipeline_mode<synchronous>, transform_indices = @transform_27, window_bounds = array<i64: 2, 4>}, {pipeline_mode = #tpu.pipeline_mode<synchronous>, transform_indices = @transform_28, window_bounds = array<i64: 32, 16>}, {transform_indices = @transform_29, window_bounds = array<i64: 1, 16, 128>}, {transform_indices = @transform_30, window_bounds = array<i64: 1, 8, 64>}, {transform_indices = @transform_31, window_bounds = array<i64: 1, 4, 32>}, {transform_indices = @transform_32, window_bounds = array<i64: 1, 2, 16>}]} {
    %cst = arith.constant 0.000000e+00 : f32
    %0 = vector.broadcast %cst : f32 to vector<18x144xf32>
    %c0 = arith.constant 0 : index
    %c0_0 = arith.constant 0 : index
    %1 = vector.load %arg34[%c0, %c0_0] : memref<18x144xf32, #tpu.memory_space<vmem>>, vector<18x144xf32>
    tpu.vector_store %arg34[%c0, %c0_0], %0 {strides = array<i32>} : memref<18x144xf32, #tpu.memory_space<vmem>>, vector<18x144xf32>,
    %cst_1 = arith.constant 0.000000e+00 : f32
    %2 = vector.broadcast %cst_1 : f32 to vector<10x80xf32>
    %c0_2 = arith.constant 0 : index
    %c0_3 = arith.constant 0 : index
    %3 = vector.load %arg35[%c0_2, %c0_3] : memref<10x80xf32, #tpu.memory_space<vmem>>, vector<10x80xf32>
    tpu.vector_store %arg35[%c0_2, %c0_3], %2 {strides = array<i32>} : memref<10x80xf32, #tpu.memory_space<vmem>>, vector<10x80xf32>,
    %cst_4 = arith.constant 0.000000e+00 : f32
    %4 = vector.broadcast %cst_4 : f32 to vector<6x48xf32>
    %c0_5 = arith.constant 0 : index
    %c0_6 = arith.constant 0 : index
    %5 = vector.load %arg36[%c0_5, %c0_6] : memref<6x48xf32, #tpu.memory_space<vmem>>, vector<6x48xf32>
    tpu.vector_store %arg36[%c0_5, %c0_6], %4 {strides = array<i32>} : memref<6x48xf32, #tpu.memory_space<vmem>>, vector<6x48xf32>,
    %cst_7 = arith.constant 0.000000e+00 : f32
    %6 = vector.broadcast %cst_7 : f32 to vector<4x32xf32>
    %c0_8 = arith.constant 0 : index
    %c0_9 = arith.constant 0 : index
    %7 = vector.load %arg37[%c0_8, %c0_9] : memref<4x32xf32, #tpu.memory_space<vmem>>, vector<4x32xf32>
    tpu.vector_store %arg37[%c0_8, %c0_9], %6 {strides = array<i32>} : memref<4x32xf32, #tpu.memory_space<vmem>>, vector<4x32xf32>,
    %c0_10 = arith.constant 0 : index
    %c0_11 = arith.constant 0 : index
    %c0_12 = arith.constant 0 : index
    %8 = vector.load %arg2[%c0_10, %c0_11, %c0_12] : memref<1x16x128xf32, #tpu.memory_space<vmem>>, vector<1x16x128xf32>
    %9 = vector.shape_cast %8 : vector<1x16x128xf32> to vector<16x128xf32>
    %c0_13 = arith.constant 0 : index
    %c0_14 = arith.constant 0 : index
    %c0_15 = arith.constant 0 : index
    %10 = vector.load %arg3[%c0_13, %c0_14, %c0_15] : memref<1x8x64xf32, #tpu.memory_space<vmem>>, vector<1x8x64xf32>
    %11 = vector.shape_cast %10 : vector<1x8x64xf32> to vector<8x64xf32>
    %c0_16 = arith.constant 0 : index
    %c0_17 = arith.constant 0 : index
    %c0_18 = arith.constant 0 : index
    %12 = vector.load %arg4[%c0_16, %c0_17, %c0_18] : memref<1x4x32xf32, #tpu.memory_space<vmem>>, vector<1x4x32xf32>
    %13 = vector.shape_cast %12 : vector<1x4x32xf32> to vector<4x32xf32>
    %c0_19 = arith.constant 0 : index
    %c0_20 = arith.constant 0 : index
    %c0_21 = arith.constant 0 : index
    %14 = vector.load %arg5[%c0_19, %c0_20, %c0_21] : memref<1x2x16xf32, #tpu.memory_space<vmem>>, vector<1x2x16xf32>
    %15 = vector.shape_cast %14 : vector<1x2x16xf32> to vector<2x16xf32>
    %c0_22 = arith.constant 0 : index
    %16 = memref.load %arg1[%c0_22] : memref<14xf32, #tpu.memory_space<smem>>
    %17 = vector.broadcast %16 : f32 to vector<4x32xf32>
    %18 = arith.mulf %17, %13 : vector<4x32xf32>
    %c1 = arith.constant 1 : index
    %19 = memref.load %arg1[%c1] : memref<14xf32, #tpu.memory_space<smem>>
    %c0_23 = arith.constant 0 : index
    %c0_24 = arith.constant 0 : index
    %20 = vector.load %arg18[%c0_23, %c0_24] : memref<4x2xf32, #tpu.memory_space<vmem>>, vector<4x2xf32>
    %cst_25 = arith.constant dense<0.000000e+00> : vector<4x16xf32>
    %21 = tpu.matmul %20, %15, %cst_25 {dimension_numbers = #tpu.dot_dimension_numbers<[1], [0], [0], [1], [0, 0, 1, 1], [], []>} : vector<4x2xf32>, vector<2x16xf32>, vector<4x16xf32> -> vector<4x16xf32>
    %c0_26 = arith.constant 0 : index
    %c0_27 = arith.constant 0 : index
    %22 = vector.load %arg19[%c0_26, %c0_27] : memref<16x32xf32, #tpu.memory_space<vmem>>, vector<16x32xf32>
    %cst_28 = arith.constant dense<0.000000e+00> : vector<4x32xf32>
    %23 = tpu.matmul %21, %22, %cst_28 {dimension_numbers = #tpu.dot_dimension_numbers<[1], [0], [0], [1], [0, 0, 1, 1], [], []>} : vector<4x16xf32>, vector<16x32xf32>, vector<4x32xf32> -> vector<4x32xf32>
    %24 = vector.broadcast %19 : f32 to vector<4x32xf32>
    %25 = arith.mulf %24, %23 : vector<4x32xf32>
    %26 = arith.addf %18, %25 : vector<4x32xf32>
    %c1_29 = arith.constant 1 : index
    %c0_30 = arith.constant 0 : index
    %27 = vector.load %arg36[%c1_29, %c0_30] : memref<6x48xf32, #tpu.memory_space<vmem>>, vector<4x32xf32>
    tpu.vector_store %arg36[%c1_29, %c0_30], %26 {strides = array<i32>} : memref<6x48xf32, #tpu.memory_space<vmem>>, vector<4x32xf32>,
    %c0_31 = arith.constant 0 : index
    %c0_32 = arith.constant 0 : index
    %28 = vector.load %arg36[%c0_31, %c0_32] : memref<6x48xf32, #tpu.memory_space<vmem>>, vector<4x48xf32>
    %c0_33 = arith.constant 0 : index
    %c0_34 = arith.constant 0 : index
    %c0_35 = arith.constant 0 : index
    %29 = vector.load %arg6[%c0_33, %c0_34, %c0_35] : memref<3x48x32xf32, #tpu.memory_space<vmem>>, vector<1x48x32xf32>
    %30 = vector.shape_cast %29 : vector<1x48x32xf32> to vector<48x32xf32>
    %cst_36 = arith.constant dense<0.000000e+00> : vector<4x32xf32>
    %31 = tpu.matmul %28, %30, %cst_36 {dimension_numbers = #tpu.dot_dimension_numbers<[1], [0], [0], [1], [0, 0, 1, 1], [], []>} : vector<4x48xf32>, vector<48x32xf32>, vector<4x32xf32> -> vector<4x32xf32>
    %c1_37 = arith.constant 1 : index
    %c0_38 = arith.constant 0 : index
    %32 = vector.load %arg36[%c1_37, %c0_38] : memref<6x48xf32, #tpu.memory_space<vmem>>, vector<4x48xf32>
    %c1_39 = arith.constant 1 : index
    %c0_40 = arith.constant 0 : index
    %c0_41 = arith.constant 0 : index
    %33 = vector.load %arg6[%c1_39, %c0_40, %c0_41] : memref<3x48x32xf32, #tpu.memory_space<vmem>>, vector<1x48x32xf32>
    %34 = vector.shape_cast %33 : vector<1x48x32xf32> to vector<48x32xf32>
    %cst_42 = arith.constant dense<0.000000e+00> : vector<4x32xf32>
    %35 = tpu.matmul %32, %34, %cst_42 {dimension_numbers = #tpu.dot_dimension_numbers<[1], [0], [0], [1], [0, 0, 1, 1], [], []>} : vector<4x48xf32>, vector<48x32xf32>, vector<4x32xf32> -> vector<4x32xf32>
    %36 = arith.addf %31, %35 : vector<4x32xf32>
    %c2 = arith.constant 2 : index
    %c0_43 = arith.constant 0 : index
    %37 = vector.load %arg36[%c2, %c0_43] : memref<6x48xf32, #tpu.memory_space<vmem>>, vector<4x48xf32>
    %c2_44 = arith.constant 2 : index
    %c0_45 = arith.constant 0 : index
    %c0_46 = arith.constant 0 : index
    %38 = vector.load %arg6[%c2_44, %c0_45, %c0_46] : memref<3x48x32xf32, #tpu.memory_space<vmem>>, vector<1x48x32xf32>
    %39 = vector.shape_cast %38 : vector<1x48x32xf32> to vector<48x32xf32>
    %cst_47 = arith.constant dense<0.000000e+00> : vector<4x32xf32>
    %40 = tpu.matmul %37, %39, %cst_47 {dimension_numbers = #tpu.dot_dimension_numbers<[1], [0], [0], [1], [0, 0, 1, 1], [], []>} : vector<4x48xf32>, vector<48x32xf32>, vector<4x32xf32> -> vector<4x32xf32>
    %41 = arith.addf %36, %40 : vector<4x32xf32>
    %c0_48 = arith.constant 0 : index
    %c0_49 = arith.constant 0 : index
    %42 = vector.load %arg12[%c0_48, %c0_49] : memref<1x32xf32, #tpu.memory_space<vmem>>, vector<1x32xf32>
    %43 = vector.broadcast %42 : vector<1x32xf32> to vector<4x32xf32>
    %44 = arith.addf %41, %43 : vector<4x32xf32>
    %cst_50 = arith.constant 0.000000e+00 : f32
    %45 = vector.broadcast %cst_50 : f32 to vector<4x32xf32>
    %46 = arith.maximumf %44, %45 : vector<4x32xf32>
    %c2_51 = arith.constant 2 : index
    %47 = memref.load %arg1[%c2_51] : memref<14xf32, #tpu.memory_space<smem>>
    %48 = vector.broadcast %47 : f32 to vector<8x64xf32>
    %49 = arith.mulf %48, %11 : vector<8x64xf32>
    %c3 = arith.constant 3 : index
    %50 = memref.load %arg1[%c3] : memref<14xf32, #tpu.memory_space<smem>>
    %c0_52 = arith.constant 0 : index
    %c0_53 = arith.constant 0 : index
    %51 = vector.load %arg20[%c0_52, %c0_53] : memref<8x4xf32, #tpu.memory_space<vmem>>, vector<8x4xf32>
    %cst_54 = arith.constant dense<0.000000e+00> : vector<8x32xf32>
    %52 = tpu.matmul %51, %46, %cst_54 {dimension_numbers = #tpu.dot_dimension_numbers<[1], [0], [0], [1], [0, 0, 1, 1], [], []>} : vector<8x4xf32>, vector<4x32xf32>, vector<8x32xf32> -> vector<8x32xf32>
    %c0_55 = arith.constant 0 : index
    %c0_56 = arith.constant 0 : index
    %53 = vector.load %arg21[%c0_55, %c0_56] : memref<32x64xf32, #tpu.memory_space<vmem>>, vector<32x64xf32>
    %cst_57 = arith.constant dense<0.000000e+00> : vector<8x64xf32>
    %54 = tpu.matmul %52, %53, %cst_57 {dimension_numbers = #tpu.dot_dimension_numbers<[1], [0], [0], [1], [0, 0, 1, 1], [], []>} : vector<8x32xf32>, vector<32x64xf32>, vector<8x64xf32> -> vector<8x64xf32>
    %55 = vector.broadcast %50 : f32 to vector<8x64xf32>
    %56 = arith.mulf %55, %54 : vector<8x64xf32>
    %57 = arith.addf %49, %56 : vector<8x64xf32>
    %c1_58 = arith.constant 1 : index
    %c0_59 = arith.constant 0 : index
    %58 = vector.load %arg35[%c1_58, %c0_59] : memref<10x80xf32, #tpu.memory_space<vmem>>, vector<8x64xf32>
    tpu.vector_store %arg35[%c1_58, %c0_59], %57 {strides = array<i32>} : memref<10x80xf32, #tpu.memory_space<vmem>>, vector<8x64xf32>,
    %c0_60 = arith.constant 0 : index
    %c0_61 = arith.constant 0 : index
    %59 = vector.load %arg35[%c0_60, %c0_61] : memref<10x80xf32, #tpu.memory_space<vmem>>, vector<8x80xf32>
    %c0_62 = arith.constant 0 : index
    %c0_63 = arith.constant 0 : index
    %c0_64 = arith.constant 0 : index
    %60 = vector.load %arg7[%c0_62, %c0_63, %c0_64] : memref<3x80x64xf32, #tpu.memory_space<vmem>>, vector<1x80x64xf32>
    %61 = vector.shape_cast %60 : vector<1x80x64xf32> to vector<80x64xf32>
    %cst_65 = arith.constant dense<0.000000e+00> : vector<8x64xf32>
    %62 = tpu.matmul %59, %61, %cst_65 {dimension_numbers = #tpu.dot_dimension_numbers<[1], [0], [0], [1], [0, 0, 1, 1], [], []>} : vector<8x80xf32>, vector<80x64xf32>, vector<8x64xf32> -> vector<8x64xf32>
    %c1_66 = arith.constant 1 : index
    %c0_67 = arith.constant 0 : index
    %63 = vector.load %arg35[%c1_66, %c0_67] : memref<10x80xf32, #tpu.memory_space<vmem>>, vector<8x80xf32>
    %c1_68 = arith.constant 1 : index
    %c0_69 = arith.constant 0 : index
    %c0_70 = arith.constant 0 : index
    %64 = vector.load %arg7[%c1_68, %c0_69, %c0_70] : memref<3x80x64xf32, #tpu.memory_space<vmem>>, vector<1x80x64xf32>
    %65 = vector.shape_cast %64 : vector<1x80x64xf32> to vector<80x64xf32>
    %cst_71 = arith.constant dense<0.000000e+00> : vector<8x64xf32>
    %66 = tpu.matmul %63, %65, %cst_71 {dimension_numbers = #tpu.dot_dimension_numbers<[1], [0], [0], [1], [0, 0, 1, 1], [], []>} : vector<8x80xf32>, vector<80x64xf32>, vector<8x64xf32> -> vector<8x64xf32>
    %67 = arith.addf %62, %66 : vector<8x64xf32>
    %c2_72 = arith.constant 2 : index
    %c0_73 = arith.constant 0 : index
    %68 = vector.load %arg35[%c2_72, %c0_73] : memref<10x80xf32, #tpu.memory_space<vmem>>, vector<8x80xf32>
    %c2_74 = arith.constant 2 : index
    %c0_75 = arith.constant 0 : index
    %c0_76 = arith.constant 0 : index
    %69 = vector.load %arg7[%c2_74, %c0_75, %c0_76] : memref<3x80x64xf32, #tpu.memory_space<vmem>>, vector<1x80x64xf32>
    %70 = vector.shape_cast %69 : vector<1x80x64xf32> to vector<80x64xf32>
    %cst_77 = arith.constant dense<0.000000e+00> : vector<8x64xf32>
    %71 = tpu.matmul %68, %70, %cst_77 {dimension_numbers = #tpu.dot_dimension_numbers<[1], [0], [0], [1], [0, 0, 1, 1], [], []>} : vector<8x80xf32>, vector<80x64xf32>, vector<8x64xf32> -> vector<8x64xf32>
    %72 = arith.addf %67, %71 : vector<8x64xf32>
    %c0_78 = arith.constant 0 : index
    %c0_79 = arith.constant 0 : index
    %73 = vector.load %arg13[%c0_78, %c0_79] : memref<1x64xf32, #tpu.memory_space<vmem>>, vector<1x64xf32>
    %74 = vector.broadcast %73 : vector<1x64xf32> to vector<8x64xf32>
    %75 = arith.addf %72, %74 : vector<8x64xf32>
    %cst_80 = arith.constant 0.000000e+00 : f32
    %76 = vector.broadcast %cst_80 : f32 to vector<8x64xf32>
    %77 = arith.maximumf %75, %76 : vector<8x64xf32>
    %c4 = arith.constant 4 : index
    %78 = memref.load %arg1[%c4] : memref<14xf32, #tpu.memory_space<smem>>
    %79 = vector.broadcast %78 : f32 to vector<16x128xf32>
    %80 = arith.mulf %79, %9 : vector<16x128xf32>
    %c5 = arith.constant 5 : index
    %81 = memref.load %arg1[%c5] : memref<14xf32, #tpu.memory_space<smem>>
    %c0_81 = arith.constant 0 : index
    %c0_82 = arith.constant 0 : index
    %82 = vector.load %arg22[%c0_81, %c0_82] : memref<16x8xf32, #tpu.memory_space<vmem>>, vector<16x8xf32>
    %cst_83 = arith.constant dense<0.000000e+00> : vector<16x64xf32>
    %83 = tpu.matmul %82, %77, %cst_83 {dimension_numbers = #tpu.dot_dimension_numbers<[1], [0], [0], [1], [0, 0, 1, 1], [], []>} : vector<16x8xf32>, vector<8x64xf32>, vector<16x64xf32> -> vector<16x64xf32>
    %c0_84 = arith.constant 0 : index
    %c0_85 = arith.constant 0 : index
    %84 = vector.load %arg23[%c0_84, %c0_85] : memref<64x128xf32, #tpu.memory_space<vmem>>, vector<64x128xf32>
    %cst_86 = arith.constant dense<0.000000e+00> : vector<16x128xf32>
    %85 = tpu.matmul %83, %84, %cst_86 {dimension_numbers = #tpu.dot_dimension_numbers<[1], [0], [0], [1], [0, 0, 1, 1], [], []>} : vector<16x64xf32>, vector<64x128xf32>, vector<16x128xf32> -> vector<16x128xf32>
    %86 = vector.broadcast %81 : f32 to vector<16x128xf32>
    %87 = arith.mulf %86, %85 : vector<16x128xf32>
    %88 = arith.addf %80, %87 : vector<16x128xf32>
    %c1_87 = arith.constant 1 : index
    %c0_88 = arith.constant 0 : index
    %89 = vector.load %arg34[%c1_87, %c0_88] : memref<18x144xf32, #tpu.memory_space<vmem>>, vector<16x128xf32>
    tpu.vector_store %arg34[%c1_87, %c0_88], %88 {strides = array<i32>} : memref<18x144xf32, #tpu.memory_space<vmem>>, vector<16x128xf32>,
    %c0_89 = arith.constant 0 : index
    %c0_90 = arith.constant 0 : index
    %90 = vector.load %arg34[%c0_89, %c0_90] : memref<18x144xf32, #tpu.memory_space<vmem>>, vector<16x144xf32>
    %c0_91 = arith.constant 0 : index
    %c0_92 = arith.constant 0 : index
    %c0_93 = arith.constant 0 : index
    %91 = vector.load %arg8[%c0_91, %c0_92, %c0_93] : memref<3x144x128xf32, #tpu.memory_space<vmem>>, vector<1x144x128xf32>
    %92 = vector.shape_cast %91 : vector<1x144x128xf32> to vector<144x128xf32>
    %cst_94 = arith.constant dense<0.000000e+00> : vector<16x128xf32>
    %93 = tpu.matmul %90, %92, %cst_94 {dimension_numbers = #tpu.dot_dimension_numbers<[1], [0], [0], [1], [0, 0, 1, 1], [], []>} : vector<16x144xf32>, vector<144x128xf32>, vector<16x128xf32> -> vector<16x128xf32>
    %c1_95 = arith.constant 1 : index
    %c0_96 = arith.constant 0 : index
    %94 = vector.load %arg34[%c1_95, %c0_96] : memref<18x144xf32, #tpu.memory_space<vmem>>, vector<16x144xf32>
    %c1_97 = arith.constant 1 : index
    %c0_98 = arith.constant 0 : index
    %c0_99 = arith.constant 0 : index
    %95 = vector.load %arg8[%c1_97, %c0_98, %c0_99] : memref<3x144x128xf32, #tpu.memory_space<vmem>>, vector<1x144x128xf32>
    %96 = vector.shape_cast %95 : vector<1x144x128xf32> to vector<144x128xf32>
    %cst_100 = arith.constant dense<0.000000e+00> : vector<16x128xf32>
    %97 = tpu.matmul %94, %96, %cst_100 {dimension_numbers = #tpu.dot_dimension_numbers<[1], [0], [0], [1], [0, 0, 1, 1], [], []>} : vector<16x144xf32>, vector<144x128xf32>, vector<16x128xf32> -> vector<16x128xf32>
    %98 = arith.addf %93, %97 : vector<16x128xf32>
    %c2_101 = arith.constant 2 : index
    %c0_102 = arith.constant 0 : index
    %99 = vector.load %arg34[%c2_101, %c0_102] : memref<18x144xf32, #tpu.memory_space<vmem>>, vector<16x144xf32>
    %c2_103 = arith.constant 2 : index
    %c0_104 = arith.constant 0 : index
    %c0_105 = arith.constant 0 : index
    %100 = vector.load %arg8[%c2_103, %c0_104, %c0_105] : memref<3x144x128xf32, #tpu.memory_space<vmem>>, vector<1x144x128xf32>
    %101 = vector.shape_cast %100 : vector<1x144x128xf32> to vector<144x128xf32>
    %cst_106 = arith.constant dense<0.000000e+00> : vector<16x128xf32>
    %102 = tpu.matmul %99, %101, %cst_106 {dimension_numbers = #tpu.dot_dimension_numbers<[1], [0], [0], [1], [0, 0, 1, 1], [], []>} : vector<16x144xf32>, vector<144x128xf32>, vector<16x128xf32> -> vector<16x128xf32>
    %103 = arith.addf %98, %102 : vector<16x128xf32>
    %c0_107 = arith.constant 0 : index
    %c0_108 = arith.constant 0 : index
    %104 = vector.load %arg14[%c0_107, %c0_108] : memref<1x128xf32, #tpu.memory_space<vmem>>, vector<1x128xf32>
    %105 = vector.broadcast %104 : vector<1x128xf32> to vector<16x128xf32>
    %106 = arith.addf %103, %105 : vector<16x128xf32>
    %cst_109 = arith.constant 0.000000e+00 : f32
    %107 = vector.broadcast %cst_109 : f32 to vector<16x128xf32>
    %108 = arith.maximumf %106, %107 : vector<16x128xf32>
    %c0_110 = arith.constant 0 : index
    %c0_111 = arith.constant 0 : index
    %c0_112 = arith.constant 0 : index
    %109 = vector.load %arg30[%c0_110, %c0_111, %c0_112] : memref<1x16x128xf32, #tpu.memory_space<vmem>>, vector<1x16x128xf32>
    %110 = vector.shape_cast %109 : vector<1x16x128xf32> to vector<16x128xf32>
    %111 = vector.shape_cast %108 : vector<16x128xf32> to vector<1x16x128xf32>
    tpu.vector_store %arg30[%c0_110, %c0_111, %c0_112], %111 {strides = array<i32>} : memref<1x16x128xf32, #tpu.memory_space<vmem>>, vector<1x16x128xf32>,
    %c6 = arith.constant 6 : index
    %112 = memref.load %arg1[%c6] : memref<14xf32, #tpu.memory_space<smem>>
    %113 = vector.broadcast %112 : f32 to vector<8x64xf32>
    %114 = arith.mulf %113, %11 : vector<8x64xf32>
    %c7 = arith.constant 7 : index
    %115 = memref.load %arg1[%c7] : memref<14xf32, #tpu.memory_space<smem>>
    %116 = vector.broadcast %115 : f32 to vector<8x64xf32>
    %117 = arith.mulf %116, %77 : vector<8x64xf32>
    %118 = arith.addf %114, %117 : vector<8x64xf32>
    %c8 = arith.constant 8 : index
    %119 = memref.load %arg1[%c8] : memref<14xf32, #tpu.memory_space<smem>>
    %c0_113 = arith.constant 0 : index
    %c0_114 = arith.constant 0 : index
    %120 = vector.load %arg24[%c0_113, %c0_114] : memref<8x16xf32, #tpu.memory_space<vmem>>, vector<8x16xf32>
    %cst_115 = arith.constant dense<0.000000e+00> : vector<8x128xf32>
    %121 = tpu.matmul %120, %108, %cst_115 {dimension_numbers = #tpu.dot_dimension_numbers<[1], [0], [0], [1], [0, 0, 1, 1], [], []>} : vector<8x16xf32>, vector<16x128xf32>, vector<8x128xf32> -> vector<8x128xf32>
    %c0_116 = arith.constant 0 : index
    %c0_117 = arith.constant 0 : index
    %122 = vector.load %arg25[%c0_116, %c0_117] : memref<128x64xf32, #tpu.memory_space<vmem>>, vector<128x64xf32>
    %cst_118 = arith.constant dense<0.000000e+00> : vector<8x64xf32>
    %123 = tpu.matmul %121, %122, %cst_118 {dimension_numbers = #tpu.dot_dimension_numbers<[1], [0], [0], [1], [0, 0, 1, 1], [], []>} : vector<8x128xf32>, vector<128x64xf32>, vector<8x64xf32> -> vector<8x64xf32>
    %124 = vector.broadcast %119 : f32 to vector<8x64xf32>
    %125 = arith.mulf %124, %123 : vector<8x64xf32>
    %126 = arith.addf %118, %125 : vector<8x64xf32>
    %c1_119 = arith.constant 1 : index
    %c0_120 = arith.constant 0 : index
    %127 = vector.load %arg35[%c1_119, %c0_120] : memref<10x80xf32, #tpu.memory_space<vmem>>, vector<8x64xf32>
    tpu.vector_store %arg35[%c1_119, %c0_120], %126 {strides = array<i32>} : memref<10x80xf32, #tpu.memory_space<vmem>>, vector<8x64xf32>,
    %c0_121 = arith.constant 0 : index
    %c0_122 = arith.constant 0 : index
    %128 = vector.load %arg35[%c0_121, %c0_122] : memref<10x80xf32, #tpu.memory_space<vmem>>, vector<8x80xf32>
    %c0_123 = arith.constant 0 : index
    %c0_124 = arith.constant 0 : index
    %c0_125 = arith.constant 0 : index
    %129 = vector.load %arg9[%c0_123, %c0_124, %c0_125] : memref<3x80x64xf32, #tpu.memory_space<vmem>>, vector<1x80x64xf32>
    %130 = vector.shape_cast %129 : vector<1x80x64xf32> to vector<80x64xf32>
    %cst_126 = arith.constant dense<0.000000e+00> : vector<8x64xf32>
    %131 = tpu.matmul %128, %130, %cst_126 {dimension_numbers = #tpu.dot_dimension_numbers<[1], [0], [0], [1], [0, 0, 1, 1], [], []>} : vector<8x80xf32>, vector<80x64xf32>, vector<8x64xf32> -> vector<8x64xf32>
    %c1_127 = arith.constant 1 : index
    %c0_128 = arith.constant 0 : index
    %132 = vector.load %arg35[%c1_127, %c0_128] : memref<10x80xf32, #tpu.memory_space<vmem>>, vector<8x80xf32>
    %c1_129 = arith.constant 1 : index
    %c0_130 = arith.constant 0 : index
    %c0_131 = arith.constant 0 : index
    %133 = vector.load %arg9[%c1_129, %c0_130, %c0_131] : memref<3x80x64xf32, #tpu.memory_space<vmem>>, vector<1x80x64xf32>
    %134 = vector.shape_cast %133 : vector<1x80x64xf32> to vector<80x64xf32>
    %cst_132 = arith.constant dense<0.000000e+00> : vector<8x64xf32>
    %135 = tpu.matmul %132, %134, %cst_132 {dimension_numbers = #tpu.dot_dimension_numbers<[1], [0], [0], [1], [0, 0, 1, 1], [], []>} : vector<8x80xf32>, vector<80x64xf32>, vector<8x64xf32> -> vector<8x64xf32>
    %136 = arith.addf %131, %135 : vector<8x64xf32>
    %c2_133 = arith.constant 2 : index
    %c0_134 = arith.constant 0 : index
    %137 = vector.load %arg35[%c2_133, %c0_134] : memref<10x80xf32, #tpu.memory_space<vmem>>, vector<8x80xf32>
    %c2_135 = arith.constant 2 : index
    %c0_136 = arith.constant 0 : index
    %c0_137 = arith.constant 0 : index
    %138 = vector.load %arg9[%c2_135, %c0_136, %c0_137] : memref<3x80x64xf32, #tpu.memory_space<vmem>>, vector<1x80x64xf32>
    %139 = vector.shape_cast %138 : vector<1x80x64xf32> to vector<80x64xf32>
    %cst_138 = arith.constant dense<0.000000e+00> : vector<8x64xf32>
    %140 = tpu.matmul %137, %139, %cst_138 {dimension_numbers = #tpu.dot_dimension_numbers<[1], [0], [0], [1], [0, 0, 1, 1], [], []>} : vector<8x80xf32>, vector<80x64xf32>, vector<8x64xf32> -> vector<8x64xf32>
    %141 = arith.addf %136, %140 : vector<8x64xf32>
    %c0_139 = arith.constant 0 : index
    %c0_140 = arith.constant 0 : index
    %142 = vector.load %arg15[%c0_139, %c0_140] : memref<1x64xf32, #tpu.memory_space<vmem>>, vector<1x64xf32>
    %143 = vector.broadcast %142 : vector<1x64xf32> to vector<8x64xf32>
    %144 = arith.addf %141, %143 : vector<8x64xf32>
    %cst_141 = arith.constant 0.000000e+00 : f32
    %145 = vector.broadcast %cst_141 : f32 to vector<8x64xf32>
    %146 = arith.maximumf %144, %145 : vector<8x64xf32>
    %c0_142 = arith.constant 0 : index
    %c0_143 = arith.constant 0 : index
    %c0_144 = arith.constant 0 : index
    %147 = vector.load %arg31[%c0_142, %c0_143, %c0_144] : memref<1x8x64xf32, #tpu.memory_space<vmem>>, vector<1x8x64xf32>
    %148 = vector.shape_cast %147 : vector<1x8x64xf32> to vector<8x64xf32>
    %149 = vector.shape_cast %146 : vector<8x64xf32> to vector<1x8x64xf32>
    tpu.vector_store %arg31[%c0_142, %c0_143, %c0_144], %149 {strides = array<i32>} : memref<1x8x64xf32, #tpu.memory_space<vmem>>, vector<1x8x64xf32>,
    %c9 = arith.constant 9 : index
    %150 = memref.load %arg1[%c9] : memref<14xf32, #tpu.memory_space<smem>>
    %151 = vector.broadcast %150 : f32 to vector<4x32xf32>
    %152 = arith.mulf %151, %13 : vector<4x32xf32>
    %c10 = arith.constant 10 : index
    %153 = memref.load %arg1[%c10] : memref<14xf32, #tpu.memory_space<smem>>
    %154 = vector.broadcast %153 : f32 to vector<4x32xf32>
    %155 = arith.mulf %154, %46 : vector<4x32xf32>
    %156 = arith.addf %152, %155 : vector<4x32xf32>
    %c11 = arith.constant 11 : index
    %157 = memref.load %arg1[%c11] : memref<14xf32, #tpu.memory_space<smem>>
    %c0_145 = arith.constant 0 : index
    %c0_146 = arith.constant 0 : index
    %158 = vector.load %arg26[%c0_145, %c0_146] : memref<4x8xf32, #tpu.memory_space<vmem>>, vector<4x8xf32>
    %cst_147 = arith.constant dense<0.000000e+00> : vector<4x64xf32>
    %159 = tpu.matmul %158, %146, %cst_147 {dimension_numbers = #tpu.dot_dimension_numbers<[1], [0], [0], [1], [0, 0, 1, 1], [], []>} : vector<4x8xf32>, vector<8x64xf32>, vector<4x64xf32> -> vector<4x64xf32>
    %c0_148 = arith.constant 0 : index
    %c0_149 = arith.constant 0 : index
    %160 = vector.load %arg27[%c0_148, %c0_149] : memref<64x32xf32, #tpu.memory_space<vmem>>, vector<64x32xf32>
    %cst_150 = arith.constant dense<0.000000e+00> : vector<4x32xf32>
    %161 = tpu.matmul %159, %160, %cst_150 {dimension_numbers = #tpu.dot_dimension_numbers<[1], [0], [0], [1], [0, 0, 1, 1], [], []>} : vector<4x64xf32>, vector<64x32xf32>, vector<4x32xf32> -> vector<4x32xf32>
    %162 = vector.broadcast %157 : f32 to vector<4x32xf32>
    %163 = arith.mulf %162, %161 : vector<4x32xf32>
    %164 = arith.addf %156, %163 : vector<4x32xf32>
    %c1_151 = arith.constant 1 : index
    %c0_152 = arith.constant 0 : index
    %165 = vector.load %arg36[%c1_151, %c0_152] : memref<6x48xf32, #tpu.memory_space<vmem>>, vector<4x32xf32>
    tpu.vector_store %arg36[%c1_151, %c0_152], %164 {strides = array<i32>} : memref<6x48xf32, #tpu.memory_space<vmem>>, vector<4x32xf32>,
    %c0_153 = arith.constant 0 : index
    %c0_154 = arith.constant 0 : index
    %166 = vector.load %arg36[%c0_153, %c0_154] : memref<6x48xf32, #tpu.memory_space<vmem>>, vector<4x48xf32>
    %c0_155 = arith.constant 0 : index
    %c0_156 = arith.constant 0 : index
    %c0_157 = arith.constant 0 : index
    %167 = vector.load %arg10[%c0_155, %c0_156, %c0_157] : memref<3x48x32xf32, #tpu.memory_space<vmem>>, vector<1x48x32xf32>
    %168 = vector.shape_cast %167 : vector<1x48x32xf32> to vector<48x32xf32>
    %cst_158 = arith.constant dense<0.000000e+00> : vector<4x32xf32>
    %169 = tpu.matmul %166, %168, %cst_158 {dimension_numbers = #tpu.dot_dimension_numbers<[1], [0], [0], [1], [0, 0, 1, 1], [], []>} : vector<4x48xf32>, vector<48x32xf32>, vector<4x32xf32> -> vector<4x32xf32>
    %c1_159 = arith.constant 1 : index
    %c0_160 = arith.constant 0 : index
    %170 = vector.load %arg36[%c1_159, %c0_160] : memref<6x48xf32, #tpu.memory_space<vmem>>, vector<4x48xf32>
    %c1_161 = arith.constant 1 : index
    %c0_162 = arith.constant 0 : index
    %c0_163 = arith.constant 0 : index
    %171 = vector.load %arg10[%c1_161, %c0_162, %c0_163] : memref<3x48x32xf32, #tpu.memory_space<vmem>>, vector<1x48x32xf32>
    %172 = vector.shape_cast %171 : vector<1x48x32xf32> to vector<48x32xf32>
    %cst_164 = arith.constant dense<0.000000e+00> : vector<4x32xf32>
    %173 = tpu.matmul %170, %172, %cst_164 {dimension_numbers = #tpu.dot_dimension_numbers<[1], [0], [0], [1], [0, 0, 1, 1], [], []>} : vector<4x48xf32>, vector<48x32xf32>, vector<4x32xf32> -> vector<4x32xf32>
    %174 = arith.addf %169, %173 : vector<4x32xf32>
    %c2_165 = arith.constant 2 : index
    %c0_166 = arith.constant 0 : index
    %175 = vector.load %arg36[%c2_165, %c0_166] : memref<6x48xf32, #tpu.memory_space<vmem>>, vector<4x48xf32>
    %c2_167 = arith.constant 2 : index
    %c0_168 = arith.constant 0 : index
    %c0_169 = arith.constant 0 : index
    %176 = vector.load %arg10[%c2_167, %c0_168, %c0_169] : memref<3x48x32xf32, #tpu.memory_space<vmem>>, vector<1x48x32xf32>
    %177 = vector.shape_cast %176 : vector<1x48x32xf32> to vector<48x32xf32>
    %cst_170 = arith.constant dense<0.000000e+00> : vector<4x32xf32>
    %178 = tpu.matmul %175, %177, %cst_170 {dimension_numbers = #tpu.dot_dimension_numbers<[1], [0], [0], [1], [0, 0, 1, 1], [], []>} : vector<4x48xf32>, vector<48x32xf32>, vector<4x32xf32> -> vector<4x32xf32>
    %179 = arith.addf %174, %178 : vector<4x32xf32>
    %c0_171 = arith.constant 0 : index
    %c0_172 = arith.constant 0 : index
    %180 = vector.load %arg16[%c0_171, %c0_172] : memref<1x32xf32, #tpu.memory_space<vmem>>, vector<1x32xf32>
    %181 = vector.broadcast %180 : vector<1x32xf32> to vector<4x32xf32>
    %182 = arith.addf %179, %181 : vector<4x32xf32>
    %cst_173 = arith.constant 0.000000e+00 : f32
    %183 = vector.broadcast %cst_173 : f32 to vector<4x32xf32>
    %184 = arith.maximumf %182, %183 : vector<4x32xf32>
    %c0_174 = arith.constant 0 : index
    %c0_175 = arith.constant 0 : index
    %c0_176 = arith.constant 0 : index
    %185 = vector.load %arg32[%c0_174, %c0_175, %c0_176] : memref<1x4x32xf32, #tpu.memory_space<vmem>>, vector<1x4x32xf32>
    %186 = vector.shape_cast %185 : vector<1x4x32xf32> to vector<4x32xf32>
    %187 = vector.shape_cast %184 : vector<4x32xf32> to vector<1x4x32xf32>
    tpu.vector_store %arg32[%c0_174, %c0_175, %c0_176], %187 {strides = array<i32>} : memref<1x4x32xf32, #tpu.memory_space<vmem>>, vector<1x4x32xf32>,
    %c12 = arith.constant 12 : index
    %188 = memref.load %arg1[%c12] : memref<14xf32, #tpu.memory_space<smem>>
    %189 = vector.broadcast %188 : f32 to vector<2x16xf32>
    %190 = arith.mulf %189, %15 : vector<2x16xf32>
    %c13 = arith.constant 13 : index
    %191 = memref.load %arg1[%c13] : memref<14xf32, #tpu.memory_space<smem>>
    %c0_177 = arith.constant 0 : index
    %c0_178 = arith.constant 0 : index
    %192 = vector.load %arg28[%c0_177, %c0_178] : memref<2x4xf32, #tpu.memory_space<vmem>>, vector<2x4xf32>
    %cst_179 = arith.constant dense<0.000000e+00> : vector<2x32xf32>
    %193 = tpu.matmul %192, %184, %cst_179 {dimension_numbers = #tpu.dot_dimension_numbers<[1], [0], [0], [1], [0, 0, 1, 1], [], []>} : vector<2x4xf32>, vector<4x32xf32>, vector<2x32xf32> -> vector<2x32xf32>
    %c0_180 = arith.constant 0 : index
    %c0_181 = arith.constant 0 : index
    %194 = vector.load %arg29[%c0_180, %c0_181] : memref<32x16xf32, #tpu.memory_space<vmem>>, vector<32x16xf32>
    %cst_182 = arith.constant dense<0.000000e+00> : vector<2x16xf32>
    %195 = tpu.matmul %193, %194, %cst_182 {dimension_numbers = #tpu.dot_dimension_numbers<[1], [0], [0], [1], [0, 0, 1, 1], [], []>} : vector<2x32xf32>, vector<32x16xf32>, vector<2x16xf32> -> vector<2x16xf32>
    %196 = vector.broadcast %191 : f32 to vector<2x16xf32>
    %197 = arith.mulf %196, %195 : vector<2x16xf32>
    %198 = arith.addf %190, %197 : vector<2x16xf32>
    %c1_183 = arith.constant 1 : index
    %c0_184 = arith.constant 0 : index
    %199 = vector.load %arg37[%c1_183, %c0_184] : memref<4x32xf32, #tpu.memory_space<vmem>>, vector<2x16xf32>
    tpu.vector_store %arg37[%c1_183, %c0_184], %198 {strides = array<i32>} : memref<4x32xf32, #tpu.memory_space<vmem>>, vector<2x16xf32>,
    %c0_185 = arith.constant 0 : index
    %c0_186 = arith.constant 0 : index
    %200 = vector.load %arg37[%c0_185, %c0_186] : memref<4x32xf32, #tpu.memory_space<vmem>>, vector<2x32xf32>
    %c0_187 = arith.constant 0 : index
    %c0_188 = arith.constant 0 : index
    %c0_189 = arith.constant 0 : index
    %201 = vector.load %arg11[%c0_187, %c0_188, %c0_189] : memref<3x32x16xf32, #tpu.memory_space<vmem>>, vector<1x32x16xf32>
    %202 = vector.shape_cast %201 : vector<1x32x16xf32> to vector<32x16xf32>
    %cst_190 = arith.constant dense<0.000000e+00> : vector<2x16xf32>
    %203 = tpu.matmul %200, %202, %cst_190 {dimension_numbers = #tpu.dot_dimension_numbers<[1], [0], [0], [1], [0, 0, 1, 1], [], []>} : vector<2x32xf32>, vector<32x16xf32>, vector<2x16xf32> -> vector<2x16xf32>
    %c1_191 = arith.constant 1 : index
    %c0_192 = arith.constant 0 : index
    %204 = vector.load %arg37[%c1_191, %c0_192] : memref<4x32xf32, #tpu.memory_space<vmem>>, vector<2x32xf32>
    %c1_193 = arith.constant 1 : index
    %c0_194 = arith.constant 0 : index
    %c0_195 = arith.constant 0 : index
    %205 = vector.load %arg11[%c1_193, %c0_194, %c0_195] : memref<3x32x16xf32, #tpu.memory_space<vmem>>, vector<1x32x16xf32>
    %206 = vector.shape_cast %205 : vector<1x32x16xf32> to vector<32x16xf32>
    %cst_196 = arith.constant dense<0.000000e+00> : vector<2x16xf32>
    %207 = tpu.matmul %204, %206, %cst_196 {dimension_numbers = #tpu.dot_dimension_numbers<[1], [0], [0], [1], [0, 0, 1, 1], [], []>} : vector<2x32xf32>, vector<32x16xf32>, vector<2x16xf32> -> vector<2x16xf32>
    %208 = arith.addf %203, %207 : vector<2x16xf32>
    %c2_197 = arith.constant 2 : index
    %c0_198 = arith.constant 0 : index
    %209 = vector.load %arg37[%c2_197, %c0_198] : memref<4x32xf32, #tpu.memory_space<vmem>>, vector<2x32xf32>
    %c2_199 = arith.constant 2 : index
    %c0_200 = arith.constant 0 : index
    %c0_201 = arith.constant 0 : index
    %210 = vector.load %arg11[%c2_199, %c0_200, %c0_201] : memref<3x32x16xf32, #tpu.memory_space<vmem>>, vector<1x32x16xf32>
    %211 = vector.shape_cast %210 : vector<1x32x16xf32> to vector<32x16xf32>
    %cst_202 = arith.constant dense<0.000000e+00> : vector<2x16xf32>
    %212 = tpu.matmul %209, %211, %cst_202 {dimension_numbers = #tpu.dot_dimension_numbers<[1], [0], [0], [1], [0, 0, 1, 1], [], []>} : vector<2x32xf32>, vector<32x16xf32>, vector<2x16xf32> -> vector<2x16xf32>
    %213 = arith.addf %208, %212 : vector<2x16xf32>
    %c0_203 = arith.constant 0 : index
    %c0_204 = arith.constant 0 : index
    %214 = vector.load %arg17[%c0_203, %c0_204] : memref<1x16xf32, #tpu.memory_space<vmem>>, vector<1x16xf32>
    %215 = vector.broadcast %214 : vector<1x16xf32> to vector<2x16xf32>
    %216 = arith.addf %213, %215 : vector<2x16xf32>
    %cst_205 = arith.constant 0.000000e+00 : f32
    %217 = vector.broadcast %cst_205 : f32 to vector<2x16xf32>
    %218 = arith.maximumf %216, %217 : vector<2x16xf32>
    %c0_206 = arith.constant 0 : index
    %c0_207 = arith.constant 0 : index
    %c0_208 = arith.constant 0 : index
    %219 = vector.load %arg33[%c0_206, %c0_207, %c0_208] : memref<1x2x16xf32, #tpu.memory_space<vmem>>, vector<1x2x16xf32>
    %220 = vector.shape_cast %219 : vector<1x2x16xf32> to vector<2x16xf32>
    %221 = vector.shape_cast %218 : vector<2x16xf32> to vector<1x2x16xf32>
    tpu.vector_store %arg33[%c0_206, %c0_207, %c0_208], %221 {strides = array<i32>} : memref<1x2x16xf32, #tpu.memory_space<vmem>>, vector<1x2x16xf32>,
    return
  }
  func.func @transform_0(%arg0: i32) -> i32 {
    %c0_i32 = arith.constant 0 : i32
    %c0_i32_0 = arith.constant 0 : i32
    return %c0_i32 : i32
  }
  func.func @transform_1(%arg0: i32) -> (i32, i32, i32) {
    %c0_i32 = arith.constant 0 : i32
    %c0_i32_0 = arith.constant 0 : i32
    %c0_i32_1 = arith.constant 0 : i32
    return %arg0, %c0_i32, %c0_i32_0 : i32, i32, i32
  }
  func.func @transform_2(%arg0: i32) -> (i32, i32, i32) {
    %c0_i32 = arith.constant 0 : i32
    %c0_i32_0 = arith.constant 0 : i32
    %c0_i32_1 = arith.constant 0 : i32
    return %arg0, %c0_i32, %c0_i32_0 : i32, i32, i32
  }
  func.func @transform_3(%arg0: i32) -> (i32, i32, i32) {
    %c0_i32 = arith.constant 0 : i32
    %c0_i32_0 = arith.constant 0 : i32
    %c0_i32_1 = arith.constant 0 : i32
    return %arg0, %c0_i32, %c0_i32_0 : i32, i32, i32
  }
  func.func @transform_4(%arg0: i32) -> (i32, i32, i32) {
    %c0_i32 = arith.constant 0 : i32
    %c0_i32_0 = arith.constant 0 : i32
    %c0_i32_1 = arith.constant 0 : i32
    return %arg0, %c0_i32, %c0_i32_0 : i32, i32, i32
  }
  func.func @transform_5(%arg0: i32) -> (i32, i32, i32) {
    %c0_i32 = arith.constant 0 : i32
    %c0_i32_0 = arith.constant 0 : i32
    %c0_i32_1 = arith.constant 0 : i32
    %c0_i32_2 = arith.constant 0 : i32
    return %c0_i32, %c0_i32_0, %c0_i32_1 : i32, i32, i32
  }
  func.func @transform_6(%arg0: i32) -> (i32, i32, i32) {
    %c0_i32 = arith.constant 0 : i32
    %c0_i32_0 = arith.constant 0 : i32
    %c0_i32_1 = arith.constant 0 : i32
    %c0_i32_2 = arith.constant 0 : i32
    return %c0_i32, %c0_i32_0, %c0_i32_1 : i32, i32, i32
  }
  func.func @transform_7(%arg0: i32) -> (i32, i32, i32) {
    %c0_i32 = arith.constant 0 : i32
    %c0_i32_0 = arith.constant 0 : i32
    %c0_i32_1 = arith.constant 0 : i32
    %c0_i32_2 = arith.constant 0 : i32
    return %c0_i32, %c0_i32_0, %c0_i32_1 : i32, i32, i32
  }
  func.func @transform_8(%arg0: i32) -> (i32, i32, i32) {
    %c0_i32 = arith.constant 0 : i32
    %c0_i32_0 = arith.constant 0 : i32
    %c0_i32_1 = arith.constant 0 : i32
    %c0_i32_2 = arith.constant 0 : i32
    return %c0_i32, %c0_i32_0, %c0_i32_1 : i32, i32, i32
  }
  func.func @transform_9(%arg0: i32) -> (i32, i32, i32) {
    %c0_i32 = arith.constant 0 : i32
    %c0_i32_0 = arith.constant 0 : i32
    %c0_i32_1 = arith.constant 0 : i32
    %c0_i32_2 = arith.constant 0 : i32
    return %c0_i32, %c0_i32_0, %c0_i32_1 : i32, i32, i32
  }
  func.func @transform_10(%arg0: i32) -> (i32, i32, i32) {
    %c0_i32 = arith.constant 0 : i32
    %c0_i32_0 = arith.constant 0 : i32
    %c0_i32_1 = arith.constant 0 : i32
    %c0_i32_2 = arith.constant 0 : i32
    return %c0_i32, %c0_i32_0, %c0_i32_1 : i32, i32, i32
  }
  func.func @transform_11(%arg0: i32) -> (i32, i32) {
    %c0_i32 = arith.constant 0 : i32
    %c0_i32_0 = arith.constant 0 : i32
    %c0_i32_1 = arith.constant 0 : i32
    return %c0_i32, %c0_i32_0 : i32, i32
  }
  func.func @transform_12(%arg0: i32) -> (i32, i32) {
    %c0_i32 = arith.constant 0 : i32
    %c0_i32_0 = arith.constant 0 : i32
    %c0_i32_1 = arith.constant 0 : i32
    return %c0_i32, %c0_i32_0 : i32, i32
  }
  func.func @transform_13(%arg0: i32) -> (i32, i32) {
    %c0_i32 = arith.constant 0 : i32
    %c0_i32_0 = arith.constant 0 : i32
    %c0_i32_1 = arith.constant 0 : i32
    return %c0_i32, %c0_i32_0 : i32, i32
  }
  func.func @transform_14(%arg0: i32) -> (i32, i32) {
    %c0_i32 = arith.constant 0 : i32
    %c0_i32_0 = arith.constant 0 : i32
    %c0_i32_1 = arith.constant 0 : i32
    return %c0_i32, %c0_i32_0 : i32, i32
  }
  func.func @transform_15(%arg0: i32) -> (i32, i32) {
    %c0_i32 = arith.constant 0 : i32
    %c0_i32_0 = arith.constant 0 : i32
    %c0_i32_1 = arith.constant 0 : i32
    return %c0_i32, %c0_i32_0 : i32, i32
  }
  func.func @transform_16(%arg0: i32) -> (i32, i32) {
    %c0_i32 = arith.constant 0 : i32
    %c0_i32_0 = arith.constant 0 : i32
    %c0_i32_1 = arith.constant 0 : i32
    return %c0_i32, %c0_i32_0 : i32, i32
  }
  func.func @transform_17(%arg0: i32) -> (i32, i32) {
    %c0_i32 = arith.constant 0 : i32
    %c0_i32_0 = arith.constant 0 : i32
    %c0_i32_1 = arith.constant 0 : i32
    return %c0_i32, %c0_i32_0 : i32, i32
  }
  func.func @transform_18(%arg0: i32) -> (i32, i32) {
    %c0_i32 = arith.constant 0 : i32
    %c0_i32_0 = arith.constant 0 : i32
    %c0_i32_1 = arith.constant 0 : i32
    return %c0_i32, %c0_i32_0 : i32, i32
  }
  func.func @transform_19(%arg0: i32) -> (i32, i32) {
    %c0_i32 = arith.constant 0 : i32
    %c0_i32_0 = arith.constant 0 : i32
    %c0_i32_1 = arith.constant 0 : i32
    return %c0_i32, %c0_i32_0 : i32, i32
  }
  func.func @transform_20(%arg0: i32) -> (i32, i32) {
    %c0_i32 = arith.constant 0 : i32
    %c0_i32_0 = arith.constant 0 : i32
    %c0_i32_1 = arith.constant 0 : i32
    return %c0_i32, %c0_i32_0 : i32, i32
  }
  func.func @transform_21(%arg0: i32) -> (i32, i32) {
    %c0_i32 = arith.constant 0 : i32
    %c0_i32_0 = arith.constant 0 : i32
    %c0_i32_1 = arith.constant 0 : i32
    return %c0_i32, %c0_i32_0 : i32, i32
  }
  func.func @transform_22(%arg0: i32) -> (i32, i32) {
    %c0_i32 = arith.constant 0 : i32
    %c0_i32_0 = arith.constant 0 : i32
    %c0_i32_1 = arith.constant 0 : i32
    return %c0_i32, %c0_i32_0 : i32, i32
  }
  func.func @transform_23(%arg0: i32) -> (i32, i32) {
    %c0_i32 = arith.constant 0 : i32
    %c0_i32_0 = arith.constant 0 : i32
    %c0_i32_1 = arith.constant 0 : i32
    return %c0_i32, %c0_i32_0 : i32, i32
  }
  func.func @transform_24(%arg0: i32) -> (i32, i32) {
    %c0_i32 = arith.constant 0 : i32
    %c0_i32_0 = arith.constant 0 : i32
    %c0_i32_1 = arith.constant 0 : i32
    return %c0_i32, %c0_i32_0 : i32, i32
  }
  func.func @transform_25(%arg0: i32) -> (i32, i32) {
    %c0_i32 = arith.constant 0 : i32
    %c0_i32_0 = arith.constant 0 : i32
    %c0_i32_1 = arith.constant 0 : i32
    return %c0_i32, %c0_i32_0 : i32, i32
  }
  func.func @transform_26(%arg0: i32) -> (i32, i32) {
    %c0_i32 = arith.constant 0 : i32
    %c0_i32_0 = arith.constant 0 : i32
    %c0_i32_1 = arith.constant 0 : i32
    return %c0_i32, %c0_i32_0 : i32, i32
  }
  func.func @transform_27(%arg0: i32) -> (i32, i32) {
    %c0_i32 = arith.constant 0 : i32
    %c0_i32_0 = arith.constant 0 : i32
    %c0_i32_1 = arith.constant 0 : i32
    return %c0_i32, %c0_i32_0 : i32, i32
  }
  func.func @transform_28(%arg0: i32) -> (i32, i32) {
    %c0_i32 = arith.constant 0 : i32
    %c0_i32_0 = arith.constant 0 : i32
    %c0_i32_1 = arith.constant 0 : i32
    return %c0_i32, %c0_i32_0 : i32, i32
  }
  func.func @transform_29(%arg0: i32) -> (i32, i32, i32) {
    %c0_i32 = arith.constant 0 : i32
    %c0_i32_0 = arith.constant 0 : i32
    %c0_i32_1 = arith.constant 0 : i32
    return %arg0, %c0_i32, %c0_i32_0 : i32, i32, i32
  }
  func.func @transform_30(%arg0: i32) -> (i32, i32, i32) {
    %c0_i32 = arith.constant 0 : i32
    %c0_i32_0 = arith.constant 0 : i32
    %c0_i32_1 = arith.constant 0 : i32
    return %arg0, %c0_i32, %c0_i32_0 : i32, i32, i32
  }
  func.func @transform_31(%arg0: i32) -> (i32, i32, i32) {
    %c0_i32 = arith.constant 0 : i32
    %c0_i32_0 = arith.constant 0 : i32
    %c0_i32_1 = arith.constant 0 : i32
    return %arg0, %c0_i32, %c0_i32_0 : i32, i32, i32
  }
  func.func @transform_32(%arg0: i32) -> (i32, i32, i32) {
    %c0_i32 = arith.constant 0 : i32
    %c0_i32_0 = arith.constant 0 : i32
    %c0_i32_1 = arith.constant 0 : i32
    return %arg0, %c0_i32, %c0_i32_0 : i32, i32, i32
  }
}

</mosaic_0001>

<llo_original>
// kernel: tile.103
$region0: #{tile.103}
  #allocation0 [shape = 's32[1]{0}', space=sflag, size = 0x4, scoped, tag = 'scoped memory for tile.103']
  %s0 = inlined_call_operand.vmem [shape: f32[8], index: 0, kind: input, shape index: {}]
  %s1 = inlined_call_operand.vmem [shape: f32[4,8], index: 1, kind: output, shape index: {}]
  // Predicated region
  $region2: #{tile.103} parent=0 // pred_check
    _
  $region3: #{tile.103} parent=0 // pred_check_branch
    %3 = sbr.rel (0) target = $region5
  $region4: #{tile.103} parent=0 // pred_region
    _
  $region5: #{tile.103} parent=0 // pred_fallthru
    _
  %v4 = vld [vmem:[%s0] ss:$0 sm:$0xff]
  %5 = vst [vmem:[%s1] sm:$0xf] %v4

// kernel: mul.62
$region0: #{mul.62}
  %s0 = inlined_call_operand.vmem [shape: f32[4,8], index: 0, kind: input, shape index: {}]
  %s1 = inlined_call_operand.vmem [shape: f32[32], index: 1, kind: output, shape index: {}]
  $region1: #{mul.62} parent=0
    #allocation0 [shape = 'u8[4096]{0}', space=vmem, size = 0x1000, scoped, tag = 'scoped mem for output reshape']
    #allocation1 [shape = 'u8[4096]{0}', space=vmem, size = 0x1000, scoped, tag = 'scoped mem for input reshape']
    %s3 = sshllo.u32 0, 4
    %v4 = vld [vmem:[%s0] sm:%s3]
    %5 = vst [vmem:[#allocation1] sm:%s3] %v4
    %v6 = vld [vmem:[#allocation1] sm:$0x1]
    %vm7 = vcmask 64512
    %8 = vst.msk [vmem:[#allocation0] sm:$0x1] %vm7, %v6
    %s9 = scalar_lea.vmem [#allocation1], 3
    %v10 = vld [vmem:[%s9] sm:$0x1]
    %11 = vrot.lane.b32.xlu0 %v10, 24
    %v12 = vpop.permute.xlu0 %11
    %vm13 = vcmask 261312
    %14 = vst.msk [vmem:[#allocation0] sm:$0x1] %vm13, %v12
    %s15 = scalar_lea.vmem [#allocation1], 2
    %v16 = vld [vmem:[%s15] sm:$0x1]
    %17 = vrot.lane.b32.xlu0 %v16, 16
    %v18 = vpop.permute.xlu0 %17
    %vm19 = vcmask 195712
    %20 = vst.msk [vmem:[#allocation0] sm:$0x1] %vm19, %v18
    %s21 = scalar_lea.vmem [#allocation1], 1
    %v22 = vld [vmem:[%s21] sm:$0x1]
    %23 = vrot.lane.b32.xlu0 %v22, 8
    %v24 = vpop.permute.xlu0 %23
    %vm25 = vcmask 130112
    %26 = vst.msk [vmem:[#allocation0] sm:$0x1] %vm25, %v24
    %s28 = sshllo.u32 0, 1
    %v30 = vld [vmem:[#allocation0] sm:%s28]
    %s31 = sshllo.u32 0, 1
    %32 = vst [vmem:[%s1] sm:%s31] %v30

// kernel: tile.93
$region0: #{tile.93}
  #allocation0 [shape = 's32[1]{0}', space=sflag, size = 0x4, scoped, tag = 'scoped memory for tile.93']
  %s0 = inlined_call_operand.vmem [shape: f32[8], index: 0, kind: input, shape index: {}]
  %s1 = inlined_call_operand.vmem [shape: f32[8,8], index: 1, kind: output, shape index: {}]
  // Predicated region
  $region2: #{tile.93} parent=0 // pred_check
    _
  $region3: #{tile.93} parent=0 // pred_check_branch
    %3 = sbr.rel (0) target = $region5
  $region4: #{tile.93} parent=0 // pred_region
    _
  $region5: #{tile.93} parent=0 // pred_fallthru
    _
  %v4 = vld [vmem:[%s0] ss:$0 sm:$0xff]
  %5 = vst [vmem:[%s1] sm:$0xff] %v4

// kernel: mul.57
$region0: #{mul.57}
  %s0 = inlined_call_operand.vmem [shape: f32[8,8], index: 0, kind: input, shape index: {}]
  %s1 = inlined_call_operand.vmem [shape: f32[64], index: 1, kind: output, shape index: {}]
  $region1: #{mul.57} parent=0
    #allocation0 [shape = 'u8[4096]{0}', space=vmem, size = 0x1000, scoped, tag = 'scoped mem for output reshape']
    %v2 = vld [vmem:[%s0] sm:$0x1]
    %vm3 = vcmask 64512
    %4 = vst.msk [vmem:[#allocation0] sm:$0x1] %vm3, %v2
    %s5 = scalar_lea.vmem %s0, 7
    %v6 = vld [vmem:[%s5] sm:$0x1]
    %7 = vrot.lane.b32.xlu0 %v6, 56
    %v8 = vpop.permute.xlu0 %7
    %vm9 = vcmask 523712
    %10 = vst.msk [vmem:[#allocation0] sm:$0x1] %vm9, %v8
    %s11 = scalar_lea.vmem %s0, 6
    %v12 = vld [vmem:[%s11] sm:$0x1]
    %13 = vrot.lane.b32.xlu0 %v12, 48
    %v14 = vpop.permute.xlu0 %13
    %vm15 = vcmask 458112
    %16 = vst.msk [vmem:[#allocation0] sm:$0x1] %vm15, %v14
    %s17 = scalar_lea.vmem %s0, 5
    %v18 = vld [vmem:[%s17] sm:$0x1]
    %19 = vrot.lane.b32.xlu0 %v18, 40
    %v20 = vpop.permute.xlu0 %19
    %vm21 = vcmask 392512
    %22 = vst.msk [vmem:[#allocation0] sm:$0x1] %vm21, %v20
    %s23 = scalar_lea.vmem %s0, 4
    %v24 = vld [vmem:[%s23] sm:$0x1]
    %25 = vrot.lane.b32.xlu0 %v24, 32
    %v26 = vpop.permute.xlu0 %25
    %vm27 = vcmask 326912
    %28 = vst.msk [vmem:[#allocation0] sm:$0x1] %vm27, %v26
    %s29 = scalar_lea.vmem %s0, 3
    %v30 = vld [vmem:[%s29] sm:$0x1]
    %31 = vrot.lane.b32.xlu0 %v30, 24
    %v32 = vpop.permute.xlu0 %31
    %vm33 = vcmask 261312
    %34 = vst.msk [vmem:[#allocation0] sm:$0x1] %vm33, %v32
    %s35 = scalar_lea.vmem %s0, 2
    %v36 = vld [vmem:[%s35] sm:$0x1]
    %37 = vrot.lane.b32.xlu0 %v36, 16
    %v38 = vpop.permute.xlu0 %37
    %vm39 = vcmask 195712
    %40 = vst.msk [vmem:[#allocation0] sm:$0x1] %vm39, %v38
    %s41 = scalar_lea.vmem %s0, 1
    %v42 = vld [vmem:[%s41] sm:$0x1]
    %43 = vrot.lane.b32.xlu0 %v42, 8
    %v44 = vpop.permute.xlu0 %43
    %vm45 = vcmask 130112
    %46 = vst.msk [vmem:[#allocation0] sm:$0x1] %vm45, %v44
    %s48 = sshllo.u32 0, 1
    %v50 = vld [vmem:[#allocation0] sm:%s48]
    %s51 = sshllo.u32 0, 1
    %52 = vst [vmem:[%s1] sm:%s51] %v50

// kernel: tile.83
$region0: #{tile.83}
  #allocation0 [shape = 's32[1]{0}', space=sflag, size = 0x4, scoped, tag = 'scoped memory for tile.83']
  %s0 = inlined_call_operand.vmem [shape: f32[8], index: 0, kind: input, shape index: {}]
  %s1 = inlined_call_operand.vmem [shape: f32[16,8], index: 1, kind: output, shape index: {}]
  // Predicated region
  $region2: #{tile.83} parent=0 // pred_check
    _
  $region3: #{tile.83} parent=0 // pred_check_branch
    %3 = sbr.rel (0) target = $region5
  $region4: #{tile.83} parent=0 // pred_region
    _
  $region5: #{tile.83} parent=0 // pred_fallthru
    _
  %v4 = vld [vmem:[%s0] ss:$0 sm:$0xff]
  %5 = vst [vmem:[%s1] sm:$0xff] %v4
  %s6 = scalar_lea.vmem %s1, 8
  %7 = vst [vmem:[%s6] sm:$0xff] %v4

// kernel: mul.52
$region0: #{mul.52}
  %s0 = inlined_call_operand.vmem [shape: f32[16,8], index: 0, kind: input, shape index: {}]
  %s1 = inlined_call_operand.vmem [shape: f32[128], index: 1, kind: output, shape index: {}]
  $region1: #{mul.52} parent=0
    #allocation0 [shape = 'u8[4096]{0}', space=vmem, size = 0x1000, scoped, tag = 'scoped mem for output reshape']
    %v2 = vld [vmem:[%s0] sm:$0x1]
    %vm3 = vcmask 64512
    %4 = vst.msk [vmem:[#allocation0] sm:$0x1] %vm3, %v2
    %s5 = scalar_lea.vmem %s0, 15
    %v6 = vld [vmem:[%s5] sm:$0x1]
    %7 = vrot.lane.b32.xlu0 %v6, 120
    %v8 = vpop.permute.xlu0 %7
    %vm9 = vcmask 1048512
    %10 = vst.msk [vmem:[#allocation0] sm:$0x1] %vm9, %v8
    %s11 = scalar_lea.vmem %s0, 14
    %v12 = vld [vmem:[%s11] sm:$0x1]
    %13 = vrot.lane.b32.xlu0 %v12, 112
    %v14 = vpop.permute.xlu0 %13
    %vm15 = vcmask 982912
    %16 = vst.msk [vmem:[#allocation0] sm:$0x1] %vm15, %v14
    %s17 = scalar_lea.vmem %s0, 13
    %v18 = vld [vmem:[%s17] sm:$0x1]
    %19 = vrot.lane.b32.xlu0 %v18, 104
    %v20 = vpop.permute.xlu0 %19
    %vm21 = vcmask 917312
    %22 = vst.msk [vmem:[#allocation0] sm:$0x1] %vm21, %v20
    %s23 = scalar_lea.vmem %s0, 12
    %v24 = vld [vmem:[%s23] sm:$0x1]
    %25 = vrot.lane.b32.xlu0 %v24, 96
    %v26 = vpop.permute.xlu0 %25
    %vm27 = vcmask 851712
    %28 = vst.msk [vmem:[#allocation0] sm:$0x1] %vm27, %v26
    %s29 = scalar_lea.vmem %s0, 11
    %v30 = vld [vmem:[%s29] sm:$0x1]
    %31 = vrot.lane.b32.xlu0 %v30, 88
    %v32 = vpop.permute.xlu0 %31
    %vm33 = vcmask 786112
    %34 = vst.msk [vmem:[#allocation0] sm:$0x1] %vm33, %v32
    %s35 = scalar_lea.vmem %s0, 10
    %v36 = vld [vmem:[%s35] sm:$0x1]
    %37 = vrot.lane.b32.xlu0 %v36, 80
    %v38 = vpop.permute.xlu0 %37
    %vm39 = vcmask 720512
    %40 = vst.msk [vmem:[#allocation0] sm:$0x1] %vm39, %v38
    %s41 = scalar_lea.vmem %s0, 9
    %v42 = vld [vmem:[%s41] sm:$0x1]
    %43 = vrot.lane.b32.xlu0 %v42, 72
    %v44 = vpop.permute.xlu0 %43
    %vm45 = vcmask 654912
    %46 = vst.msk [vmem:[#allocation0] sm:$0x1] %vm45, %v44
    %s47 = scalar_lea.vmem %s0, 8
    %v48 = vld [vmem:[%s47] sm:$0x1]
    %49 = vrot.lane.b32.xlu0 %v48, 64
    %v50 = vpop.permute.xlu0 %49
    %vm51 = vcmask 589312
    %52 = vst.msk [vmem:[#allocation0] sm:$0x1] %vm51, %v50
    %s53 = scalar_lea.vmem %s0, 7
    %v54 = vld [vmem:[%s53] sm:$0x1]
    %55 = vrot.lane.b32.xlu0 %v54, 56
    %v56 = vpop.permute.xlu0 %55
    %vm57 = vcmask 523712
    %58 = vst.msk [vmem:[#allocation0] sm:$0x1] %vm57, %v56
    %s59 = scalar_lea.vmem %s0, 6
    %v60 = vld [vmem:[%s59] sm:$0x1]
    %61 = vrot.lane.b32.xlu0 %v60, 48
    %v62 = vpop.permute.xlu0 %61
    %vm63 = vcmask 458112
    %64 = vst.msk [vmem:[#allocation0] sm:$0x1] %vm63, %v62
    %s65 = scalar_lea.vmem %s0, 5
    %v66 = vld [vmem:[%s65] sm:$0x1]
    %67 = vrot.lane.b32.xlu0 %v66, 40
    %v68 = vpop.permute.xlu0 %67
    %vm69 = vcmask 392512
    %70 = vst.msk [vmem:[#allocation0] sm:$0x1] %vm69, %v68
    %s71 = scalar_lea.vmem %s0, 4
    %v72 = vld [vmem:[%s71] sm:$0x1]
    %73 = vrot.lane.b32.xlu0 %v72, 32
    %v74 = vpop.permute.xlu0 %73
    %vm75 = vcmask 326912
    %76 = vst.msk [vmem:[#allocation0] sm:$0x1] %vm75, %v74
    %s77 = scalar_lea.vmem %s0, 3
    %v78 = vld [vmem:[%s77] sm:$0x1]
    %79 = vrot.lane.b32.xlu0 %v78, 24
    %v80 = vpop.permute.xlu0 %79
    %vm81 = vcmask 261312
    %82 = vst.msk [vmem:[#allocation0] sm:$0x1] %vm81, %v80
    %s83 = scalar_lea.vmem %s0, 2
    %v84 = vld [vmem:[%s83] sm:$0x1]
    %85 = vrot.lane.b32.xlu0 %v84, 16
    %v86 = vpop.permute.xlu0 %85
    %vm87 = vcmask 195712
    %88 = vst.msk [vmem:[#allocation0] sm:$0x1] %vm87, %v86
    %s89 = scalar_lea.vmem %s0, 1
    %v90 = vld [vmem:[%s89] sm:$0x1]
    %91 = vrot.lane.b32.xlu0 %v90, 8
    %v92 = vpop.permute.xlu0 %91
    %vm93 = vcmask 130112
    %94 = vst.msk [vmem:[#allocation0] sm:$0x1] %vm93, %v92
    %s96 = sshllo.u32 0, 1
    %v98 = vld [vmem:[#allocation0] sm:%s96]
    %s99 = sshllo.u32 0, 1
    %100 = vst [vmem:[%s1] sm:%s99] %v98

// kernel: tile.113
$region0: #{tile.113}
  #allocation0 [shape = 's32[1]{0}', space=sflag, size = 0x4, scoped, tag = 'scoped memory for tile.113']
  %s0 = inlined_call_operand.vmem [shape: f32[8], index: 0, kind: input, shape index: {}]
  %s1 = inlined_call_operand.vmem [shape: f32[2,8], index: 1, kind: output, shape index: {}]
  // Predicated region
  $region2: #{tile.113} parent=0 // pred_check
    _
  $region3: #{tile.113} parent=0 // pred_check_branch
    %3 = sbr.rel (0) target = $region5
  $region4: #{tile.113} parent=0 // pred_region
    _
  $region5: #{tile.113} parent=0 // pred_fallthru
    _
  %v4 = vld [vmem:[%s0] ss:$0 sm:$0xff]
  %5 = vst [vmem:[%s1] sm:$0x3] %v4

// kernel: mul.67
$region0: #{mul.67}
  %s0 = inlined_call_operand.vmem [shape: f32[2,8], index: 0, kind: input, shape index: {}]
  %s1 = inlined_call_operand.vmem [shape: f32[16], index: 1, kind: output, shape index: {}]
  $region1: #{mul.67} parent=0
    #allocation0 [shape = 'u8[4096]{0}', space=vmem, size = 0x1000, scoped, tag = 'scoped mem for output reshape']
    #allocation1 [shape = 'u8[4096]{0}', space=vmem, size = 0x1000, scoped, tag = 'scoped mem for input reshape']
    %s3 = sshllo.u32 0, 2
    %v4 = vld [vmem:[%s0] sm:%s3]
    %5 = vst [vmem:[#allocation1] sm:%s3] %v4
    %v6 = vld [vmem:[#allocation1] sm:$0x1]
    %vm7 = vcmask 64512
    %8 = vst.msk [vmem:[#allocation0] sm:$0x1] %vm7, %v6
    %s9 = scalar_lea.vmem [#allocation1], 1
    %v10 = vld [vmem:[%s9] sm:$0x1]
    %11 = vrot.lane.b32.xlu0 %v10, 8
    %v12 = vpop.permute.xlu0 %11
    %vm13 = vcmask 130112
    %14 = vst.msk [vmem:[#allocation0] sm:$0x1] %vm13, %v12
    %s16 = sshllo.u32 0, 1
    %v18 = vld [vmem:[#allocation0] sm:%s16]
    %s19 = sshllo.u32 0, 1
    %20 = vst [vmem:[%s1] sm:%s19] %v18

// kernel: tile.69
$region0: #{tile.69}
  %s0 = inlined_call_operand.vmem [shape: f32[4,8], index: 0, kind: input, shape index: {}]
  %s1 = inlined_call_operand.vmem [shape: f32[1,32], index: 1, kind: output, shape index: {}]
  $region1: #{tile.69} parent=0
    #allocation0 [shape = 'u8[4096]{0}', space=vmem, size = 0x1000, scoped, tag = 'scoped mem for output reshape']
    #allocation1 [shape = 'u8[4096]{0}', space=vmem, size = 0x1000, scoped, tag = 'scoped mem for input reshape']
    %s3 = sshllo.u32 0, 4
    %v4 = vld [vmem:[%s0] sm:%s3]
    %5 = vst [vmem:[#allocation1] sm:%s3] %v4
    %v6 = vld [vmem:[#allocation1] sm:$0x1]
    %vm7 = vcmask 64512
    %8 = vst.msk [vmem:[#allocation0] sm:$0x1] %vm7, %v6
    %s9 = scalar_lea.vmem [#allocation1], 3
    %v10 = vld [vmem:[%s9] sm:$0x1]
    %11 = vrot.lane.b32.xlu0 %v10, 24
    %v12 = vpop.permute.xlu0 %11
    %vm13 = vcmask 261312
    %14 = vst.msk [vmem:[#allocation0] sm:$0x1] %vm13, %v12
    %s15 = scalar_lea.vmem [#allocation1], 2
    %v16 = vld [vmem:[%s15] sm:$0x1]
    %17 = vrot.lane.b32.xlu0 %v16, 16
    %v18 = vpop.permute.xlu0 %17
    %vm19 = vcmask 195712
    %20 = vst.msk [vmem:[#allocation0] sm:$0x1] %vm19, %v18
    %s21 = scalar_lea.vmem [#allocation1], 1
    %v22 = vld [vmem:[%s21] sm:$0x1]
    %23 = vrot.lane.b32.xlu0 %v22, 8
    %v24 = vpop.permute.xlu0 %23
    %vm25 = vcmask 130112
    %26 = vst.msk [vmem:[#allocation0] sm:$0x1] %vm25, %v24
    %s28 = sshllo.u32 0, 1
    %v30 = vld [vmem:[#allocation0] sm:%s28]
    %s31 = sshllo.u32 0, 1
    %32 = vst [vmem:[%s1] sm:%s31] %v30

// kernel: tile.79
$region0: #{tile.79}
  %s0 = inlined_call_operand.vmem [shape: f32[8,8], index: 0, kind: input, shape index: {}]
  %s1 = inlined_call_operand.vmem [shape: f32[1,64], index: 1, kind: output, shape index: {}]
  $region1: #{tile.79} parent=0
    #allocation0 [shape = 'u8[4096]{0}', space=vmem, size = 0x1000, scoped, tag = 'scoped mem for output reshape']
    %v2 = vld [vmem:[%s0] sm:$0x1]
    %vm3 = vcmask 64512
    %4 = vst.msk [vmem:[#allocation0] sm:$0x1] %vm3, %v2
    %s5 = scalar_lea.vmem %s0, 7
    %v6 = vld [vmem:[%s5] sm:$0x1]
    %7 = vrot.lane.b32.xlu0 %v6, 56
    %v8 = vpop.permute.xlu0 %7
    %vm9 = vcmask 523712
    %10 = vst.msk [vmem:[#allocation0] sm:$0x1] %vm9, %v8
    %s11 = scalar_lea.vmem %s0, 6
    %v12 = vld [vmem:[%s11] sm:$0x1]
    %13 = vrot.lane.b32.xlu0 %v12, 48
    %v14 = vpop.permute.xlu0 %13
    %vm15 = vcmask 458112
    %16 = vst.msk [vmem:[#allocation0] sm:$0x1] %vm15, %v14
    %s17 = scalar_lea.vmem %s0, 5
    %v18 = vld [vmem:[%s17] sm:$0x1]
    %19 = vrot.lane.b32.xlu0 %v18, 40
    %v20 = vpop.permute.xlu0 %19
    %vm21 = vcmask 392512
    %22 = vst.msk [vmem:[#allocation0] sm:$0x1] %vm21, %v20
    %s23 = scalar_lea.vmem %s0, 4
    %v24 = vld [vmem:[%s23] sm:$0x1]
    %25 = vrot.lane.b32.xlu0 %v24, 32
    %v26 = vpop.permute.xlu0 %25
    %vm27 = vcmask 326912
    %28 = vst.msk [vmem:[#allocation0] sm:$0x1] %vm27, %v26
    %s29 = scalar_lea.vmem %s0, 3
    %v30 = vld [vmem:[%s29] sm:$0x1]
    %31 = vrot.lane.b32.xlu0 %v30, 24
    %v32 = vpop.permute.xlu0 %31
    %vm33 = vcmask 261312
    %34 = vst.msk [vmem:[#allocation0] sm:$0x1] %vm33, %v32
    %s35 = scalar_lea.vmem %s0, 2
    %v36 = vld [vmem:[%s35] sm:$0x1]
    %37 = vrot.lane.b32.xlu0 %v36, 16
    %v38 = vpop.permute.xlu0 %37
    %vm39 = vcmask 195712
    %40 = vst.msk [vmem:[#allocation0] sm:$0x1] %vm39, %v38
    %s41 = scalar_lea.vmem %s0, 1
    %v42 = vld [vmem:[%s41] sm:$0x1]
    %43 = vrot.lane.b32.xlu0 %v42, 8
    %v44 = vpop.permute.xlu0 %43
    %vm45 = vcmask 130112
    %46 = vst.msk [vmem:[#allocation0] sm:$0x1] %vm45, %v44
    %s48 = sshllo.u32 0, 1
    %v50 = vld [vmem:[#allocation0] sm:%s48]
    %s51 = sshllo.u32 0, 1
    %52 = vst [vmem:[%s1] sm:%s51] %v50

// kernel: tile.89
$region0: #{tile.89}
  %s0 = inlined_call_operand.vmem [shape: f32[16,8], index: 0, kind: input, shape index: {}]
  %s1 = inlined_call_operand.vmem [shape: f32[1,128], index: 1, kind: output, shape index: {}]
  $region1: #{tile.89} parent=0
    #allocation0 [shape = 'u8[4096]{0}', space=vmem, size = 0x1000, scoped, tag = 'scoped mem for output reshape']
    %v2 = vld [vmem:[%s0] sm:$0x1]
    %vm3 = vcmask 64512
    %4 = vst.msk [vmem:[#allocation0] sm:$0x1] %vm3, %v2
    %s5 = scalar_lea.vmem %s0, 15
    %v6 = vld [vmem:[%s5] sm:$0x1]
    %7 = vrot.lane.b32.xlu0 %v6, 120
    %v8 = vpop.permute.xlu0 %7
    %vm9 = vcmask 1048512
    %10 = vst.msk [vmem:[#allocation0] sm:$0x1] %vm9, %v8
    %s11 = scalar_lea.vmem %s0, 14
    %v12 = vld [vmem:[%s11] sm:$0x1]
    %13 = vrot.lane.b32.xlu0 %v12, 112
    %v14 = vpop.permute.xlu0 %13
    %vm15 = vcmask 982912
    %16 = vst.msk [vmem:[#allocation0] sm:$0x1] %vm15, %v14
    %s17 = scalar_lea.vmem %s0, 13
    %v18 = vld [vmem:[%s17] sm:$0x1]
    %19 = vrot.lane.b32.xlu0 %v18, 104
    %v20 = vpop.permute.xlu0 %19
    %vm21 = vcmask 917312
    %22 = vst.msk [vmem:[#allocation0] sm:$0x1] %vm21, %v20
    %s23 = scalar_lea.vmem %s0, 12
    %v24 = vld [vmem:[%s23] sm:$0x1]
    %25 = vrot.lane.b32.xlu0 %v24, 96
    %v26 = vpop.permute.xlu0 %25
    %vm27 = vcmask 851712
    %28 = vst.msk [vmem:[#allocation0] sm:$0x1] %vm27, %v26
    %s29 = scalar_lea.vmem %s0, 11
    %v30 = vld [vmem:[%s29] sm:$0x1]
    %31 = vrot.lane.b32.xlu0 %v30, 88
    %v32 = vpop.permute.xlu0 %31
    %vm33 = vcmask 786112
    %34 = vst.msk [vmem:[#allocation0] sm:$0x1] %vm33, %v32
    %s35 = scalar_lea.vmem %s0, 10
    %v36 = vld [vmem:[%s35] sm:$0x1]
    %37 = vrot.lane.b32.xlu0 %v36, 80
    %v38 = vpop.permute.xlu0 %37
    %vm39 = vcmask 720512
    %40 = vst.msk [vmem:[#allocation0] sm:$0x1] %vm39, %v38
    %s41 = scalar_lea.vmem %s0, 9
    %v42 = vld [vmem:[%s41] sm:$0x1]
    %43 = vrot.lane.b32.xlu0 %v42, 72
    %v44 = vpop.permute.xlu0 %43
    %vm45 = vcmask 654912
    %46 = vst.msk [vmem:[#allocation0] sm:$0x1] %vm45, %v44
    %s47 = scalar_lea.vmem %s0, 8
    %v48 = vld [vmem:[%s47] sm:$0x1]
    %49 = vrot.lane.b32.xlu0 %v48, 64
    %v50 = vpop.permute.xlu0 %49
    %vm51 = vcmask 589312
    %52 = vst.msk [vmem:[#allocation0] sm:$0x1] %vm51, %v50
    %s53 = scalar_lea.vmem %s0, 7
    %v54 = vld [vmem:[%s53] sm:$0x1]
    %55 = vrot.lane.b32.xlu0 %v54, 56
    %v56 = vpop.permute.xlu0 %55
    %vm57 = vcmask 523712
    %58 = vst.msk [vmem:[#allocation0] sm:$0x1] %vm57, %v56
    %s59 = scalar_lea.vmem %s0, 6
    %v60 = vld [vmem:[%s59] sm:$0x1]
    %61 = vrot.lane.b32.xlu0 %v60, 48
    %v62 = vpop.permute.xlu0 %61
    %vm63 = vcmask 458112
    %64 = vst.msk [vmem:[#allocation0] sm:$0x1] %vm63, %v62
    %s65 = scalar_lea.vmem %s0, 5
    %v66 = vld [vmem:[%s65] sm:$0x1]
    %67 = vrot.lane.b32.xlu0 %v66, 40
    %v68 = vpop.permute.xlu0 %67
    %vm69 = vcmask 392512
    %70 = vst.msk [vmem:[#allocation0] sm:$0x1] %vm69, %v68
    %s71 = scalar_lea.vmem %s0, 4
    %v72 = vld [vmem:[%s71] sm:$0x1]
    %73 = vrot.lane.b32.xlu0 %v72, 32
    %v74 = vpop.permute.xlu0 %73
    %vm75 = vcmask 326912
    %76 = vst.msk [vmem:[#allocation0] sm:$0x1] %vm75, %v74
    %s77 = scalar_lea.vmem %s0, 3
    %v78 = vld [vmem:[%s77] sm:$0x1]
    %79 = vrot.lane.b32.xlu0 %v78, 24
    %v80 = vpop.permute.xlu0 %79
    %vm81 = vcmask 261312
    %82 = vst.msk [vmem:[#allocation0] sm:$0x1] %vm81, %v80
    %s83 = scalar_lea.vmem %s0, 2
    %v84 = vld [vmem:[%s83] sm:$0x1]
    %85 = vrot.lane.b32.xlu0 %v84, 16
    %v86 = vpop.permute.xlu0 %85
    %vm87 = vcmask 195712
    %88 = vst.msk [vmem:[#allocation0] sm:$0x1] %vm87, %v86
    %s89 = scalar_lea.vmem %s0, 1
    %v90 = vld [vmem:[%s89] sm:$0x1]
    %91 = vrot.lane.b32.xlu0 %v90, 8
    %v92 = vpop.permute.xlu0 %91
    %vm93 = vcmask 130112
    %94 = vst.msk [vmem:[#allocation0] sm:$0x1] %vm93, %v92
    %s96 = sshllo.u32 0, 1
    %v98 = vld [vmem:[#allocation0] sm:%s96]
    %s99 = sshllo.u32 0, 1
    %100 = vst [vmem:[%s1] sm:%s99] %v98

// kernel: tile.119
$region0: #{tile.119}
  %s0 = inlined_call_operand.vmem [shape: f32[2,8], index: 0, kind: input, shape index: {}]
  %s1 = inlined_call_operand.vmem [shape: f32[1,16], index: 1, kind: output, shape index: {}]
  $region1: #{tile.119} parent=0
    #allocation0 [shape = 'u8[4096]{0}', space=vmem, size = 0x1000, scoped, tag = 'scoped mem for output reshape']
    #allocation1 [shape = 'u8[4096]{0}', space=vmem, size = 0x1000, scoped, tag = 'scoped mem for input reshape']
    %s3 = sshllo.u32 0, 2
    %v4 = vld [vmem:[%s0] sm:%s3]
    %5 = vst [vmem:[#allocation1] sm:%s3] %v4
    %v6 = vld [vmem:[#allocation1] sm:$0x1]
    %vm7 = vcmask 64512
    %8 = vst.msk [vmem:[#allocation0] sm:$0x1] %vm7, %v6
    %s9 = scalar_lea.vmem [#allocation1], 1
    %v10 = vld [vmem:[%s9] sm:$0x1]
    %11 = vrot.lane.b32.xlu0 %v10, 8
    %v12 = vpop.permute.xlu0 %11
    %vm13 = vcmask 130112
    %14 = vst.msk [vmem:[#allocation0] sm:$0x1] %vm13, %v12
    %s16 = sshllo.u32 0, 1
    %v18 = vld [vmem:[#allocation0] sm:%s16]
    %s19 = sshllo.u32 0, 1
    %20 = vst [vmem:[%s1] sm:%s19] %v18

// kernel: bifpn_pallas.1
$region0: #{bifpn_pallas.1}
  #allocation0 [shape = 'u32[]', space=smem, size = 0x4, offset = 0x4, fixed_abs, tag = 'smem constant byte address 0x4 - core index']
  #allocation1 [shape = 'u32[144,128]{1,0:T(1,128)}', space=vmem, size = 0x12000, scoped, tag = 'internal scratch']
  #allocation2 [shape = 'f32[18,144]{1,0:T(8,128)}', space=vmem, size = 0x6000, scoped, tag = 'scratch operand']
  #allocation3 [shape = 'f32[10,80]{1,0:T(8,128)}', space=vmem, size = 0x2000, scoped, tag = 'scratch operand']
  #allocation4 [shape = 'f32[6,48]{1,0:T(8,128)}', space=vmem, size = 0x1000, scoped, tag = 'scratch operand']
  #allocation5 [shape = 'f32[4,32]{1,0:T(4,128)}', space=vmem, size = 0x800, scoped, tag = 'scratch operand']
  %s0 = inlined_call_operand.smem [shape: u32[33], index: -1, kind: input, shape index: {}]
  %s1 = sld [smem:[%s0]]
  %s2 = scalar_lea.smem %s0, 1
  %s3 = sld [smem:[%s2]]
  %s4 = scalar_lea.smem %s0, 2
  %s5 = sld [smem:[%s4]]
  %s6 = scalar_lea.smem %s0, 3
  %s7 = sld [smem:[%s6]]
  %s8 = scalar_lea.smem %s0, 4
  %s9 = sld [smem:[%s8]]
  %s10 = scalar_lea.smem %s0, 5
  %s11 = sld [smem:[%s10]]
  %s12 = scalar_lea.smem %s0, 6
  %s13 = sld [smem:[%s12]]
  %s14 = scalar_lea.smem %s0, 7
  %s15 = sld [smem:[%s14]]
  %s16 = scalar_lea.smem %s0, 8
  %s17 = sld [smem:[%s16]]
  %s18 = scalar_lea.smem %s0, 9
  %s19 = sld [smem:[%s18]]
  %s20 = scalar_lea.smem %s0, 10
  %s21 = sld [smem:[%s20]]
  %s22 = scalar_lea.smem %s0, 11
  %s23 = sld [smem:[%s22]]
  %s24 = scalar_lea.smem %s0, 12
  %s25 = sld [smem:[%s24]]
  %s26 = scalar_lea.smem %s0, 13
  %s27 = sld [smem:[%s26]]
  %s28 = scalar_lea.smem %s0, 14
  %s29 = sld [smem:[%s28]]
  %s30 = scalar_lea.smem %s0, 15
  %s31 = sld [smem:[%s30]]
  %s32 = scalar_lea.smem %s0, 16
  %s33 = sld [smem:[%s32]]
  %s34 = scalar_lea.smem %s0, 17
  %s35 = sld [smem:[%s34]]
  %s36 = scalar_lea.smem %s0, 18
  %s37 = sld [smem:[%s36]]
  %s38 = scalar_lea.smem %s0, 19
  %s39 = sld [smem:[%s38]]
  %s40 = scalar_lea.smem %s0, 20
  %s41 = sld [smem:[%s40]]
  %s42 = scalar_lea.smem %s0, 21
  %s43 = sld [smem:[%s42]]
  %s44 = scalar_lea.smem %s0, 22
  %s45 = sld [smem:[%s44]]
  %s46 = scalar_lea.smem %s0, 23
  %s47 = sld [smem:[%s46]]
  %s48 = scalar_lea.smem %s0, 24
  %s49 = sld [smem:[%s48]]
  %s50 = scalar_lea.smem %s0, 25
  %s51 = sld [smem:[%s50]]
  %s52 = scalar_lea.smem %s0, 26
  %s53 = sld [smem:[%s52]]
  %s54 = scalar_lea.smem %s0, 27
  %s55 = sld [smem:[%s54]]
  %s56 = scalar_lea.smem %s0, 28
  %s57 = sld [smem:[%s56]]
  %s58 = scalar_lea.smem %s0, 29
  %s59 = sld [smem:[%s58]]
  %s60 = scalar_lea.smem %s0, 30
  %s61 = sld [smem:[%s60]]
  %s62 = scalar_lea.smem %s0, 31
  %s63 = sld [smem:[%s62]]
  %s64 = scalar_lea.smem %s0, 32
  %s65 = sld [smem:[%s64]]
  %66 = xla_tuple %s59, %s61, %s63, %s65
  %s67 = sld [smem:[#allocation0]]
  $region177: #{bifpn_pallas.1} parent=0
    _
  %s69 = ssub.s32 1, %s67
  %s70 = scalar_select 0, %s69, %s67
  $region1: #{bifpn_pallas.1} parent=0
    #allocation6 [shape = 'u8[512]{0}', space=smem, size = 0x200, scoped, tag = 'input window, operand 0, single buffered']
    #allocation7 [shape = 's32[2]{0}', space=sflag, size = 0x8, scoped, tag = 'scoped memory for bifpn_pallas.1']
    %71 = vsyncpa [#allocation7], 0
    loop: start=0, step=1, limit=4
    $region2: #{bifpn_pallas.1} parent=1 // loop_pre_header
      _
    $region3: #{bifpn_pallas.1} parent=1 // loop_header
      %s73 = sphi 0, %s77
      %p74 = scmp.ge.s32.totalorder %s73, 4
      %s81 = sphi 0, %s81
      %s83 = sphi 0, %s81
      %s84 = sphi 0, %s83
      %s98 = sphi 0, %s84
      %s104 = sphi 0, %s106
      %s107 = sphi 0, %s104
      %s108 = sphi 0, %s107
      %s124 = sphi 0, %s108
      %s130 = sphi 0, %s132
      %s133 = sphi 0, %s130
      %s134 = sphi 0, %s133
      %s150 = sphi 0, %s134
      %s156 = sphi 0, %s158
      %s159 = sphi 0, %s156
      %s160 = sphi 0, %s159
      %s176 = sphi 0, %s160
      %s182 = sphi 0, %s184
      %s185 = sphi 0, %s182
      %s186 = sphi 0, %s185
      %s202 = sphi 0, %s186
      %s206 = sphi 0, %s206
      %s208 = sphi 0, %s206
      %s209 = sphi 0, %s208
      %s223 = sphi 0, %s209
      %s227 = sphi 0, %s227
      %s229 = sphi 0, %s227
      %s230 = sphi 0, %s229
      %s244 = sphi 0, %s230
      %s248 = sphi 0, %s248
      %s250 = sphi 0, %s248
      %s251 = sphi 0, %s250
      %s265 = sphi 0, %s251
      %s269 = sphi 0, %s269
      %s271 = sphi 0, %s269
      %s272 = sphi 0, %s271
      %s286 = sphi 0, %s272
      %s290 = sphi 0, %s290
      %s292 = sphi 0, %s290
      %s293 = sphi 0, %s292
      %s307 = sphi 0, %s293
      %s311 = sphi 0, %s311
      %s313 = sphi 0, %s311
      %s314 = sphi 0, %s313
      %s328 = sphi 0, %s314
      %s332 = sphi 0, %s332
      %s334 = sphi 0, %s332
      %s335 = sphi 0, %s334
      %s349 = sphi 0, %s335
      %s353 = sphi 0, %s353
      %s355 = sphi 0, %s353
      %s356 = sphi 0, %s355
      %s370 = sphi 0, %s356
      %s374 = sphi 0, %s374
      %s376 = sphi 0, %s374
      %s377 = sphi 0, %s376
      %s391 = sphi 0, %s377
      %s395 = sphi 0, %s395
      %s397 = sphi 0, %s395
      %s398 = sphi 0, %s397
      %s412 = sphi 0, %s398
      %s416 = sphi 0, %s416
      %s418 = sphi 0, %s416
      %s419 = sphi 0, %s418
      %s433 = sphi 0, %s419
      %s437 = sphi 0, %s437
      %s439 = sphi 0, %s437
      %s440 = sphi 0, %s439
      %s454 = sphi 0, %s440
      %s458 = sphi 0, %s458
      %s460 = sphi 0, %s458
      %s461 = sphi 0, %s460
      %s475 = sphi 0, %s461
      %s479 = sphi 0, %s479
      %s481 = sphi 0, %s479
      %s482 = sphi 0, %s481
      %s496 = sphi 0, %s482
      %s500 = sphi 0, %s500
      %s502 = sphi 0, %s500
      %s503 = sphi 0, %s502
      %s517 = sphi 0, %s503
      %s521 = sphi 0, %s521
      %s523 = sphi 0, %s521
      %s524 = sphi 0, %s523
      %s538 = sphi 0, %s524
      %s542 = sphi 0, %s542
      %s544 = sphi 0, %s542
      %s545 = sphi 0, %s544
      %s559 = sphi 0, %s545
      %s563 = sphi 0, %s563
      %s565 = sphi 0, %s563
      %s566 = sphi 0, %s565
      %s580 = sphi 0, %s566
      %s584 = sphi 0, %s584
      %s586 = sphi 0, %s584
      %s587 = sphi 0, %s586
      %s601 = sphi 0, %s587
      %s605 = sphi 0, %s605
      %s607 = sphi 0, %s605
      %s608 = sphi 0, %s607
      %s622 = sphi 0, %s608
      %s626 = sphi 0, %s626
      %s628 = sphi 0, %s626
      %s629 = sphi 0, %s628
      %s643 = sphi 0, %s629
      %s647 = sphi 0, %s647
      %s649 = sphi 0, %s647
      %s650 = sphi 0, %s649
      %s664 = sphi 0, %s650
      %s668 = sphi 0, %s668
      %s670 = sphi 0, %s668
      %s671 = sphi 0, %s670
      %s685 = sphi 0, %s671
      %s689 = sphi 0, %s689
      %s691 = sphi 0, %s689
      %s692 = sphi 0, %s691
      %s706 = sphi 0, %s692
      %s712 = sphi 0, %s714
      %s715 = sphi 0, %s712
      %s716 = sphi 0, %s715
      %s732 = sphi 0, %s716
      %s738 = sphi 0, %s740
      %s741 = sphi 0, %s738
      %s742 = sphi 0, %s741
      %s758 = sphi 0, %s742
      %s764 = sphi 0, %s766
      %s767 = sphi 0, %s764
      %s768 = sphi 0, %s767
      %s784 = sphi 0, %s768
      %s790 = sphi 0, %s792
      %s793 = sphi 0, %s790
      %s794 = sphi 0, %s793
      %s810 = sphi 0, %s794
    $region4: #{bifpn_pallas.1} parent=1 // loop_header_branch
      %76 = sbr.rel (%p74) target = $region8
    $region5: #{bifpn_pallas.1} parent=1 // loop_body
      %s78 = ssub.s32 %s73, 1
      %s79 = ssub.s32 %s73, 2
      %s80 = sadd.s32 %s73, 1
      %s82 = sadd.s32 %s81, 1
      %p85 = scmp.eq.s32.totalorder %s73, 1
      %p86 = scmp.ne.s32.totalorder %s81, %s83
      %p87 = scmp.eq.s32.totalorder %s73, 0
      %p88 = por %p86, %p87
      %p89 = scmp.ne.s32.totalorder %s81, %s83
      %p90 = scmp.eq.s32.totalorder %s78, 1
      %p91 = por %p89, %p90
      %p92 = scmp.ne.s32.totalorder %s83, %s84
      %p93 = scmp.eq.s32.totalorder %s78, 0
      %p94 = por %p92, %p93
      %p95 = scmp.ne.s32.totalorder %s83, %s84
      %p96 = scmp.eq.s32.totalorder %s79, 1
      %p97 = por %p95, %p96
      %p99 = scmp.ne.s32.totalorder %s84, %s98
      %p100 = scmp.eq.s32.totalorder %s79, 0
      %p101 = por %p99, %p100
      %s102 = ssub.s32 %s73, %s80
      %p103 = scmp.eq.s32.totalorder %s102, 0
      %s105 = sadd.s32 %s104, 1
      %s106 = scalar_select %p103, %s104, %s105
      %p109 = pneg %p103
      %p110 = scmp.eq.s32.totalorder %s73, 1
      %p111 = por %p109, %p110
      %p112 = scmp.ne.s32.totalorder %s104, %s107
      %p113 = scmp.eq.s32.totalorder %s73, 0
      %p114 = por %p112, %p113
      %p115 = scmp.ne.s32.totalorder %s104, %s107
      %p116 = scmp.eq.s32.totalorder %s78, 1
      %p117 = por %p115, %p116
      %p118 = scmp.ne.s32.totalorder %s107, %s108
      %p119 = scmp.eq.s32.totalorder %s78, 0
      %p120 = por %p118, %p119
      %p121 = scmp.ne.s32.totalorder %s107, %s108
      %p122 = scmp.eq.s32.totalorder %s79, 1
      %p123 = por %p121, %p122
      %p125 = scmp.ne.s32.totalorder %s108, %s124
      %p126 = scmp.eq.s32.totalorder %s79, 0
      %p127 = por %p125, %p126
      %s128 = ssub.s32 %s73, %s80
      %p129 = scmp.eq.s32.totalorder %s128, 0
      %s131 = sadd.s32 %s130, 1
      %s132 = scalar_select %p129, %s130, %s131
      %p135 = pneg %p129
      %p136 = scmp.eq.s32.totalorder %s73, 1
      %p137 = por %p135, %p136
      %p138 = scmp.ne.s32.totalorder %s130, %s133
      %p139 = scmp.eq.s32.totalorder %s73, 0
      %p140 = por %p138, %p139
      %p141 = scmp.ne.s32.totalorder %s130, %s133
      %p142 = scmp.eq.s32.totalorder %s78, 1
      %p143 = por %p141, %p142
      %p144 = scmp.ne.s32.totalorder %s133, %s134
      %p145 = scmp.eq.s32.totalorder %s78, 0
      %p146 = por %p144, %p145
      %p147 = scmp.ne.s32.totalorder %s133, %s134
      %p148 = scmp.eq.s32.totalorder %s79, 1
      %p149 = por %p147, %p148
      %p151 = scmp.ne.s32.totalorder %s134, %s150
      %p152 = scmp.eq.s32.totalorder %s79, 0
      %p153 = por %p151, %p152
      %s154 = ssub.s32 %s73, %s80
      %p155 = scmp.eq.s32.totalorder %s154, 0
      %s157 = sadd.s32 %s156, 1
      %s158 = scalar_select %p155, %s156, %s157
      %p161 = pneg %p155
      %p162 = scmp.eq.s32.totalorder %s73, 1
      %p163 = por %p161, %p162
      %p164 = scmp.ne.s32.totalorder %s156, %s159
      %p165 = scmp.eq.s32.totalorder %s73, 0
      %p166 = por %p164, %p165
      %p167 = scmp.ne.s32.totalorder %s156, %s159
      %p168 = scmp.eq.s32.totalorder %s78, 1
      %p169 = por %p167, %p168
      %p170 = scmp.ne.s32.totalorder %s159, %s160
      %p171 = scmp.eq.s32.totalorder %s78, 0
      %p172 = por %p170, %p171
      %p173 = scmp.ne.s32.totalorder %s159, %s160
      %p174 = scmp.eq.s32.totalorder %s79, 1
      %p175 = por %p173, %p174
      %p177 = scmp.ne.s32.totalorder %s160, %s176
      %p178 = scmp.eq.s32.totalorder %s79, 0
      %p179 = por %p177, %p178
      %s180 = ssub.s32 %s73, %s80
      %p181 = scmp.eq.s32.totalorder %s180, 0
      %s183 = sadd.s32 %s182, 1
      %s184 = scalar_select %p181, %s182, %s183
      %p187 = pneg %p181
      %p188 = scmp.eq.s32.totalorder %s73, 1
      %p189 = por %p187, %p188
      %p190 = scmp.ne.s32.totalorder %s182, %s185
      %p191 = scmp.eq.s32.totalorder %s73, 0
      %p192 = por %p190, %p191
      %p193 = scmp.ne.s32.totalorder %s182, %s185
      %p194 = scmp.eq.s32.totalorder %s78, 1
      %p195 = por %p193, %p194
      %p196 = scmp.ne.s32.totalorder %s185, %s186
      %p197 = scmp.eq.s32.totalorder %s78, 0
      %p198 = por %p196, %p197
      %p199 = scmp.ne.s32.totalorder %s185, %s186
      %p200 = scmp.eq.s32.totalorder %s79, 1
      %p201 = por %p199, %p200
      %p203 = scmp.ne.s32.totalorder %s186, %s202
      %p204 = scmp.eq.s32.totalorder %s79, 0
      %p205 = por %p203, %p204
      %s207 = sadd.s32 %s206, 1
      %p210 = scmp.eq.s32.totalorder %s73, 1
      %p211 = scmp.ne.s32.totalorder %s206, %s208
      %p212 = scmp.eq.s32.totalorder %s73, 0
      %p213 = por %p211, %p212
      %p214 = scmp.ne.s32.totalorder %s206, %s208
      %p215 = scmp.eq.s32.totalorder %s78, 1
      %p216 = por %p214, %p215
      %p217 = scmp.ne.s32.totalorder %s208, %s209
      %p218 = scmp.eq.s32.totalorder %s78, 0
      %p219 = por %p217, %p218
      %p220 = scmp.ne.s32.totalorder %s208, %s209
      %p221 = scmp.eq.s32.totalorder %s79, 1
      %p222 = por %p220, %p221
      %p224 = scmp.ne.s32.totalorder %s209, %s223
      %p225 = scmp.eq.s32.totalorder %s79, 0
      %p226 = por %p224, %p225
      %s228 = sadd.s32 %s227, 1
      %p231 = scmp.eq.s32.totalorder %s73, 1
      %p232 = scmp.ne.s32.totalorder %s227, %s229
      %p233 = scmp.eq.s32.totalorder %s73, 0
      %p234 = por %p232, %p233
      %p235 = scmp.ne.s32.totalorder %s227, %s229
      %p236 = scmp.eq.s32.totalorder %s78, 1
      %p237 = por %p235, %p236
      %p238 = scmp.ne.s32.totalorder %s229, %s230
      %p239 = scmp.eq.s32.totalorder %s78, 0
      %p240 = por %p238, %p239
      %p241 = scmp.ne.s32.totalorder %s229, %s230
      %p242 = scmp.eq.s32.totalorder %s79, 1
      %p243 = por %p241, %p242
      %p245 = scmp.ne.s32.totalorder %s230, %s244
      %p246 = scmp.eq.s32.totalorder %s79, 0
      %p247 = por %p245, %p246
      %s249 = sadd.s32 %s248, 1
      %p252 = scmp.eq.s32.totalorder %s73, 1
      %p253 = scmp.ne.s32.totalorder %s248, %s250
      %p254 = scmp.eq.s32.totalorder %s73, 0
      %p255 = por %p253, %p254
      %p256 = scmp.ne.s32.totalorder %s248, %s250
      %p257 = scmp.eq.s32.totalorder %s78, 1
      %p258 = por %p256, %p257
      %p259 = scmp.ne.s32.totalorder %s250, %s251
      %p260 = scmp.eq.s32.totalorder %s78, 0
      %p261 = por %p259, %p260
      %p262 = scmp.ne.s32.totalorder %s250, %s251
      %p263 = scmp.eq.s32.totalorder %s79, 1
      %p264 = por %p262, %p263
      %p266 = scmp.ne.s32.totalorder %s251, %s265
      %p267 = scmp.eq.s32.totalorder %s79, 0
      %p268 = por %p266, %p267
      %s270 = sadd.s32 %s269, 1
      %p273 = scmp.eq.s32.totalorder %s73, 1
      %p274 = scmp.ne.s32.totalorder %s269, %s271
      %p275 = scmp.eq.s32.totalorder %s73, 0
      %p276 = por %p274, %p275
      %p277 = scmp.ne.s32.totalorder %s269, %s271
      %p278 = scmp.eq.s32.totalorder %s78, 1
      %p279 = por %p277, %p278
      %p280 = scmp.ne.s32.totalorder %s271, %s272
      %p281 = scmp.eq.s32.totalorder %s78, 0
      %p282 = por %p280, %p281
      %p283 = scmp.ne.s32.totalorder %s271, %s272
      %p284 = scmp.eq.s32.totalorder %s79, 1
      %p285 = por %p283, %p284
      %p287 = scmp.ne.s32.totalorder %s272, %s286
      %p288 = scmp.eq.s32.totalorder %s79, 0
      %p289 = por %p287, %p288
      %s291 = sadd.s32 %s290, 1
      %p294 = scmp.eq.s32.totalorder %s73, 1
      %p295 = scmp.ne.s32.totalorder %s290, %s292
      %p296 = scmp.eq.s32.totalorder %s73, 0
      %p297 = por %p295, %p296
      %p298 = scmp.ne.s32.totalorder %s290, %s292
      %p299 = scmp.eq.s32.totalorder %s78, 1
      %p300 = por %p298, %p299
      %p301 = scmp.ne.s32.totalorder %s292, %s293
      %p302 = scmp.eq.s32.totalorder %s78, 0
      %p303 = por %p301, %p302
      %p304 = scmp.ne.s32.totalorder %s292, %s293
      %p305 = scmp.eq.s32.totalorder %s79, 1
      %p306 = por %p304, %p305
      %p308 = scmp.ne.s32.totalorder %s293, %s307
      %p309 = scmp.eq.s32.totalorder %s79, 0
      %p310 = por %p308, %p309
      %s312 = sadd.s32 %s311, 1
      %p315 = scmp.eq.s32.totalorder %s73, 1
      %p316 = scmp.ne.s32.totalorder %s311, %s313
      %p317 = scmp.eq.s32.totalorder %s73, 0
      %p318 = por %p316, %p317
      %p319 = scmp.ne.s32.totalorder %s311, %s313
      %p320 = scmp.eq.s32.totalorder %s78, 1
      %p321 = por %p319, %p320
      %p322 = scmp.ne.s32.totalorder %s313, %s314
      %p323 = scmp.eq.s32.totalorder %s78, 0
      %p324 = por %p322, %p323
      %p325 = scmp.ne.s32.totalorder %s313, %s314
      %p326 = scmp.eq.s32.totalorder %s79, 1
      %p327 = por %p325, %p326
      %p329 = scmp.ne.s32.totalorder %s314, %s328
      %p330 = scmp.eq.s32.totalorder %s79, 0
      %p331 = por %p329, %p330
      %s333 = sadd.s32 %s332, 1
      %p336 = scmp.eq.s32.totalorder %s73, 1
      %p337 = scmp.ne.s32.totalorder %s332, %s334
      %p338 = scmp.eq.s32.totalorder %s73, 0
      %p339 = por %p337, %p338
      %p340 = scmp.ne.s32.totalorder %s332, %s334
      %p341 = scmp.eq.s32.totalorder %s78, 1
      %p342 = por %p340, %p341
      %p343 = scmp.ne.s32.totalorder %s334, %s335
      %p344 = scmp.eq.s32.totalorder %s78, 0
      %p345 = por %p343, %p344
      %p346 = scmp.ne.s32.totalorder %s334, %s335
      %p347 = scmp.eq.s32.totalorder %s79, 1
      %p348 = por %p346, %p347
      %p350 = scmp.ne.s32.totalorder %s335, %s349
      %p351 = scmp.eq.s32.totalorder %s79, 0
      %p352 = por %p350, %p351
      %s354 = sadd.s32 %s353, 1
      %p357 = scmp.eq.s32.totalorder %s73, 1
      %p358 = scmp.ne.s32.totalorder %s353, %s355
      %p359 = scmp.eq.s32.totalorder %s73, 0
      %p360 = por %p358, %p359
      %p361 = scmp.ne.s32.totalorder %s353, %s355
      %p362 = scmp.eq.s32.totalorder %s78, 1
      %p363 = por %p361, %p362
      %p364 = scmp.ne.s32.totalorder %s355, %s356
      %p365 = scmp.eq.s32.totalorder %s78, 0
      %p366 = por %p364, %p365
      %p367 = scmp.ne.s32.totalorder %s355, %s356
      %p368 = scmp.eq.s32.totalorder %s79, 1
      %p369 = por %p367, %p368
      %p371 = scmp.ne.s32.totalorder %s356, %s370
      %p372 = scmp.eq.s32.totalorder %s79, 0
      %p373 = por %p371, %p372
      %s375 = sadd.s32 %s374, 1
      %p378 = scmp.eq.s32.totalorder %s73, 1
      %p379 = scmp.ne.s32.totalorder %s374, %s376
      %p380 = scmp.eq.s32.totalorder %s73, 0
      %p381 = por %p379, %p380
      %p382 = scmp.ne.s32.totalorder %s374, %s376
      %p383 = scmp.eq.s32.totalorder %s78, 1
      %p384 = por %p382, %p383
      %p385 = scmp.ne.s32.totalorder %s376, %s377
      %p386 = scmp.eq.s32.totalorder %s78, 0
      %p387 = por %p385, %p386
      %p388 = scmp.ne.s32.totalorder %s376, %s377
      %p389 = scmp.eq.s32.totalorder %s79, 1
      %p390 = por %p388, %p389
      %p392 = scmp.ne.s32.totalorder %s377, %s391
      %p393 = scmp.eq.s32.totalorder %s79, 0
      %p394 = por %p392, %p393
      %s396 = sadd.s32 %s395, 1
      %p399 = scmp.eq.s32.totalorder %s73, 1
      %p400 = scmp.ne.s32.totalorder %s395, %s397
      %p401 = scmp.eq.s32.totalorder %s73, 0
      %p402 = por %p400, %p401
      %p403 = scmp.ne.s32.totalorder %s395, %s397
      %p404 = scmp.eq.s32.totalorder %s78, 1
      %p405 = por %p403, %p404
      %p406 = scmp.ne.s32.totalorder %s397, %s398
      %p407 = scmp.eq.s32.totalorder %s78, 0
      %p408 = por %p406, %p407
      %p409 = scmp.ne.s32.totalorder %s397, %s398
      %p410 = scmp.eq.s32.totalorder %s79, 1
      %p411 = por %p409, %p410
      %p413 = scmp.ne.s32.totalorder %s398, %s412
      %p414 = scmp.eq.s32.totalorder %s79, 0
      %p415 = por %p413, %p414
      %s417 = sadd.s32 %s416, 1
      %p420 = scmp.eq.s32.totalorder %s73, 1
      %p421 = scmp.ne.s32.totalorder %s416, %s418
      %p422 = scmp.eq.s32.totalorder %s73, 0
      %p423 = por %p421, %p422
      %p424 = scmp.ne.s32.totalorder %s416, %s418
      %p425 = scmp.eq.s32.totalorder %s78, 1
      %p426 = por %p424, %p425
      %p427 = scmp.ne.s32.totalorder %s418, %s419
      %p428 = scmp.eq.s32.totalorder %s78, 0
      %p429 = por %p427, %p428
      %p430 = scmp.ne.s32.totalorder %s418, %s419
      %p431 = scmp.eq.s32.totalorder %s79, 1
      %p432 = por %p430, %p431
      %p434 = scmp.ne.s32.totalorder %s419, %s433
      %p435 = scmp.eq.s32.totalorder %s79, 0
      %p436 = por %p434, %p435
      %s438 = sadd.s32 %s437, 1
      %p441 = scmp.eq.s32.totalorder %s73, 1
      %p442 = scmp.ne.s32.totalorder %s437, %s439
      %p443 = scmp.eq.s32.totalorder %s73, 0
      %p444 = por %p442, %p443
      %p445 = scmp.ne.s32.totalorder %s437, %s439
      %p446 = scmp.eq.s32.totalorder %s78, 1
      %p447 = por %p445, %p446
      %p448 = scmp.ne.s32.totalorder %s439, %s440
      %p449 = scmp.eq.s32.totalorder %s78, 0
      %p450 = por %p448, %p449
      %p451 = scmp.ne.s32.totalorder %s439, %s440
      %p452 = scmp.eq.s32.totalorder %s79, 1
      %p453 = por %p451, %p452
      %p455 = scmp.ne.s32.totalorder %s440, %s454
      %p456 = scmp.eq.s32.totalorder %s79, 0
      %p457 = por %p455, %p456
      %s459 = sadd.s32 %s458, 1
      %p462 = scmp.eq.s32.totalorder %s73, 1
      %p463 = scmp.ne.s32.totalorder %s458, %s460
      %p464 = scmp.eq.s32.totalorder %s73, 0
      %p465 = por %p463, %p464
      %p466 = scmp.ne.s32.totalorder %s458, %s460
      %p467 = scmp.eq.s32.totalorder %s78, 1
      %p468 = por %p466, %p467
      %p469 = scmp.ne.s32.totalorder %s460, %s461
      %p470 = scmp.eq.s32.totalorder %s78, 0
      %p471 = por %p469, %p470
      %p472 = scmp.ne.s32.totalorder %s460, %s461
      %p473 = scmp.eq.s32.totalorder %s79, 1
      %p474 = por %p472, %p473
      %p476 = scmp.ne.s32.totalorder %s461, %s475
      %p477 = scmp.eq.s32.totalorder %s79, 0
      %p478 = por %p476, %p477
      %s480 = sadd.s32 %s479, 1
      %p483 = scmp.eq.s32.totalorder %s73, 1
      %p484 = scmp.ne.s32.totalorder %s479, %s481
      %p485 = scmp.eq.s32.totalorder %s73, 0
      %p486 = por %p484, %p485
      %p487 = scmp.ne.s32.totalorder %s479, %s481
      %p488 = scmp.eq.s32.totalorder %s78, 1
      %p489 = por %p487, %p488
      %p490 = scmp.ne.s32.totalorder %s481, %s482
      %p491 = scmp.eq.s32.totalorder %s78, 0
      %p492 = por %p490, %p491
      %p493 = scmp.ne.s32.totalorder %s481, %s482
      %p494 = scmp.eq.s32.totalorder %s79, 1
      %p495 = por %p493, %p494
      %p497 = scmp.ne.s32.totalorder %s482, %s496
      %p498 = scmp.eq.s32.totalorder %s79, 0
      %p499 = por %p497, %p498
      %s501 = sadd.s32 %s500, 1
      %p504 = scmp.eq.s32.totalorder %s73, 1
      %p505 = scmp.ne.s32.totalorder %s500, %s502
      %p506 = scmp.eq.s32.totalorder %s73, 0
      %p507 = por %p505, %p506
      %p508 = scmp.ne.s32.totalorder %s500, %s502
      %p509 = scmp.eq.s32.totalorder %s78, 1
      %p510 = por %p508, %p509
      %p511 = scmp.ne.s32.totalorder %s502, %s503
      %p512 = scmp.eq.s32.totalorder %s78, 0
      %p513 = por %p511, %p512
      %p514 = scmp.ne.s32.totalorder %s502, %s503
      %p515 = scmp.eq.s32.totalorder %s79, 1
      %p516 = por %p514, %p515
      %p518 = scmp.ne.s32.totalorder %s503, %s517
      %p519 = scmp.eq.s32.totalorder %s79, 0
      %p520 = por %p518, %p519
      %s522 = sadd.s32 %s521, 1
      %p525 = scmp.eq.s32.totalorder %s73, 1
      %p526 = scmp.ne.s32.totalorder %s521, %s523
      %p527 = scmp.eq.s32.totalorder %s73, 0
      %p528 = por %p526, %p527
      %p529 = scmp.ne.s32.totalorder %s521, %s523
      %p530 = scmp.eq.s32.totalorder %s78, 1
      %p531 = por %p529, %p530
      %p532 = scmp.ne.s32.totalorder %s523, %s524
      %p533 = scmp.eq.s32.totalorder %s78, 0
      %p534 = por %p532, %p533
      %p535 = scmp.ne.s32.totalorder %s523, %s524
      %p536 = scmp.eq.s32.totalorder %s79, 1
      %p537 = por %p535, %p536
      %p539 = scmp.ne.s32.totalorder %s524, %s538
      %p540 = scmp.eq.s32.totalorder %s79, 0
      %p541 = por %p539, %p540
      %s543 = sadd.s32 %s542, 1
      %p546 = scmp.eq.s32.totalorder %s73, 1
      %p547 = scmp.ne.s32.totalorder %s542, %s544
      %p548 = scmp.eq.s32.totalorder %s73, 0
      %p549 = por %p547, %p548
      %p550 = scmp.ne.s32.totalorder %s542, %s544
      %p551 = scmp.eq.s32.totalorder %s78, 1
      %p552 = por %p550, %p551
      %p553 = scmp.ne.s32.totalorder %s544, %s545
      %p554 = scmp.eq.s32.totalorder %s78, 0
      %p555 = por %p553, %p554
      %p556 = scmp.ne.s32.totalorder %s544, %s545
      %p557 = scmp.eq.s32.totalorder %s79, 1
      %p558 = por %p556, %p557
      %p560 = scmp.ne.s32.totalorder %s545, %s559
      %p561 = scmp.eq.s32.totalorder %s79, 0
      %p562 = por %p560, %p561
      %s564 = sadd.s32 %s563, 1
      %p567 = scmp.eq.s32.totalorder %s73, 1
      %p568 = scmp.ne.s32.totalorder %s563, %s565
      %p569 = scmp.eq.s32.totalorder %s73, 0
      %p570 = por %p568, %p569
      %p571 = scmp.ne.s32.totalorder %s563, %s565
      %p572 = scmp.eq.s32.totalorder %s78, 1
      %p573 = por %p571, %p572
      %p574 = scmp.ne.s32.totalorder %s565, %s566
      %p575 = scmp.eq.s32.totalorder %s78, 0
      %p576 = por %p574, %p575
      %p577 = scmp.ne.s32.totalorder %s565, %s566
      %p578 = scmp.eq.s32.totalorder %s79, 1
      %p579 = por %p577, %p578
      %p581 = scmp.ne.s32.totalorder %s566, %s580
      %p582 = scmp.eq.s32.totalorder %s79, 0
      %p583 = por %p581, %p582
      %s585 = sadd.s32 %s584, 1
      %p588 = scmp.eq.s32.totalorder %s73, 1
      %p589 = scmp.ne.s32.totalorder %s584, %s586
      %p590 = scmp.eq.s32.totalorder %s73, 0
      %p591 = por %p589, %p590
      %p592 = scmp.ne.s32.totalorder %s584, %s586
      %p593 = scmp.eq.s32.totalorder %s78, 1
      %p594 = por %p592, %p593
      %p595 = scmp.ne.s32.totalorder %s586, %s587
      %p596 = scmp.eq.s32.totalorder %s78, 0
      %p597 = por %p595, %p596
      %p598 = scmp.ne.s32.totalorder %s586, %s587
      %p599 = scmp.eq.s32.totalorder %s79, 1
      %p600 = por %p598, %p599
      %p602 = scmp.ne.s32.totalorder %s587, %s601
      %p603 = scmp.eq.s32.totalorder %s79, 0
      %p604 = por %p602, %p603
      %s606 = sadd.s32 %s605, 1
      %p609 = scmp.eq.s32.totalorder %s73, 1
      %p610 = scmp.ne.s32.totalorder %s605, %s607
      %p611 = scmp.eq.s32.totalorder %s73, 0
      %p612 = por %p610, %p611
      %p613 = scmp.ne.s32.totalorder %s605, %s607
      %p614 = scmp.eq.s32.totalorder %s78, 1
      %p615 = por %p613, %p614
      %p616 = scmp.ne.s32.totalorder %s607, %s608
      %p617 = scmp.eq.s32.totalorder %s78, 0
      %p618 = por %p616, %p617
      %p619 = scmp.ne.s32.totalorder %s607, %s608
      %p620 = scmp.eq.s32.totalorder %s79, 1
      %p621 = por %p619, %p620
      %p623 = scmp.ne.s32.totalorder %s608, %s622
      %p624 = scmp.eq.s32.totalorder %s79, 0
      %p625 = por %p623, %p624
      %s627 = sadd.s32 %s626, 1
      %p630 = scmp.eq.s32.totalorder %s73, 1
      %p631 = scmp.ne.s32.totalorder %s626, %s628
      %p632 = scmp.eq.s32.totalorder %s73, 0
      %p633 = por %p631, %p632
      %p634 = scmp.ne.s32.totalorder %s626, %s628
      %p635 = scmp.eq.s32.totalorder %s78, 1
      %p636 = por %p634, %p635
      %p637 = scmp.ne.s32.totalorder %s628, %s629
      %p638 = scmp.eq.s32.totalorder %s78, 0
      %p639 = por %p637, %p638
      %p640 = scmp.ne.s32.totalorder %s628, %s629
      %p641 = scmp.eq.s32.totalorder %s79, 1
      %p642 = por %p640, %p641
      %p644 = scmp.ne.s32.totalorder %s629, %s643
      %p645 = scmp.eq.s32.totalorder %s79, 0
      %p646 = por %p644, %p645
      %s648 = sadd.s32 %s647, 1
      %p651 = scmp.eq.s32.totalorder %s73, 1
      %p652 = scmp.ne.s32.totalorder %s647, %s649
      %p653 = scmp.eq.s32.totalorder %s73, 0
      %p654 = por %p652, %p653
      %p655 = scmp.ne.s32.totalorder %s647, %s649
      %p656 = scmp.eq.s32.totalorder %s78, 1
      %p657 = por %p655, %p656
      %p658 = scmp.ne.s32.totalorder %s649, %s650
      %p659 = scmp.eq.s32.totalorder %s78, 0
      %p660 = por %p658, %p659
      %p661 = scmp.ne.s32.totalorder %s649, %s650
      %p662 = scmp.eq.s32.totalorder %s79, 1
      %p663 = por %p661, %p662
      %p665 = scmp.ne.s32.totalorder %s650, %s664
      %p666 = scmp.eq.s32.totalorder %s79, 0
      %p667 = por %p665, %p666
      %s669 = sadd.s32 %s668, 1
      %p672 = scmp.eq.s32.totalorder %s73, 1
      %p673 = scmp.ne.s32.totalorder %s668, %s670
      %p674 = scmp.eq.s32.totalorder %s73, 0
      %p675 = por %p673, %p674
      %p676 = scmp.ne.s32.totalorder %s668, %s670
      %p677 = scmp.eq.s32.totalorder %s78, 1
      %p678 = por %p676, %p677
      %p679 = scmp.ne.s32.totalorder %s670, %s671
      %p680 = scmp.eq.s32.totalorder %s78, 0
      %p681 = por %p679, %p680
      %p682 = scmp.ne.s32.totalorder %s670, %s671
      %p683 = scmp.eq.s32.totalorder %s79, 1
      %p684 = por %p682, %p683
      %p686 = scmp.ne.s32.totalorder %s671, %s685
      %p687 = scmp.eq.s32.totalorder %s79, 0
      %p688 = por %p686, %p687
      %s690 = sadd.s32 %s689, 1
      %p693 = scmp.eq.s32.totalorder %s73, 1
      %p694 = scmp.ne.s32.totalorder %s689, %s691
      %p695 = scmp.eq.s32.totalorder %s73, 0
      %p696 = por %p694, %p695
      %p697 = scmp.ne.s32.totalorder %s689, %s691
      %p698 = scmp.eq.s32.totalorder %s78, 1
      %p699 = por %p697, %p698
      %p700 = scmp.ne.s32.totalorder %s691, %s692
      %p701 = scmp.eq.s32.totalorder %s78, 0
      %p702 = por %p700, %p701
      %p703 = scmp.ne.s32.totalorder %s691, %s692
      %p704 = scmp.eq.s32.totalorder %s79, 1
      %p705 = por %p703, %p704
      %p707 = scmp.ne.s32.totalorder %s692, %s706
      %p708 = scmp.eq.s32.totalorder %s79, 0
      %p709 = por %p707, %p708
      %s710 = ssub.s32 %s73, %s80
      %p711 = scmp.eq.s32.totalorder %s710, 0
      %s713 = sadd.s32 %s712, 1
      %s714 = scalar_select %p711, %s712, %s713
      %p717 = pneg %p711
      %p718 = scmp.eq.s32.totalorder %s73, 1
      %p719 = por %p717, %p718
      %p720 = scmp.ne.s32.totalorder %s712, %s715
      %p721 = scmp.eq.s32.totalorder %s73, 0
      %p722 = por %p720, %p721
      %p723 = scmp.ne.s32.totalorder %s712, %s715
      %p724 = scmp.eq.s32.totalorder %s78, 1
      %p725 = por %p723, %p724
      %p726 = scmp.ne.s32.totalorder %s715, %s716
      %p727 = scmp.eq.s32.totalorder %s78, 0
      %p728 = por %p726, %p727
      %p729 = scmp.ne.s32.totalorder %s715, %s716
      %p730 = scmp.eq.s32.totalorder %s79, 1
      %p731 = por %p729, %p730
      %p733 = scmp.ne.s32.totalorder %s716, %s732
      %p734 = scmp.eq.s32.totalorder %s79, 0
      %p735 = por %p733, %p734
      %s736 = ssub.s32 %s73, %s80
      %p737 = scmp.eq.s32.totalorder %s736, 0
      %s739 = sadd.s32 %s738, 1
      %s740 = scalar_select %p737, %s738, %s739
      %p743 = pneg %p737
      %p744 = scmp.eq.s32.totalorder %s73, 1
      %p745 = por %p743, %p744
      %p746 = scmp.ne.s32.totalorder %s738, %s741
      %p747 = scmp.eq.s32.totalorder %s73, 0
      %p748 = por %p746, %p747
      %p749 = scmp.ne.s32.totalorder %s738, %s741
      %p750 = scmp.eq.s32.totalorder %s78, 1
      %p751 = por %p749, %p750
      %p752 = scmp.ne.s32.totalorder %s741, %s742
      %p753 = scmp.eq.s32.totalorder %s78, 0
      %p754 = por %p752, %p753
      %p755 = scmp.ne.s32.totalorder %s741, %s742
      %p756 = scmp.eq.s32.totalorder %s79, 1
      %p757 = por %p755, %p756
      %p759 = scmp.ne.s32.totalorder %s742, %s758
      %p760 = scmp.eq.s32.totalorder %s79, 0
      %p761 = por %p759, %p760
      %s762 = ssub.s32 %s73, %s80
      %p763 = scmp.eq.s32.totalorder %s762, 0
      %s765 = sadd.s32 %s764, 1
      %s766 = scalar_select %p763, %s764, %s765
      %p769 = pneg %p763
      %p770 = scmp.eq.s32.totalorder %s73, 1
      %p771 = por %p769, %p770
      %p772 = scmp.ne.s32.totalorder %s764, %s767
      %p773 = scmp.eq.s32.totalorder %s73, 0
      %p774 = por %p772, %p773
      %p775 = scmp.ne.s32.totalorder %s764, %s767
      %p776 = scmp.eq.s32.totalorder %s78, 1
      %p777 = por %p775, %p776
      %p778 = scmp.ne.s32.totalorder %s767, %s768
      %p779 = scmp.eq.s32.totalorder %s78, 0
      %p780 = por %p778, %p779
      %p781 = scmp.ne.s32.totalorder %s767, %s768
      %p782 = scmp.eq.s32.totalorder %s79, 1
      %p783 = por %p781, %p782
      %p785 = scmp.ne.s32.totalorder %s768, %s784
      %p786 = scmp.eq.s32.totalorder %s79, 0
      %p787 = por %p785, %p786
      %s788 = ssub.s32 %s73, %s80
      %p789 = scmp.eq.s32.totalorder %s788, 0
      %s791 = sadd.s32 %s790, 1
      %s792 = scalar_select %p789, %s790, %s791
      %p795 = pneg %p789
      %p796 = scmp.eq.s32.totalorder %s73, 1
      %p797 = por %p795, %p796
      %p798 = scmp.ne.s32.totalorder %s790, %s793
      %p799 = scmp.eq.s32.totalorder %s73, 0
      %p800 = por %p798, %p799
      %p801 = scmp.ne.s32.totalorder %s790, %s793
      %p802 = scmp.eq.s32.totalorder %s78, 1
      %p803 = por %p801, %p802
      %p804 = scmp.ne.s32.totalorder %s793, %s794
      %p805 = scmp.eq.s32.totalorder %s78, 0
      %p806 = por %p804, %p805
      %p807 = scmp.ne.s32.totalorder %s793, %s794
      %p808 = scmp.eq.s32.totalorder %s79, 1
      %p809 = por %p807, %p808
      %p811 = scmp.ne.s32.totalorder %s794, %s810
      %p812 = scmp.eq.s32.totalorder %s79, 0
      %p813 = por %p811, %p812
      %p814 = scmp.le.s32.totalorder 1, %s73
      %p815 = scmp.lt.s32.totalorder %s73, 3
      %p816 = pnand %p814, %p815
      %p817 = pneg %p816
      // Predicated region
      $region9: #{bifpn_pallas.1} parent=5 // pred_check
        _
      $region10: #{bifpn_pallas.1} parent=5 // pred_check_branch
        %819 = sbr.rel (%p816) target = $region12
      $region11: #{bifpn_pallas.1} parent=5 // pred_region
        %s820 = ssub.s32 %s73, 1
        // Predicated region
        $region13: #{bifpn_pallas.1} parent=11 // pred_check
          %p821 = pneg %p94
        $region14: #{bifpn_pallas.1} parent=11 // pred_check_branch
          %823 = sbr.rel (%p821) target = $region16
        $region15: #{bifpn_pallas.1} parent=11 // pred_region
          %s825 = ssub.s32 16, 16
          %826 = vsyncadd [#allocation7], %s825
          %s828 = sshll.u32 %s1, 4
          %s829 = int_to_ptr.vmem [resolvable:$true] %s828
          %831 = dma.vmem_to_smem %s829, 16, [#allocation6], [#allocation7]
        $region16: #{bifpn_pallas.1} parent=11 // pred_fallthru
          _
        // Predicated region
        $region17: #{bifpn_pallas.1} parent=11 // pred_check
          %p832 = pneg %p219
        $region18: #{bifpn_pallas.1} parent=11 // pred_check_branch
          %834 = sbr.rel (%p832) target = $region20
        $region19: #{bifpn_pallas.1} parent=11 // pred_region
          _
        $region20: #{bifpn_pallas.1} parent=11 // pred_fallthru
          _
        // Predicated region
        $region21: #{bifpn_pallas.1} parent=11 // pred_check
          %p835 = pneg %p240
        $region22: #{bifpn_pallas.1} parent=11 // pred_check_branch
          %837 = sbr.rel (%p835) target = $region24
        $region23: #{bifpn_pallas.1} parent=11 // pred_region
          _
        $region24: #{bifpn_pallas.1} parent=11 // pred_fallthru
          _
        // Predicated region
        $region25: #{bifpn_pallas.1} parent=11 // pred_check
          %p838 = pneg %p261
        $region26: #{bifpn_pallas.1} parent=11 // pred_check_branch
          %840 = sbr.rel (%p838) target = $region28
        $region27: #{bifpn_pallas.1} parent=11 // pred_region
          _
        $region28: #{bifpn_pallas.1} parent=11 // pred_fallthru
          _
        // Predicated region
        $region29: #{bifpn_pallas.1} parent=11 // pred_check
          %p841 = pneg %p282
        $region30: #{bifpn_pallas.1} parent=11 // pred_check_branch
          %843 = sbr.rel (%p841) target = $region32
        $region31: #{bifpn_pallas.1} parent=11 // pred_region
          _
        $region32: #{bifpn_pallas.1} parent=11 // pred_fallthru
          _
        // Predicated region
        $region33: #{bifpn_pallas.1} parent=11 // pred_check
          %p844 = pneg %p303
        $region34: #{bifpn_pallas.1} parent=11 // pred_check_branch
          %846 = sbr.rel (%p844) target = $region36
        $region35: #{bifpn_pallas.1} parent=11 // pred_region
          _
        $region36: #{bifpn_pallas.1} parent=11 // pred_fallthru
          _
        // Predicated region
        $region37: #{bifpn_pallas.1} parent=11 // pred_check
          %p847 = pneg %p324
        $region38: #{bifpn_pallas.1} parent=11 // pred_check_branch
          %849 = sbr.rel (%p847) target = $region40
        $region39: #{bifpn_pallas.1} parent=11 // pred_region
          _
        $region40: #{bifpn_pallas.1} parent=11 // pred_fallthru
          _
        // Predicated region
        $region41: #{bifpn_pallas.1} parent=11 // pred_check
          %p850 = pneg %p345
        $region42: #{bifpn_pallas.1} parent=11 // pred_check_branch
          %852 = sbr.rel (%p850) target = $region44
        $region43: #{bifpn_pallas.1} parent=11 // pred_region
          _
        $region44: #{bifpn_pallas.1} parent=11 // pred_fallthru
          _
        // Predicated region
        $region45: #{bifpn_pallas.1} parent=11 // pred_check
          %p853 = pneg %p366
        $region46: #{bifpn_pallas.1} parent=11 // pred_check_branch
          %855 = sbr.rel (%p853) target = $region48
        $region47: #{bifpn_pallas.1} parent=11 // pred_region
          _
        $region48: #{bifpn_pallas.1} parent=11 // pred_fallthru
          _
        // Predicated region
        $region49: #{bifpn_pallas.1} parent=11 // pred_check
          %p856 = pneg %p387
        $region50: #{bifpn_pallas.1} parent=11 // pred_check_branch
          %858 = sbr.rel (%p856) target = $region52
        $region51: #{bifpn_pallas.1} parent=11 // pred_region
          _
        $region52: #{bifpn_pallas.1} parent=11 // pred_fallthru
          _
        // Predicated region
        $region53: #{bifpn_pallas.1} parent=11 // pred_check
          %p859 = pneg %p408
        $region54: #{bifpn_pallas.1} parent=11 // pred_check_branch
          %861 = sbr.rel (%p859) target = $region56
        $region55: #{bifpn_pallas.1} parent=11 // pred_region
          _
        $region56: #{bifpn_pallas.1} parent=11 // pred_fallthru
          _
        // Predicated region
        $region57: #{bifpn_pallas.1} parent=11 // pred_check
          %p862 = pneg %p429
        $region58: #{bifpn_pallas.1} parent=11 // pred_check_branch
          %864 = sbr.rel (%p862) target = $region60
        $region59: #{bifpn_pallas.1} parent=11 // pred_region
          _
        $region60: #{bifpn_pallas.1} parent=11 // pred_fallthru
          _
        // Predicated region
        $region61: #{bifpn_pallas.1} parent=11 // pred_check
          %p865 = pneg %p450
        $region62: #{bifpn_pallas.1} parent=11 // pred_check_branch
          %867 = sbr.rel (%p865) target = $region64
        $region63: #{bifpn_pallas.1} parent=11 // pred_region
          _
        $region64: #{bifpn_pallas.1} parent=11 // pred_fallthru
          _
        // Predicated region
        $region65: #{bifpn_pallas.1} parent=11 // pred_check
          %p868 = pneg %p471
        $region66: #{bifpn_pallas.1} parent=11 // pred_check_branch
          %870 = sbr.rel (%p868) target = $region68
        $region67: #{bifpn_pallas.1} parent=11 // pred_region
          _
        $region68: #{bifpn_pallas.1} parent=11 // pred_fallthru
          _
        // Predicated region
        $region69: #{bifpn_pallas.1} parent=11 // pred_check
          %p871 = pneg %p492
        $region70: #{bifpn_pallas.1} parent=11 // pred_check_branch
          %873 = sbr.rel (%p871) target = $region72
        $region71: #{bifpn_pallas.1} parent=11 // pred_region
          _
        $region72: #{bifpn_pallas.1} parent=11 // pred_fallthru
          _
        // Predicated region
        $region73: #{bifpn_pallas.1} parent=11 // pred_check
          %p874 = pneg %p513
        $region74: #{bifpn_pallas.1} parent=11 // pred_check_branch
          %876 = sbr.rel (%p874) target = $region76
        $region75: #{bifpn_pallas.1} parent=11 // pred_region
          _
        $region76: #{bifpn_pallas.1} parent=11 // pred_fallthru
          _
        // Predicated region
        $region77: #{bifpn_pallas.1} parent=11 // pred_check
          %p877 = pneg %p534
        $region78: #{bifpn_pallas.1} parent=11 // pred_check_branch
          %879 = sbr.rel (%p877) target = $region80
        $region79: #{bifpn_pallas.1} parent=11 // pred_region
          _
        $region80: #{bifpn_pallas.1} parent=11 // pred_fallthru
          _
        // Predicated region
        $region81: #{bifpn_pallas.1} parent=11 // pred_check
          %p880 = pneg %p555
        $region82: #{bifpn_pallas.1} parent=11 // pred_check_branch
          %882 = sbr.rel (%p880) target = $region84
        $region83: #{bifpn_pallas.1} parent=11 // pred_region
          _
        $region84: #{bifpn_pallas.1} parent=11 // pred_fallthru
          _
        // Predicated region
        $region85: #{bifpn_pallas.1} parent=11 // pred_check
          %p883 = pneg %p576
        $region86: #{bifpn_pallas.1} parent=11 // pred_check_branch
          %885 = sbr.rel (%p883) target = $region88
        $region87: #{bifpn_pallas.1} parent=11 // pred_region
          _
        $region88: #{bifpn_pallas.1} parent=11 // pred_fallthru
          _
        // Predicated region
        $region89: #{bifpn_pallas.1} parent=11 // pred_check
          %p886 = pneg %p597
        $region90: #{bifpn_pallas.1} parent=11 // pred_check_branch
          %888 = sbr.rel (%p886) target = $region92
        $region91: #{bifpn_pallas.1} parent=11 // pred_region
          _
        $region92: #{bifpn_pallas.1} parent=11 // pred_fallthru
          _
        // Predicated region
        $region93: #{bifpn_pallas.1} parent=11 // pred_check
          %p889 = pneg %p618
        $region94: #{bifpn_pallas.1} parent=11 // pred_check_branch
          %891 = sbr.rel (%p889) target = $region96
        $region95: #{bifpn_pallas.1} parent=11 // pred_region
          _
        $region96: #{bifpn_pallas.1} parent=11 // pred_fallthru
          _
        // Predicated region
        $region97: #{bifpn_pallas.1} parent=11 // pred_check
          %p892 = pneg %p639
        $region98: #{bifpn_pallas.1} parent=11 // pred_check_branch
          %894 = sbr.rel (%p892) target = $region100
        $region99: #{bifpn_pallas.1} parent=11 // pred_region
          _
        $region100: #{bifpn_pallas.1} parent=11 // pred_fallthru
          _
        // Predicated region
        $region101: #{bifpn_pallas.1} parent=11 // pred_check
          %p895 = pneg %p660
        $region102: #{bifpn_pallas.1} parent=11 // pred_check_branch
          %897 = sbr.rel (%p895) target = $region104
        $region103: #{bifpn_pallas.1} parent=11 // pred_region
          _
        $region104: #{bifpn_pallas.1} parent=11 // pred_fallthru
          _
        // Predicated region
        $region105: #{bifpn_pallas.1} parent=11 // pred_check
          %p898 = pneg %p681
        $region106: #{bifpn_pallas.1} parent=11 // pred_check_branch
          %900 = sbr.rel (%p898) target = $region108
        $region107: #{bifpn_pallas.1} parent=11 // pred_region
          _
        $region108: #{bifpn_pallas.1} parent=11 // pred_fallthru
          _
        // Predicated region
        $region109: #{bifpn_pallas.1} parent=11 // pred_check
          %p901 = pneg %p702
        $region110: #{bifpn_pallas.1} parent=11 // pred_check_branch
          %903 = sbr.rel (%p901) target = $region112
        $region111: #{bifpn_pallas.1} parent=11 // pred_region
          _
        $region112: #{bifpn_pallas.1} parent=11 // pred_fallthru
          _
      $region12: #{bifpn_pallas.1} parent=5 // pred_fallthru
        _
      %p904 = scmp.lt.s32.totalorder %s73, 2
      // Predicated region
      $region113: #{bifpn_pallas.1} parent=5 // pred_check
        %p905 = pneg %p904
      $region114: #{bifpn_pallas.1} parent=5 // pred_check_branch
        %907 = sbr.rel (%p905) target = $region116
      $region115: #{bifpn_pallas.1} parent=5 // pred_region
        // Predicated region
        $region117: #{bifpn_pallas.1} parent=115 // pred_check
          %p908 = pneg %p114
        $region118: #{bifpn_pallas.1} parent=115 // pred_check_branch
          %910 = sbr.rel (%p908) target = $region120
        $region119: #{bifpn_pallas.1} parent=115 // pred_region
          %p911 = scmp.lt.s32.totalorder %s73, 1
          %s912 = scalar_select %p911, %s73, 1
          %s913 = smul.addr %s912, 2
          %s914 = smul.addr %s913, 8
          %s915 = scalar_lea.vmem %s3, %s914
        $region120: #{bifpn_pallas.1} parent=115 // pred_fallthru
          _
        // Predicated region
        $region121: #{bifpn_pallas.1} parent=115 // pred_check
          %p916 = pneg %p140
        $region122: #{bifpn_pallas.1} parent=115 // pred_check_branch
          %918 = sbr.rel (%p916) target = $region124
        $region123: #{bifpn_pallas.1} parent=115 // pred_region
          %p919 = scmp.lt.s32.totalorder %s73, 1
          %s920 = scalar_select %p919, %s73, 1
          %s921 = smul.addr %s920, 8
          %s922 = scalar_lea.vmem %s5, %s921
        $region124: #{bifpn_pallas.1} parent=115 // pred_fallthru
          _
        // Predicated region
        $region125: #{bifpn_pallas.1} parent=115 // pred_check
          %p923 = pneg %p166
        $region126: #{bifpn_pallas.1} parent=115 // pred_check_branch
          %925 = sbr.rel (%p923) target = $region128
        $region127: #{bifpn_pallas.1} parent=115 // pred_region
          %p926 = scmp.lt.s32.totalorder %s73, 1
          %s927 = scalar_select %p926, %s73, 1
          %s928 = smul.addr %s927, 4
          %s929 = scalar_lea.vmem %s7, %s928
        $region128: #{bifpn_pallas.1} parent=115 // pred_fallthru
          _
        // Predicated region
        $region129: #{bifpn_pallas.1} parent=115 // pred_check
          %p930 = pneg %p192
        $region130: #{bifpn_pallas.1} parent=115 // pred_check_branch
          %932 = sbr.rel (%p930) target = $region132
        $region131: #{bifpn_pallas.1} parent=115 // pred_region
          %p933 = scmp.lt.s32.totalorder %s73, 1
          %s934 = scalar_select %p933, %s73, 1
          %s935 = smul.addr %s934, 2
          %s936 = scalar_lea.vmem %s9, %s935
        $region132: #{bifpn_pallas.1} parent=115 // pred_fallthru
          _
      $region116: #{bifpn_pallas.1} parent=5 // pred_fallthru
        _
      %p937 = scmp.le.s32.totalorder 1, %s73
      %p938 = scmp.lt.s32.totalorder %s73, 3
      %p939 = pnand %p937, %p938
      %p940 = pneg %p939
      // Predicated region
      $region133: #{bifpn_pallas.1} parent=5 // pred_check
        _
      $region134: #{bifpn_pallas.1} parent=5 // pred_check_branch
        %942 = sbr.rel (%p939) target = $region136
      $region135: #{bifpn_pallas.1} parent=5 // pred_region
        %s943 = ssub.s32 %s73, 1
        // Predicated region
        $region137: #{bifpn_pallas.1} parent=135 // pred_check
          %p944 = pneg %p94
        $region138: #{bifpn_pallas.1} parent=135 // pred_check_branch
          %946 = sbr.rel (%p944) target = $region140
        $region139: #{bifpn_pallas.1} parent=135 // pred_region
          %947 = dma.done [#allocation7], 16
        $region140: #{bifpn_pallas.1} parent=135 // pred_fallthru
          _
        %948 = sfence
        %p949 = pneg %p94
        %p950 = pneg %p91
        %p951 = scmp.lt.s32.totalorder %s78, 1
        %s952 = scalar_select %p951, %s78, 1
        %s953 = smul.addr %s952, 2
        %s954 = smul.addr %s953, 8
        %s955 = scalar_lea.vmem %s3, %s954
        %p956 = pneg %p120
        %p957 = pneg %p117
        %p958 = scmp.lt.s32.totalorder %s78, 1
        %s959 = scalar_select %p958, %s78, 1
        %s960 = smul.addr %s959, 8
        %s961 = scalar_lea.vmem %s5, %s960
        %p962 = pneg %p146
        %p963 = pneg %p143
        %p964 = scmp.lt.s32.totalorder %s78, 1
        %s965 = scalar_select %p964, %s78, 1
        %s966 = smul.addr %s965, 4
        %s967 = scalar_lea.vmem %s7, %s966
        %p968 = pneg %p172
        %p969 = pneg %p169
        %p970 = scmp.lt.s32.totalorder %s78, 1
        %s971 = scalar_select %p970, %s78, 1
        %s972 = smul.addr %s971, 2
        %s973 = scalar_lea.vmem %s9, %s972
        %p974 = pneg %p198
        %p975 = pneg %p195
        %p976 = pneg %p219
        %p977 = pneg %p216
        %p978 = pneg %p240
        %p979 = pneg %p237
        %p980 = pneg %p261
        %p981 = pneg %p258
        %p982 = pneg %p282
        %p983 = pneg %p279
        %p984 = pneg %p303
        %p985 = pneg %p300
        %p986 = pneg %p324
        %p987 = pneg %p321
        %p988 = pneg %p345
        %p989 = pneg %p342
        %p990 = pneg %p366
        %p991 = pneg %p363
        %p992 = pneg %p387
        %p993 = pneg %p384
        %p994 = pneg %p408
        %p995 = pneg %p405
        %p996 = pneg %p429
        %p997 = pneg %p426
        %p998 = pneg %p450
        %p999 = pneg %p447
        %p1000 = pneg %p471
        %p1001 = pneg %p468
        %p1002 = pneg %p492
        %p1003 = pneg %p489
        %p1004 = pneg %p513
        %p1005 = pneg %p510
        %p1006 = pneg %p534
        %p1007 = pneg %p531
        %p1008 = pneg %p555
        %p1009 = pneg %p552
        %p1010 = pneg %p576
        %p1011 = pneg %p573
        %p1012 = pneg %p597
        %p1013 = pneg %p594
        %p1014 = pneg %p618
        %p1015 = pneg %p615
        %p1016 = pneg %p639
        %p1017 = pneg %p636
        %p1018 = pneg %p660
        %p1019 = pneg %p657
        %p1020 = pneg %p681
        %p1021 = pneg %p678
        %p1022 = pneg %p702
        %p1023 = pneg %p699
        %p1024 = pneg %p728
        %p1025 = pneg %p725
        %p1026 = scmp.lt.s32.totalorder %s78, 1
        %s1027 = scalar_select %p1026, %s78, 1
        %s1028 = smul.addr %s1027, 2
        %s1029 = smul.addr %s1028, 8
        %s1030 = scalar_lea.vmem %s59, %s1029
        %p1031 = pneg %p754
        %p1032 = pneg %p751
        %p1033 = scmp.lt.s32.totalorder %s78, 1
        %s1034 = scalar_select %p1033, %s78, 1
        %s1035 = smul.addr %s1034, 8
        %s1036 = scalar_lea.vmem %s61, %s1035
        %p1037 = pneg %p780
        %p1038 = pneg %p777
        %p1039 = scmp.lt.s32.totalorder %s78, 1
        %s1040 = scalar_select %p1039, %s78, 1
        %s1041 = smul.addr %s1040, 4
        %s1042 = scalar_lea.vmem %s63, %s1041
        %p1043 = pneg %p806
        %p1044 = pneg %p803
        %p1045 = scmp.lt.s32.totalorder %s78, 1
        %s1046 = scalar_select %p1045, %s78, 1
        %s1047 = smul.addr %s1046, 2
        %s1048 = scalar_lea.vmem %s65, %s1047
        %p1049 = scmp.lt.s32.totalorder %s78, 1
        %s1050 = scalar_select %p1049, %s78, 1
        %s1051 = smul.addr %s1050, 2
        %s1052 = smul.addr %s1051, 8
        %s1053 = scalar_lea.vmem %s3, %s1052
        %p1054 = scmp.lt.s32.totalorder %s78, 1
        %s1055 = scalar_select %p1054, %s78, 1
        %s1056 = smul.addr %s1055, 8
        %s1057 = scalar_lea.vmem %s5, %s1056
        %p1058 = scmp.lt.s32.totalorder %s78, 1
        %s1059 = scalar_select %p1058, %s78, 1
        %s1060 = smul.addr %s1059, 4
        %s1061 = scalar_lea.vmem %s7, %s1060
        %p1062 = scmp.lt.s32.totalorder %s78, 1
        %s1063 = scalar_select %p1062, %s78, 1
        %s1064 = smul.addr %s1063, 2
        %s1065 = scalar_lea.vmem %s9, %s1064
        %p1066 = scmp.lt.s32.totalorder %s78, 1
        %s1067 = scalar_select %p1066, %s78, 1
        %s1068 = smul.addr %s1067, 2
        %s1069 = smul.addr %s1068, 8
        %s1070 = scalar_lea.vmem %s59, %s1069
        %p1071 = scmp.lt.s32.totalorder %s78, 1
        %s1072 = scalar_select %p1071, %s78, 1
        %s1073 = smul.addr %s1072, 8
        %s1074 = scalar_lea.vmem %s61, %s1073
        %p1075 = scmp.lt.s32.totalorder %s78, 1
        %s1076 = scalar_select %p1075, %s78, 1
        %s1077 = smul.addr %s1076, 4
        %s1078 = scalar_lea.vmem %s63, %s1077
        %p1079 = scmp.lt.s32.totalorder %s78, 1
        %s1080 = scalar_select %p1079, %s78, 1
        %s1081 = smul.addr %s1080, 2
        %s1082 = scalar_lea.vmem %s65, %s1081
        %1083 = vst [vmem:[#allocation2] sm:$0xff] 0.0
        %vm1084 = vcmask 130048
        %1085 = vst.msk [vmem:[#allocation2 + $0x8] sm:$0xff] %vm1084, 0.0
        %1086 = vst [vmem:[#allocation2 + $0x10] sm:$0xff] 0.0
        %1087 = vst.msk [vmem:[#allocation2 + $0x18] sm:$0xff] %vm1084, 0.0
        %1088 = vst [vmem:[#allocation2 + $0x20] sm:$0x3] 0.0
        %vm1089 = vcmask 123904
        %1090 = vst.msk [vmem:[#allocation2 + $0x28] sm:$0x3] %vm1089, 0.0
        %vm1091 = vcmask 654336
        %1092 = vst.msk [vmem:[#allocation3] sm:$0xff] %vm1091, 0.0
        %vm1093 = vcmask 648192
        %1094 = vst.msk [vmem:[#allocation3 + $0x8] sm:$0x3] %vm1093, 0.0
        %vm1095 = vcmask 390144
        %1096 = vst.msk [vmem:[#allocation4] sm:$0x3f] %vm1095, 0.0
        %vm1097 = vcmask 257024
        %1098 = vst.msk [vmem:[#allocation5] sm:$0xf] %vm1097, 0.0
        %v1099 = vld [vmem:[%s1053] sm:$0xff]
        %v1100 = vld [vmem:[%s1053 + $0x8] sm:$0xff]
        %v1101 = vld [vmem:[%s1057] sm:$0xff]
        %v1102 = vld [vmem:[%s1061] sm:$0xf]
        %v1103 = vld [vmem:[%s1065] sm:$0x3]
        %s1104 = sld [smem:[#allocation6]]
        %v1105 = vstv %s1104
        %v1106 = vmul.f32 %v1105, %v1102
        %s1107 = sld [smem:[#allocation6 + $0x1]]
        %v1108 = vld [vmem:[%s35] sm:$0xf]
        %vm1109 = vcmask 15360
        %v1111 = vsel %vm1109, %v1108, 0
        %vm1113 = vcmask 1041408
        %v1115 = vsel %vm1113, %v1103, 0
        %1117 = vmatprep.subr.mxu0 0.0
        %1118 = vmatpush1.msra.mxu0 %v1115
        %1119 = vmatprep.subr.mxu0 0.0
        %1120 = vmatpush1.msra.mxu0 0.0
        %1121 = vmatprep.subr.mxu0 0.0
        %1122 = vmatpush1.msra.mxu0 0.0
        %1123 = vmatprep.subr.mxu0 0.0
        %1124 = vmatpush1.msra.mxu0 0.0
        %1125 = vmatprep.subr.mxu0 0.0
        %1126 = vmatpush1.msra.mxu0 0.0
        %1127 = vmatprep.subr.mxu0 0.0
        %1128 = vmatpush1.msra.mxu0 0.0
        %1129 = vmatprep.subr.mxu0 0.0
        %1130 = vmatpush1.msra.mxu0 0.0
        %1131 = vmatprep.subr.mxu0 0.0
        %1132 = vmatpush1.msra.mxu0 0.0
        %1133 = vmatprep.subr.mxu0 0.0
        %1134 = vmatpush1.msra.mxu0 0.0
        %1135 = vmatprep.subr.mxu0 0.0
        %1136 = vmatpush1.msra.mxu0 0.0
        %1137 = vmatprep.subr.mxu0 0.0
        %1138 = vmatpush1.msra.mxu0 0.0
        %1139 = vmatprep.subr.mxu0 0.0
        %1140 = vmatpush1.msra.mxu0 0.0
        %1141 = vmatprep.subr.mxu0 0.0
        %1142 = vmatpush1.msra.mxu0 0.0
        %1143 = vmatprep.subr.mxu0 0.0
        %1144 = vmatpush1.msra.mxu0 0.0
        %1145 = vmatprep.subr.mxu0 0.0
        %1146 = vmatpush1.msra.mxu0 0.0
        %1147 = vmatprep.subr.mxu0 0.0
        %1148 = vmatpush1.msra.mxu0 0.0
        %1149 = vmatprep.subr.mxu0 0.0
        %1150 = vmatpush1.msra.mxu0 0.0
        %1151 = vmatprep.subr.mxu0 0.0
        %1152 = vmatpush1.msra.mxu0 0.0
        %1153 = vmatprep.subr.mxu0 0.0
        %1154 = vmatpush1.msra.mxu0 0.0
        %1155 = vmatprep.subr.mxu0 0.0
        %1156 = vmatpush1.msra.mxu0 0.0
        %1157 = vmatprep.subr.mxu0 0.0
        %1158 = vmatpush1.msra.mxu0 0.0
        %1159 = vmatprep.subr.mxu0 0.0
        %1160 = vmatpush1.msra.mxu0 0.0
        %1161 = vmatprep.subr.mxu0 0.0
        %1162 = vmatpush1.msra.mxu0 0.0
        %1163 = vmatprep.subr.mxu0 0.0
        %1164 = vmatpush1.msra.mxu0 0.0
        %1165 = vmatprep.subr.mxu0 0.0
        %1166 = vmatpush1.msra.mxu0 0.0
        %1167 = vmatprep.subr.mxu0 0.0
        %1168 = vmatpush1.msra.mxu0 0.0
        %1169 = vmatprep.subr.mxu0 0.0
        %1170 = vmatpush1.msra.mxu0 0.0
        %1171 = vmatprep.subr.mxu0 0.0
        %1172 = vmatpush1.msra.mxu0 0.0
        %1173 = vmatprep.subr.mxu0 0.0
        %1174 = vmatpush1.msra.mxu0 0.0
        %1175 = vmatprep.subr.mxu0 0.0
        %1176 = vmatpush1.msra.mxu0 0.0
        %1177 = vmatprep.subr.mxu0 0.0
        %1178 = vmatpush1.msra.mxu0 0.0
        %1179 = vmatprep.subr.mxu0 0.0
        %1180 = vmatpush1.msra.mxu0 0.0
        %1181 = vmatprep.mubr.f32.mxu0 0.0
        %1182 = vmatmul.mubr.f32.gmra.mrb[0].mxu0 %v1111
        %v1183 = vpop.f32.mrb[0].mxu0
        %v1184 = vadd.f32 0.0, %v1183
        %v1185 = vpop.f32.mrb[0].mxu0
        %1186 = vdwg.mxu0
        %v1187 = vld [vmem:[%s37] sm:$0xff]
        %v1188 = vld [vmem:[%s37 + $0x8] sm:$0xff]
        %v1190 = vsel %vm1084, %v1184, 0
        %1192 = vmatprep.subr.mxu0 0.0
        %1193 = vmatpush1.msra.mxu0 %v1187
        %1194 = vmatprep.subr.mxu0 0.0
        %1195 = vmatpush1.msra.mxu0 %v1188
        %1196 = vmatprep.subr.mxu0 0.0
        %1197 = vmatpush1.msra.mxu0 0.0
        %1198 = vmatprep.subr.mxu0 0.0
        %1199 = vmatpush1.msra.mxu0 0.0
        %1200 = vmatprep.subr.mxu0 0.0
        %1201 = vmatpush1.msra.mxu0 0.0
        %1202 = vmatprep.subr.mxu0 0.0
        %1203 = vmatpush1.msra.mxu0 0.0
        %1204 = vmatprep.subr.mxu0 0.0
        %1205 = vmatpush1.msra.mxu0 0.0
        %1206 = vmatprep.subr.mxu0 0.0
        %1207 = vmatpush1.msra.mxu0 0.0
        %1208 = vmatprep.subr.mxu0 0.0
        %1209 = vmatpush1.msra.mxu0 0.0
        %1210 = vmatprep.subr.mxu0 0.0
        %1211 = vmatpush1.msra.mxu0 0.0
        %1212 = vmatprep.subr.mxu0 0.0
        %1213 = vmatpush1.msra.mxu0 0.0
        %1214 = vmatprep.subr.mxu0 0.0
        %1215 = vmatpush1.msra.mxu0 0.0
        %1216 = vmatprep.subr.mxu0 0.0
        %1217 = vmatpush1.msra.mxu0 0.0
        %1218 = vmatprep.subr.mxu0 0.0
        %1219 = vmatpush1.msra.mxu0 0.0
        %1220 = vmatprep.subr.mxu0 0.0
        %1221 = vmatpush1.msra.mxu0 0.0
        %1222 = vmatprep.subr.mxu0 0.0
        %1223 = vmatpush1.msra.mxu0 0.0
        %1224 = vmatprep.subr.mxu0 0.0
        %1225 = vmatpush1.msra.mxu0 0.0
        %1226 = vmatprep.subr.mxu0 0.0
        %1227 = vmatpush1.msra.mxu0 0.0
        %1228 = vmatprep.subr.mxu0 0.0
        %1229 = vmatpush1.msra.mxu0 0.0
        %1230 = vmatprep.subr.mxu0 0.0
        %1231 = vmatpush1.msra.mxu0 0.0
        %1232 = vmatprep.subr.mxu0 0.0
        %1233 = vmatpush1.msra.mxu0 0.0
        %1234 = vmatprep.subr.mxu0 0.0
        %1235 = vmatpush1.msra.mxu0 0.0
        %1236 = vmatprep.subr.mxu0 0.0
        %1237 = vmatpush1.msra.mxu0 0.0
        %1238 = vmatprep.subr.mxu0 0.0
        %1239 = vmatpush1.msra.mxu0 0.0
        %1240 = vmatprep.subr.mxu0 0.0
        %1241 = vmatpush1.msra.mxu0 0.0
        %1242 = vmatprep.subr.mxu0 0.0
        %1243 = vmatpush1.msra.mxu0 0.0
        %1244 = vmatprep.subr.mxu0 0.0
        %1245 = vmatpush1.msra.mxu0 0.0
        %1246 = vmatprep.subr.mxu0 0.0
        %1247 = vmatpush1.msra.mxu0 0.0
        %1248 = vmatprep.subr.mxu0 0.0
        %1249 = vmatpush1.msra.mxu0 0.0
        %1250 = vmatprep.subr.mxu0 0.0
        %1251 = vmatpush1.msra.mxu0 0.0
        %1252 = vmatprep.subr.mxu0 0.0
        %1253 = vmatpush1.msra.mxu0 0.0
        %1254 = vmatprep.subr.mxu0 0.0
        %1255 = vmatpush1.msra.mxu0 0.0
        %1256 = vmatprep.mubr.f32.mxu0 0.0
        %1257 = vmatmul.mubr.f32.gmra.mrb[0].mxu0 %v1190
        %v1258 = vpop.f32.mrb[0].mxu0
        %v1259 = vadd.f32 0.0, %v1258
        %v1260 = vpop.f32.mrb[0].mxu0
        %1261 = vdwg.mxu0
        %v1262 = vstv %s1107
        %v1263 = vmul.f32 %v1262, %v1259
        %v1264 = vadd.f32 %v1106, %v1263
        %1265 = vst.msk [vmem:[#allocation4 + $0x1] sm:$0xf] %vm1097, %v1264
        %v1266 = vld [vmem:[#allocation4] sm:$0xf]
        %v1267 = vld [vmem:[%s11] sm:$0xff]
        %v1268 = vld [vmem:[%s11 + $0x8] sm:$0xff]
        %v1269 = vld [vmem:[%s11 + $0x10] sm:$0xff]
        %v1270 = vld [vmem:[%s11 + $0x18] sm:$0xff]
        %v1271 = vld [vmem:[%s11 + $0x20] sm:$0xff]
        %v1272 = vld [vmem:[%s11 + $0x28] sm:$0xff]
        %v1273 = vld [vmem:[#allocation4 + $0x1] sm:$0xf]
        %s1274 = scalar_lea.vmem %s11, 48
        %v1275 = vld [vmem:[%s1274] sm:$0xff]
        %v1276 = vld [vmem:[%s1274 + $0x8] sm:$0xff]
        %v1277 = vld [vmem:[%s1274 + $0x10] sm:$0xff]
        %v1278 = vld [vmem:[%s1274 + $0x18] sm:$0xff]
        %v1279 = vld [vmem:[%s1274 + $0x20] sm:$0xff]
        %v1280 = vld [vmem:[%s1274 + $0x28] sm:$0xff]
        %vm1281 = vcmask 392192
        %v1283 = vsel %vm1281, %v1273, 0
        %1285 = vmatprep.subr.mxu0 0.0
        %1286 = vmatpush1.msra.mxu0 %v1275
        %1287 = vmatprep.subr.mxu0 0.0
        %1288 = vmatpush1.msra.mxu0 %v1276
        %1289 = vmatprep.subr.mxu0 0.0
        %1290 = vmatpush1.msra.mxu0 %v1277
        %1291 = vmatprep.subr.mxu0 0.0
        %1292 = vmatpush1.msra.mxu0 %v1278
        %1293 = vmatprep.subr.mxu0 0.0
        %1294 = vmatpush1.msra.mxu0 %v1279
        %1295 = vmatprep.subr.mxu0 0.0
        %1296 = vmatpush1.msra.mxu0 %v1280
        %1297 = vmatprep.subr.mxu0 0.0
        %1298 = vmatpush1.msra.mxu0 0.0
        %1299 = vmatprep.subr.mxu0 0.0
        %1300 = vmatpush1.msra.mxu0 0.0
        %1301 = vmatprep.subr.mxu0 0.0
        %1302 = vmatpush1.msra.mxu0 0.0
        %1303 = vmatprep.subr.mxu0 0.0
        %1304 = vmatpush1.msra.mxu0 0.0
        %1305 = vmatprep.subr.mxu0 0.0
        %1306 = vmatpush1.msra.mxu0 0.0
        %1307 = vmatprep.subr.mxu0 0.0
        %1308 = vmatpush1.msra.mxu0 0.0
        %1309 = vmatprep.subr.mxu0 0.0
        %1310 = vmatpush1.msra.mxu0 0.0
        %1311 = vmatprep.subr.mxu0 0.0
        %1312 = vmatpush1.msra.mxu0 0.0
        %1313 = vmatprep.subr.mxu0 0.0
        %1314 = vmatpush1.msra.mxu0 0.0
        %1315 = vmatprep.subr.mxu0 0.0
        %1316 = vmatpush1.msra.mxu0 0.0
        %1317 = vmatprep.subr.mxu0 0.0
        %1318 = vmatpush1.msra.mxu0 0.0
        %1319 = vmatprep.subr.mxu0 0.0
        %1320 = vmatpush1.msra.mxu0 0.0
        %1321 = vmatprep.subr.mxu0 0.0
        %1322 = vmatpush1.msra.mxu0 0.0
        %1323 = vmatprep.subr.mxu0 0.0
        %1324 = vmatpush1.msra.mxu0 0.0
        %1325 = vmatprep.subr.mxu0 0.0
        %1326 = vmatpush1.msra.mxu0 0.0
        %1327 = vmatprep.subr.mxu0 0.0
        %1328 = vmatpush1.msra.mxu0 0.0
        %1329 = vmatprep.subr.mxu0 0.0
        %1330 = vmatpush1.msra.mxu0 0.0
        %1331 = vmatprep.subr.mxu0 0.0
        %1332 = vmatpush1.msra.mxu0 0.0
        %1333 = vmatprep.subr.mxu0 0.0
        %1334 = vmatpush1.msra.mxu0 0.0
        %1335 = vmatprep.subr.mxu0 0.0
        %1336 = vmatpush1.msra.mxu0 0.0
        %1337 = vmatprep.subr.mxu0 0.0
        %1338 = vmatpush1.msra.mxu0 0.0
        %1339 = vmatprep.subr.mxu0 0.0
        %1340 = vmatpush1.msra.mxu0 0.0
        %1341 = vmatprep.subr.mxu0 0.0
        %1342 = vmatpush1.msra.mxu0 0.0
        %1343 = vmatprep.subr.mxu0 0.0
        %1344 = vmatpush1.msra.mxu0 0.0
        %1345 = vmatprep.subr.mxu0 0.0
        %1346 = vmatpush1.msra.mxu0 0.0
        %1347 = vmatprep.subr.mxu0 0.0
        %1348 = vmatpush1.msra.mxu0 0.0
        %1349 = vmatprep.mubr.f32.mxu0 0.0
        %1350 = vmatmul.mubr.f32.gmra.mrb[0].mxu0 %v1283
        %v1351 = vpop.f32.mrb[0].mxu0
        %v1352 = vadd.f32 0.0, %v1351
        %v1353 = vpop.f32.mrb[0].mxu0
        %1354 = vdwg.mxu0
        %v1356 = vsel %vm1281, %v1266, 0
        %1358 = vmatprep.subr.mxu0 0.0
        %1359 = vmatpush1.msra.mxu0 %v1267
        %1360 = vmatprep.subr.mxu0 0.0
        %1361 = vmatpush1.msra.mxu0 %v1268
        %1362 = vmatprep.subr.mxu0 0.0
        %1363 = vmatpush1.msra.mxu0 %v1269
        %1364 = vmatprep.subr.mxu0 0.0
        %1365 = vmatpush1.msra.mxu0 %v1270
        %1366 = vmatprep.subr.mxu0 0.0
        %1367 = vmatpush1.msra.mxu0 %v1271
        %1368 = vmatprep.subr.mxu0 0.0
        %1369 = vmatpush1.msra.mxu0 %v1272
        %1370 = vmatprep.subr.mxu0 0.0
        %1371 = vmatpush1.msra.mxu0 0.0
        %1372 = vmatprep.subr.mxu0 0.0
        %1373 = vmatpush1.msra.mxu0 0.0
        %1374 = vmatprep.subr.mxu0 0.0
        %1375 = vmatpush1.msra.mxu0 0.0
        %1376 = vmatprep.subr.mxu0 0.0
        %1377 = vmatpush1.msra.mxu0 0.0
        %1378 = vmatprep.subr.mxu0 0.0
        %1379 = vmatpush1.msra.mxu0 0.0
        %1380 = vmatprep.subr.mxu0 0.0
        %1381 = vmatpush1.msra.mxu0 0.0
        %1382 = vmatprep.subr.mxu0 0.0
        %1383 = vmatpush1.msra.mxu0 0.0
        %1384 = vmatprep.subr.mxu0 0.0
        %1385 = vmatpush1.msra.mxu0 0.0
        %1386 = vmatprep.subr.mxu0 0.0
        %1387 = vmatpush1.msra.mxu0 0.0
        %1388 = vmatprep.subr.mxu0 0.0
        %1389 = vmatpush1.msra.mxu0 0.0
        %1390 = vmatprep.subr.mxu0 0.0
        %1391 = vmatpush1.msra.mxu0 0.0
        %1392 = vmatprep.subr.mxu0 0.0
        %1393 = vmatpush1.msra.mxu0 0.0
        %1394 = vmatprep.subr.mxu0 0.0
        %1395 = vmatpush1.msra.mxu0 0.0
        %1396 = vmatprep.subr.mxu0 0.0
        %1397 = vmatpush1.msra.mxu0 0.0
        %1398 = vmatprep.subr.mxu0 0.0
        %1399 = vmatpush1.msra.mxu0 0.0
        %1400 = vmatprep.subr.mxu0 0.0
        %1401 = vmatpush1.msra.mxu0 0.0
        %1402 = vmatprep.subr.mxu0 0.0
        %1403 = vmatpush1.msra.mxu0 0.0
        %1404 = vmatprep.subr.mxu0 0.0
        %1405 = vmatpush1.msra.mxu0 0.0
        %1406 = vmatprep.subr.mxu0 0.0
        %1407 = vmatpush1.msra.mxu0 0.0
        %1408 = vmatprep.subr.mxu0 0.0
        %1409 = vmatpush1.msra.mxu0 0.0
        %1410 = vmatprep.subr.mxu0 0.0
        %1411 = vmatpush1.msra.mxu0 0.0
        %1412 = vmatprep.subr.mxu0 0.0
        %1413 = vmatpush1.msra.mxu0 0.0
        %1414 = vmatprep.subr.mxu0 0.0
        %1415 = vmatpush1.msra.mxu0 0.0
        %1416 = vmatprep.subr.mxu0 0.0
        %1417 = vmatpush1.msra.mxu0 0.0
        %1418 = vmatprep.subr.mxu0 0.0
        %1419 = vmatpush1.msra.mxu0 0.0
        %1420 = vmatprep.subr.mxu0 0.0
        %1421 = vmatpush1.msra.mxu0 0.0
        %1422 = vmatprep.mubr.f32.mxu0 0.0
        %1423 = vmatmul.mubr.f32.gmra.mrb[0].mxu0 %v1356
        %v1424 = vpop.f32.mrb[0].mxu0
        %v1425 = vadd.f32 %v1352, %v1424
        %v1426 = vpop.f32.mrb[0].mxu0
        %1427 = vdwg.mxu0
        %v1428 = vld [vmem:[#allocation4 + $0x2] sm:$0xf]
        %s1429 = scalar_lea.vmem %s11, 96
        %v1430 = vld [vmem:[%s1429] sm:$0xff]
        %v1431 = vld [vmem:[%s1429 + $0x8] sm:$0xff]
        %v1432 = vld [vmem:[%s1429 + $0x10] sm:$0xff]
        %v1433 = vld [vmem:[%s1429 + $0x18] sm:$0xff]
        %v1434 = vld [vmem:[%s1429 + $0x20] sm:$0xff]
        %v1435 = vld [vmem:[%s1429 + $0x28] sm:$0xff]
        %v1437 = vsel %vm1281, %v1428, 0
        %1439 = vmatprep.subr.mxu0 0.0
        %1440 = vmatpush1.msra.mxu0 %v1430
        %1441 = vmatprep.subr.mxu0 0.0
        %1442 = vmatpush1.msra.mxu0 %v1431
        %1443 = vmatprep.subr.mxu0 0.0
        %1444 = vmatpush1.msra.mxu0 %v1432
        %1445 = vmatprep.subr.mxu0 0.0
        %1446 = vmatpush1.msra.mxu0 %v1433
        %1447 = vmatprep.subr.mxu0 0.0
        %1448 = vmatpush1.msra.mxu0 %v1434
        %1449 = vmatprep.subr.mxu0 0.0
        %1450 = vmatpush1.msra.mxu0 %v1435
        %1451 = vmatprep.subr.mxu0 0.0
        %1452 = vmatpush1.msra.mxu0 0.0
        %1453 = vmatprep.subr.mxu0 0.0
        %1454 = vmatpush1.msra.mxu0 0.0
        %1455 = vmatprep.subr.mxu0 0.0
        %1456 = vmatpush1.msra.mxu0 0.0
        %1457 = vmatprep.subr.mxu0 0.0
        %1458 = vmatpush1.msra.mxu0 0.0
        %1459 = vmatprep.subr.mxu0 0.0
        %1460 = vmatpush1.msra.mxu0 0.0
        %1461 = vmatprep.subr.mxu0 0.0
        %1462 = vmatpush1.msra.mxu0 0.0
        %1463 = vmatprep.subr.mxu0 0.0
        %1464 = vmatpush1.msra.mxu0 0.0
        %1465 = vmatprep.subr.mxu0 0.0
        %1466 = vmatpush1.msra.mxu0 0.0
        %1467 = vmatprep.subr.mxu0 0.0
        %1468 = vmatpush1.msra.mxu0 0.0
        %1469 = vmatprep.subr.mxu0 0.0
        %1470 = vmatpush1.msra.mxu0 0.0
        %1471 = vmatprep.subr.mxu0 0.0
        %1472 = vmatpush1.msra.mxu0 0.0
        %1473 = vmatprep.subr.mxu0 0.0
        %1474 = vmatpush1.msra.mxu0 0.0
        %1475 = vmatprep.subr.mxu0 0.0
        %1476 = vmatpush1.msra.mxu0 0.0
        %1477 = vmatprep.subr.mxu0 0.0
        %1478 = vmatpush1.msra.mxu0 0.0
        %1479 = vmatprep.subr.mxu0 0.0
        %1480 = vmatpush1.msra.mxu0 0.0
        %1481 = vmatprep.subr.mxu0 0.0
        %1482 = vmatpush1.msra.mxu0 0.0
        %1483 = vmatprep.subr.mxu0 0.0
        %1484 = vmatpush1.msra.mxu0 0.0
        %1485 = vmatprep.subr.mxu0 0.0
        %1486 = vmatpush1.msra.mxu0 0.0
        %1487 = vmatprep.subr.mxu0 0.0
        %1488 = vmatpush1.msra.mxu0 0.0
        %1489 = vmatprep.subr.mxu0 0.0
        %1490 = vmatpush1.msra.mxu0 0.0
        %1491 = vmatprep.subr.mxu0 0.0
        %1492 = vmatpush1.msra.mxu0 0.0
        %1493 = vmatprep.subr.mxu0 0.0
        %1494 = vmatpush1.msra.mxu0 0.0
        %1495 = vmatprep.subr.mxu0 0.0
        %1496 = vmatpush1.msra.mxu0 0.0
        %1497 = vmatprep.subr.mxu0 0.0
        %1498 = vmatpush1.msra.mxu0 0.0
        %1499 = vmatprep.subr.mxu0 0.0
        %1500 = vmatpush1.msra.mxu0 0.0
        %1501 = vmatprep.subr.mxu0 0.0
        %1502 = vmatpush1.msra.mxu0 0.0
        %1503 = vmatprep.mubr.f32.mxu0 0.0
        %1504 = vmatmul.mubr.f32.gmra.mrb[0].mxu0 %v1437
        %v1505 = vpop.f32.mrb[0].mxu0
        %v1506 = vadd.f32 0.0, %v1505
        %v1507 = vpop.f32.mrb[0].mxu0
        %1508 = vdwg.mxu0
        %v1509 = vadd.f32 %v1425, %v1506
        %v1510 = vld [vmem:[%s23] sm:$0x1]
        %v1512 = vlaneseq
        %v1513 = vshrl.u32 %v1512, 7
        %v1514 = vsub.s32 0, %v1513
        %v1515 = vrot.slane %v1510, %v1514
        %v1517 = vadd.f32 %v1509, %v1515
        %v1518 = vmax.f32 %v1517, 0.0
        %s1519 = sld [smem:[#allocation6 + $0x2]]
        %v1520 = vstv %s1519
        %v1521 = vmul.f32 %v1520, %v1101
        %s1522 = sld [smem:[#allocation6 + $0x3]]
        %v1523 = vld [vmem:[%s39] sm:$0xff]
        %vm1524 = vcmask 31744
        %v1526 = vsel %vm1524, %v1523, 0
        %vm1528 = vcmask 1043456
        %v1530 = vsel %vm1528, %v1518, 0
        %1532 = vmatprep.subr.mxu0 0.0
        %1533 = vmatpush1.msra.mxu0 %v1530
        %1534 = vmatprep.subr.mxu0 0.0
        %1535 = vmatpush1.msra.mxu0 0.0
        %1536 = vmatprep.subr.mxu0 0.0
        %1537 = vmatpush1.msra.mxu0 0.0
        %1538 = vmatprep.subr.mxu0 0.0
        %1539 = vmatpush1.msra.mxu0 0.0
        %1540 = vmatprep.subr.mxu0 0.0
        %1541 = vmatpush1.msra.mxu0 0.0
        %1542 = vmatprep.subr.mxu0 0.0
        %1543 = vmatpush1.msra.mxu0 0.0
        %1544 = vmatprep.subr.mxu0 0.0
        %1545 = vmatpush1.msra.mxu0 0.0
        %1546 = vmatprep.subr.mxu0 0.0
        %1547 = vmatpush1.msra.mxu0 0.0
        %1548 = vmatprep.subr.mxu0 0.0
        %1549 = vmatpush1.msra.mxu0 0.0
        %1550 = vmatprep.subr.mxu0 0.0
        %1551 = vmatpush1.msra.mxu0 0.0
        %1552 = vmatprep.subr.mxu0 0.0
        %1553 = vmatpush1.msra.mxu0 0.0
        %1554 = vmatprep.subr.mxu0 0.0
        %1555 = vmatpush1.msra.mxu0 0.0
        %1556 = vmatprep.subr.mxu0 0.0
        %1557 = vmatpush1.msra.mxu0 0.0
        %1558 = vmatprep.subr.mxu0 0.0
        %1559 = vmatpush1.msra.mxu0 0.0
        %1560 = vmatprep.subr.mxu0 0.0
        %1561 = vmatpush1.msra.mxu0 0.0
        %1562 = vmatprep.subr.mxu0 0.0
        %1563 = vmatpush1.msra.mxu0 0.0
        %1564 = vmatprep.subr.mxu0 0.0
        %1565 = vmatpush1.msra.mxu0 0.0
        %1566 = vmatprep.subr.mxu0 0.0
        %1567 = vmatpush1.msra.mxu0 0.0
        %1568 = vmatprep.subr.mxu0 0.0
        %1569 = vmatpush1.msra.mxu0 0.0
        %1570 = vmatprep.subr.mxu0 0.0
        %1571 = vmatpush1.msra.mxu0 0.0
        %1572 = vmatprep.subr.mxu0 0.0
        %1573 = vmatpush1.msra.mxu0 0.0
        %1574 = vmatprep.subr.mxu0 0.0
        %1575 = vmatpush1.msra.mxu0 0.0
        %1576 = vmatprep.subr.mxu0 0.0
        %1577 = vmatpush1.msra.mxu0 0.0
        %1578 = vmatprep.subr.mxu0 0.0
        %1579 = vmatpush1.msra.mxu0 0.0
        %1580 = vmatprep.subr.mxu0 0.0
        %1581 = vmatpush1.msra.mxu0 0.0
        %1582 = vmatprep.subr.mxu0 0.0
        %1583 = vmatpush1.msra.mxu0 0.0
        %1584 = vmatprep.subr.mxu0 0.0
        %1585 = vmatpush1.msra.mxu0 0.0
        %1586 = vmatprep.subr.mxu0 0.0
        %1587 = vmatpush1.msra.mxu0 0.0
        %1588 = vmatprep.subr.mxu0 0.0
        %1589 = vmatpush1.msra.mxu0 0.0
        %1590 = vmatprep.subr.mxu0 0.0
        %1591 = vmatpush1.msra.mxu0 0.0
        %1592 = vmatprep.subr.mxu0 0.0
        %1593 = vmatpush1.msra.mxu0 0.0
        %1594 = vmatprep.subr.mxu0 0.0
        %1595 = vmatpush1.msra.mxu0 0.0
        %1596 = vmatprep.mubr.f32.mxu0 0.0
        %1597 = vmatmul.mubr.f32.gmra.mrb[0].mxu0 %v1526
        %v1598 = vpop.f32.mrb[0].mxu0
        %v1599 = vadd.f32 0.0, %v1598
        %v1600 = vpop.f32.mrb[0].mxu0
        %1601 = vdwg.mxu0
        %v1602 = vld [vmem:[%s41] sm:$0xff]
        %v1603 = vld [vmem:[%s41 + $0x8] sm:$0xff]
        %v1604 = vld [vmem:[%s41 + $0x10] sm:$0xff]
        %v1605 = vld [vmem:[%s41 + $0x18] sm:$0xff]
        %vm1606 = vcmask 261120
        %v1608 = vsel %vm1606, %v1599, 0
        %1610 = vmatprep.subr.mxu0 0.0
        %1611 = vmatpush1.msra.mxu0 %v1602
        %1612 = vmatprep.subr.mxu0 0.0
        %1613 = vmatpush1.msra.mxu0 %v1603
        %1614 = vmatprep.subr.mxu0 0.0
        %1615 = vmatpush1.msra.mxu0 %v1604
        %1616 = vmatprep.subr.mxu0 0.0
        %1617 = vmatpush1.msra.mxu0 %v1605
        %1618 = vmatprep.subr.mxu0 0.0
        %1619 = vmatpush1.msra.mxu0 0.0
        %1620 = vmatprep.subr.mxu0 0.0
        %1621 = vmatpush1.msra.mxu0 0.0
        %1622 = vmatprep.subr.mxu0 0.0
        %1623 = vmatpush1.msra.mxu0 0.0
        %1624 = vmatprep.subr.mxu0 0.0
        %1625 = vmatpush1.msra.mxu0 0.0
        %1626 = vmatprep.subr.mxu0 0.0
        %1627 = vmatpush1.msra.mxu0 0.0
        %1628 = vmatprep.subr.mxu0 0.0
        %1629 = vmatpush1.msra.mxu0 0.0
        %1630 = vmatprep.subr.mxu0 0.0
        %1631 = vmatpush1.msra.mxu0 0.0
        %1632 = vmatprep.subr.mxu0 0.0
        %1633 = vmatpush1.msra.mxu0 0.0
        %1634 = vmatprep.subr.mxu0 0.0
        %1635 = vmatpush1.msra.mxu0 0.0
        %1636 = vmatprep.subr.mxu0 0.0
        %1637 = vmatpush1.msra.mxu0 0.0
        %1638 = vmatprep.subr.mxu0 0.0
        %1639 = vmatpush1.msra.mxu0 0.0
        %1640 = vmatprep.subr.mxu0 0.0
        %1641 = vmatpush1.msra.mxu0 0.0
        %1642 = vmatprep.subr.mxu0 0.0
        %1643 = vmatpush1.msra.mxu0 0.0
        %1644 = vmatprep.subr.mxu0 0.0
        %1645 = vmatpush1.msra.mxu0 0.0
        %1646 = vmatprep.subr.mxu0 0.0
        %1647 = vmatpush1.msra.mxu0 0.0
        %1648 = vmatprep.subr.mxu0 0.0
        %1649 = vmatpush1.msra.mxu0 0.0
        %1650 = vmatprep.subr.mxu0 0.0
        %1651 = vmatpush1.msra.mxu0 0.0
        %1652 = vmatprep.subr.mxu0 0.0
        %1653 = vmatpush1.msra.mxu0 0.0
        %1654 = vmatprep.subr.mxu0 0.0
        %1655 = vmatpush1.msra.mxu0 0.0
        %1656 = vmatprep.subr.mxu0 0.0
        %1657 = vmatpush1.msra.mxu0 0.0
        %1658 = vmatprep.subr.mxu0 0.0
        %1659 = vmatpush1.msra.mxu0 0.0
        %1660 = vmatprep.subr.mxu0 0.0
        %1661 = vmatpush1.msra.mxu0 0.0
        %1662 = vmatprep.subr.mxu0 0.0
        %1663 = vmatpush1.msra.mxu0 0.0
        %1664 = vmatprep.subr.mxu0 0.0
        %1665 = vmatpush1.msra.mxu0 0.0
        %1666 = vmatprep.subr.mxu0 0.0
        %1667 = vmatpush1.msra.mxu0 0.0
        %1668 = vmatprep.subr.mxu0 0.0
        %1669 = vmatpush1.msra.mxu0 0.0
        %1670 = vmatprep.subr.mxu0 0.0
        %1671 = vmatpush1.msra.mxu0 0.0
        %1672 = vmatprep.subr.mxu0 0.0
        %1673 = vmatpush1.msra.mxu0 0.0
        %1674 = vmatprep.mubr.f32.mxu0 0.0
        %1675 = vmatmul.mubr.f32.gmra.mrb[0].mxu0 %v1608
        %v1676 = vpop.f32.mrb[0].mxu0
        %v1677 = vadd.f32 0.0, %v1676
        %v1678 = vpop.f32.mrb[0].mxu0
        %1679 = vdwg.mxu0
        %v1680 = vstv %s1522
        %v1681 = vmul.f32 %v1680, %v1677
        %v1682 = vadd.f32 %v1521, %v1681
        %vm1683 = vcmask 523264
        %1684 = vst.msk [vmem:[#allocation3 + $0x1] sm:$0xff] %vm1683, %v1682
        %v1685 = vld [vmem:[#allocation3] sm:$0xff]
        %v1686 = vld [vmem:[%s13] sm:$0xff]
        %v1687 = vld [vmem:[%s13 + $0x8] sm:$0xff]
        %v1688 = vld [vmem:[%s13 + $0x10] sm:$0xff]
        %v1689 = vld [vmem:[%s13 + $0x18] sm:$0xff]
        %v1690 = vld [vmem:[%s13 + $0x20] sm:$0xff]
        %v1691 = vld [vmem:[%s13 + $0x28] sm:$0xff]
        %v1692 = vld [vmem:[%s13 + $0x30] sm:$0xff]
        %v1693 = vld [vmem:[%s13 + $0x38] sm:$0xff]
        %v1694 = vld [vmem:[%s13 + $0x40] sm:$0xff]
        %v1695 = vld [vmem:[%s13 + $0x48] sm:$0xff]
        %v1696 = vld [vmem:[#allocation3 + $0x1] sm:$0xff]
        %s1697 = scalar_lea.vmem %s13, 80
        %v1698 = vld [vmem:[%s1697] sm:$0xff]
        %v1699 = vld [vmem:[%s1697 + $0x8] sm:$0xff]
        %v1700 = vld [vmem:[%s1697 + $0x10] sm:$0xff]
        %v1701 = vld [vmem:[%s1697 + $0x18] sm:$0xff]
        %v1702 = vld [vmem:[%s1697 + $0x20] sm:$0xff]
        %v1703 = vld [vmem:[%s1697 + $0x28] sm:$0xff]
        %v1704 = vld [vmem:[%s1697 + $0x30] sm:$0xff]
        %v1705 = vld [vmem:[%s1697 + $0x38] sm:$0xff]
        %v1706 = vld [vmem:[%s1697 + $0x40] sm:$0xff]
        %v1707 = vld [vmem:[%s1697 + $0x48] sm:$0xff]
        %v1709 = vsel %vm1091, %v1696, 0
        %1711 = vmatprep.subr.mxu0 0.0
        %1712 = vmatpush1.msra.mxu0 %v1698
        %1713 = vmatprep.subr.mxu0 0.0
        %1714 = vmatpush1.msra.mxu0 %v1699
        %1715 = vmatprep.subr.mxu0 0.0
        %1716 = vmatpush1.msra.mxu0 %v1700
        %1717 = vmatprep.subr.mxu0 0.0
        %1718 = vmatpush1.msra.mxu0 %v1701
        %1719 = vmatprep.subr.mxu0 0.0
        %1720 = vmatpush1.msra.mxu0 %v1702
        %1721 = vmatprep.subr.mxu0 0.0
        %1722 = vmatpush1.msra.mxu0 %v1703
        %1723 = vmatprep.subr.mxu0 0.0
        %1724 = vmatpush1.msra.mxu0 %v1704
        %1725 = vmatprep.subr.mxu0 0.0
        %1726 = vmatpush1.msra.mxu0 %v1705
        %1727 = vmatprep.subr.mxu0 0.0
        %1728 = vmatpush1.msra.mxu0 %v1706
        %1729 = vmatprep.subr.mxu0 0.0
        %1730 = vmatpush1.msra.mxu0 %v1707
        %1731 = vmatprep.subr.mxu0 0.0
        %1732 = vmatpush1.msra.mxu0 0.0
        %1733 = vmatprep.subr.mxu0 0.0
        %1734 = vmatpush1.msra.mxu0 0.0
        %1735 = vmatprep.subr.mxu0 0.0
        %1736 = vmatpush1.msra.mxu0 0.0
        %1737 = vmatprep.subr.mxu0 0.0
        %1738 = vmatpush1.msra.mxu0 0.0
        %1739 = vmatprep.subr.mxu0 0.0
        %1740 = vmatpush1.msra.mxu0 0.0
        %1741 = vmatprep.subr.mxu0 0.0
        %1742 = vmatpush1.msra.mxu0 0.0
        %1743 = vmatprep.subr.mxu0 0.0
        %1744 = vmatpush1.msra.mxu0 0.0
        %1745 = vmatprep.subr.mxu0 0.0
        %1746 = vmatpush1.msra.mxu0 0.0
        %1747 = vmatprep.subr.mxu0 0.0
        %1748 = vmatpush1.msra.mxu0 0.0
        %1749 = vmatprep.subr.mxu0 0.0
        %1750 = vmatpush1.msra.mxu0 0.0
        %1751 = vmatprep.subr.mxu0 0.0
        %1752 = vmatpush1.msra.mxu0 0.0
        %1753 = vmatprep.subr.mxu0 0.0
        %1754 = vmatpush1.msra.mxu0 0.0
        %1755 = vmatprep.subr.mxu0 0.0
        %1756 = vmatpush1.msra.mxu0 0.0
        %1757 = vmatprep.subr.mxu0 0.0
        %1758 = vmatpush1.msra.mxu0 0.0
        %1759 = vmatprep.subr.mxu0 0.0
        %1760 = vmatpush1.msra.mxu0 0.0
        %1761 = vmatprep.subr.mxu0 0.0
        %1762 = vmatpush1.msra.mxu0 0.0
        %1763 = vmatprep.subr.mxu0 0.0
        %1764 = vmatpush1.msra.mxu0 0.0
        %1765 = vmatprep.subr.mxu0 0.0
        %1766 = vmatpush1.msra.mxu0 0.0
        %1767 = vmatprep.subr.mxu0 0.0
        %1768 = vmatpush1.msra.mxu0 0.0
        %1769 = vmatprep.subr.mxu0 0.0
        %1770 = vmatpush1.msra.mxu0 0.0
        %1771 = vmatprep.subr.mxu0 0.0
        %1772 = vmatpush1.msra.mxu0 0.0
        %1773 = vmatprep.subr.mxu0 0.0
        %1774 = vmatpush1.msra.mxu0 0.0
        %1775 = vmatprep.mubr.f32.mxu0 0.0
        %1776 = vmatmul.mubr.f32.gmra.mrb[0].mxu0 %v1709
        %v1777 = vpop.f32.mrb[0].mxu0
        %v1778 = vadd.f32 0.0, %v1777
        %v1779 = vpop.f32.mrb[0].mxu0
        %1780 = vdwg.mxu0
        %v1782 = vsel %vm1091, %v1685, 0
        %1784 = vmatprep.subr.mxu0 0.0
        %1785 = vmatpush1.msra.mxu0 %v1686
        %1786 = vmatprep.subr.mxu0 0.0
        %1787 = vmatpush1.msra.mxu0 %v1687
        %1788 = vmatprep.subr.mxu0 0.0
        %1789 = vmatpush1.msra.mxu0 %v1688
        %1790 = vmatprep.subr.mxu0 0.0
        %1791 = vmatpush1.msra.mxu0 %v1689
        %1792 = vmatprep.subr.mxu0 0.0
        %1793 = vmatpush1.msra.mxu0 %v1690
        %1794 = vmatprep.subr.mxu0 0.0
        %1795 = vmatpush1.msra.mxu0 %v1691
        %1796 = vmatprep.subr.mxu0 0.0
        %1797 = vmatpush1.msra.mxu0 %v1692
        %1798 = vmatprep.subr.mxu0 0.0
        %1799 = vmatpush1.msra.mxu0 %v1693
        %1800 = vmatprep.subr.mxu0 0.0
        %1801 = vmatpush1.msra.mxu0 %v1694
        %1802 = vmatprep.subr.mxu0 0.0
        %1803 = vmatpush1.msra.mxu0 %v1695
        %1804 = vmatprep.subr.mxu0 0.0
        %1805 = vmatpush1.msra.mxu0 0.0
        %1806 = vmatprep.subr.mxu0 0.0
        %1807 = vmatpush1.msra.mxu0 0.0
        %1808 = vmatprep.subr.mxu0 0.0
        %1809 = vmatpush1.msra.mxu0 0.0
        %1810 = vmatprep.subr.mxu0 0.0
        %1811 = vmatpush1.msra.mxu0 0.0
        %1812 = vmatprep.subr.mxu0 0.0
        %1813 = vmatpush1.msra.mxu0 0.0
        %1814 = vmatprep.subr.mxu0 0.0
        %1815 = vmatpush1.msra.mxu0 0.0
        %1816 = vmatprep.subr.mxu0 0.0
        %1817 = vmatpush1.msra.mxu0 0.0
        %1818 = vmatprep.subr.mxu0 0.0
        %1819 = vmatpush1.msra.mxu0 0.0
        %1820 = vmatprep.subr.mxu0 0.0
        %1821 = vmatpush1.msra.mxu0 0.0
        %1822 = vmatprep.subr.mxu0 0.0
        %1823 = vmatpush1.msra.mxu0 0.0
        %1824 = vmatprep.subr.mxu0 0.0
        %1825 = vmatpush1.msra.mxu0 0.0
        %1826 = vmatprep.subr.mxu0 0.0
        %1827 = vmatpush1.msra.mxu0 0.0
        %1828 = vmatprep.subr.mxu0 0.0
        %1829 = vmatpush1.msra.mxu0 0.0
        %1830 = vmatprep.subr.mxu0 0.0
        %1831 = vmatpush1.msra.mxu0 0.0
        %1832 = vmatprep.subr.mxu0 0.0
        %1833 = vmatpush1.msra.mxu0 0.0
        %1834 = vmatprep.subr.mxu0 0.0
        %1835 = vmatpush1.msra.mxu0 0.0
        %1836 = vmatprep.subr.mxu0 0.0
        %1837 = vmatpush1.msra.mxu0 0.0
        %1838 = vmatprep.subr.mxu0 0.0
        %1839 = vmatpush1.msra.mxu0 0.0
        %1840 = vmatprep.subr.mxu0 0.0
        %1841 = vmatpush1.msra.mxu0 0.0
        %1842 = vmatprep.subr.mxu0 0.0
        %1843 = vmatpush1.msra.mxu0 0.0
        %1844 = vmatprep.subr.mxu0 0.0
        %1845 = vmatpush1.msra.mxu0 0.0
        %1846 = vmatprep.subr.mxu0 0.0
        %1847 = vmatpush1.msra.mxu0 0.0
        %1848 = vmatprep.mubr.f32.mxu0 0.0
        %1849 = vmatmul.mubr.f32.gmra.mrb[0].mxu0 %v1782
        %v1850 = vpop.f32.mrb[0].mxu0
        %v1851 = vadd.f32 %v1778, %v1850
        %v1852 = vpop.f32.mrb[0].mxu0
        %1853 = vdwg.mxu0
        %v1854 = vld [vmem:[#allocation3 + $0x2] sm:$0xff]
        %s1855 = scalar_lea.vmem %s13, 160
        %v1856 = vld [vmem:[%s1855] sm:$0xff]
        %v1857 = vld [vmem:[%s1855 + $0x8] sm:$0xff]
        %v1858 = vld [vmem:[%s1855 + $0x10] sm:$0xff]
        %v1859 = vld [vmem:[%s1855 + $0x18] sm:$0xff]
        %v1860 = vld [vmem:[%s1855 + $0x20] sm:$0xff]
        %v1861 = vld [vmem:[%s1855 + $0x28] sm:$0xff]
        %v1862 = vld [vmem:[%s1855 + $0x30] sm:$0xff]
        %v1863 = vld [vmem:[%s1855 + $0x38] sm:$0xff]
        %v1864 = vld [vmem:[%s1855 + $0x40] sm:$0xff]
        %v1865 = vld [vmem:[%s1855 + $0x48] sm:$0xff]
        %v1867 = vsel %vm1091, %v1854, 0
        %1869 = vmatprep.subr.mxu0 0.0
        %1870 = vmatpush1.msra.mxu0 %v1856
        %1871 = vmatprep.subr.mxu0 0.0
        %1872 = vmatpush1.msra.mxu0 %v1857
        %1873 = vmatprep.subr.mxu0 0.0
        %1874 = vmatpush1.msra.mxu0 %v1858
        %1875 = vmatprep.subr.mxu0 0.0
        %1876 = vmatpush1.msra.mxu0 %v1859
        %1877 = vmatprep.subr.mxu0 0.0
        %1878 = vmatpush1.msra.mxu0 %v1860
        %1879 = vmatprep.subr.mxu0 0.0
        %1880 = vmatpush1.msra.mxu0 %v1861
        %1881 = vmatprep.subr.mxu0 0.0
        %1882 = vmatpush1.msra.mxu0 %v1862
        %1883 = vmatprep.subr.mxu0 0.0
        %1884 = vmatpush1.msra.mxu0 %v1863
        %1885 = vmatprep.subr.mxu0 0.0
        %1886 = vmatpush1.msra.mxu0 %v1864
        %1887 = vmatprep.subr.mxu0 0.0
        %1888 = vmatpush1.msra.mxu0 %v1865
        %1889 = vmatprep.subr.mxu0 0.0
        %1890 = vmatpush1.msra.mxu0 0.0
        %1891 = vmatprep.subr.mxu0 0.0
        %1892 = vmatpush1.msra.mxu0 0.0
        %1893 = vmatprep.subr.mxu0 0.0
        %1894 = vmatpush1.msra.mxu0 0.0
        %1895 = vmatprep.subr.mxu0 0.0
        %1896 = vmatpush1.msra.mxu0 0.0
        %1897 = vmatprep.subr.mxu0 0.0
        %1898 = vmatpush1.msra.mxu0 0.0
        %1899 = vmatprep.subr.mxu0 0.0
        %1900 = vmatpush1.msra.mxu0 0.0
        %1901 = vmatprep.subr.mxu0 0.0
        %1902 = vmatpush1.msra.mxu0 0.0
        %1903 = vmatprep.subr.mxu0 0.0
        %1904 = vmatpush1.msra.mxu0 0.0
        %1905 = vmatprep.subr.mxu0 0.0
        %1906 = vmatpush1.msra.mxu0 0.0
        %1907 = vmatprep.subr.mxu0 0.0
        %1908 = vmatpush1.msra.mxu0 0.0
        %1909 = vmatprep.subr.mxu0 0.0
        %1910 = vmatpush1.msra.mxu0 0.0
        %1911 = vmatprep.subr.mxu0 0.0
        %1912 = vmatpush1.msra.mxu0 0.0
        %1913 = vmatprep.subr.mxu0 0.0
        %1914 = vmatpush1.msra.mxu0 0.0
        %1915 = vmatprep.subr.mxu0 0.0
        %1916 = vmatpush1.msra.mxu0 0.0
        %1917 = vmatprep.subr.mxu0 0.0
        %1918 = vmatpush1.msra.mxu0 0.0
        %1919 = vmatprep.subr.mxu0 0.0
        %1920 = vmatpush1.msra.mxu0 0.0
        %1921 = vmatprep.subr.mxu0 0.0
        %1922 = vmatpush1.msra.mxu0 0.0
        %1923 = vmatprep.subr.mxu0 0.0
        %1924 = vmatpush1.msra.mxu0 0.0
        %1925 = vmatprep.subr.mxu0 0.0
        %1926 = vmatpush1.msra.mxu0 0.0
        %1927 = vmatprep.subr.mxu0 0.0
        %1928 = vmatpush1.msra.mxu0 0.0
        %1929 = vmatprep.subr.mxu0 0.0
        %1930 = vmatpush1.msra.mxu0 0.0
        %1931 = vmatprep.subr.mxu0 0.0
        %1932 = vmatpush1.msra.mxu0 0.0
        %1933 = vmatprep.mubr.f32.mxu0 0.0
        %1934 = vmatmul.mubr.f32.gmra.mrb[0].mxu0 %v1867
        %v1935 = vpop.f32.mrb[0].mxu0
        %v1936 = vadd.f32 0.0, %v1935
        %v1937 = vpop.f32.mrb[0].mxu0
        %1938 = vdwg.mxu0
        %v1939 = vadd.f32 %v1851, %v1936
        %v1940 = vld [vmem:[%s25] sm:$0x1]
        %v1942 = vlaneseq
        %v1943 = vshrl.u32 %v1942, 7
        %v1944 = vsub.s32 0, %v1943
        %v1945 = vrot.slane %v1940, %v1944
        %v1947 = vadd.f32 %v1939, %v1945
        %v1948 = vmax.f32 %v1947, 0.0
        %s1949 = sld [smem:[#allocation6 + $0x4]]
        %v1950 = vstv %s1949
        %v1951 = vmul.f32 %v1950, %v1099
        %v1952 = vmul.f32 %v1950, %v1100
        %s1953 = sld [smem:[#allocation6 + $0x5]]
        %v1954 = vld [vmem:[%s43] sm:$0xff]
        %v1955 = vld [vmem:[%s43 + $0x8] sm:$0xff]
        %vm1956 = vcmask 64512
        %v1958 = vsel %vm1956, %v1954, 0
        %v1961 = vsel %vm1956, %v1955, 0
        %1963 = vmatprep.subr.mxu0 0.0
        %1964 = vmatpush1.msra.mxu0 %v1948
        %1965 = vmatprep.subr.mxu0 0.0
        %1966 = vmatpush1.msra.mxu0 0.0
        %1967 = vmatprep.subr.mxu0 0.0
        %1968 = vmatpush1.msra.mxu0 0.0
        %1969 = vmatprep.subr.mxu0 0.0
        %1970 = vmatpush1.msra.mxu0 0.0
        %1971 = vmatprep.subr.mxu0 0.0
        %1972 = vmatpush1.msra.mxu0 0.0
        %1973 = vmatprep.subr.mxu0 0.0
        %1974 = vmatpush1.msra.mxu0 0.0
        %1975 = vmatprep.subr.mxu0 0.0
        %1976 = vmatpush1.msra.mxu0 0.0
        %1977 = vmatprep.subr.mxu0 0.0
        %1978 = vmatpush1.msra.mxu0 0.0
        %1979 = vmatprep.subr.mxu0 0.0
        %1980 = vmatpush1.msra.mxu0 0.0
        %1981 = vmatprep.subr.mxu0 0.0
        %1982 = vmatpush1.msra.mxu0 0.0
        %1983 = vmatprep.subr.mxu0 0.0
        %1984 = vmatpush1.msra.mxu0 0.0
        %1985 = vmatprep.subr.mxu0 0.0
        %1986 = vmatpush1.msra.mxu0 0.0
        %1987 = vmatprep.subr.mxu0 0.0
        %1988 = vmatpush1.msra.mxu0 0.0
        %1989 = vmatprep.subr.mxu0 0.0
        %1990 = vmatpush1.msra.mxu0 0.0
        %1991 = vmatprep.subr.mxu0 0.0
        %1992 = vmatpush1.msra.mxu0 0.0
        %1993 = vmatprep.subr.mxu0 0.0
        %1994 = vmatpush1.msra.mxu0 0.0
        %1995 = vmatprep.subr.mxu0 0.0
        %1996 = vmatpush1.msra.mxu0 0.0
        %1997 = vmatprep.subr.mxu0 0.0
        %1998 = vmatpush1.msra.mxu0 0.0
        %1999 = vmatprep.subr.mxu0 0.0
        %2000 = vmatpush1.msra.mxu0 0.0
        %2001 = vmatprep.subr.mxu0 0.0
        %2002 = vmatpush1.msra.mxu0 0.0
        %2003 = vmatprep.subr.mxu0 0.0
        %2004 = vmatpush1.msra.mxu0 0.0
        %2005 = vmatprep.subr.mxu0 0.0
        %2006 = vmatpush1.msra.mxu0 0.0
        %2007 = vmatprep.subr.mxu0 0.0
        %2008 = vmatpush1.msra.mxu0 0.0
        %2009 = vmatprep.subr.mxu0 0.0
        %2010 = vmatpush1.msra.mxu0 0.0
        %2011 = vmatprep.subr.mxu0 0.0
        %2012 = vmatpush1.msra.mxu0 0.0
        %2013 = vmatprep.subr.mxu0 0.0
        %2014 = vmatpush1.msra.mxu0 0.0
        %2015 = vmatprep.subr.mxu0 0.0
        %2016 = vmatpush1.msra.mxu0 0.0
        %2017 = vmatprep.subr.mxu0 0.0
        %2018 = vmatpush1.msra.mxu0 0.0
        %2019 = vmatprep.subr.mxu0 0.0
        %2020 = vmatpush1.msra.mxu0 0.0
        %2021 = vmatprep.subr.mxu0 0.0
        %2022 = vmatpush1.msra.mxu0 0.0
        %2023 = vmatprep.subr.mxu0 0.0
        %2024 = vmatpush1.msra.mxu0 0.0
        %2025 = vmatprep.subr.mxu0 0.0
        %2026 = vmatpush1.msra.mxu0 0.0
        %2027 = vmatprep.mubr.f32.mxu0 0.0
        %2028 = vmatmul.mubr.f32.gmra.mrb[0].mxu0 %v1958
        %v2029 = vpop.f32.mrb[0].mxu0
        %v2030 = vadd.f32 0.0, %v2029
        %v2031 = vpop.f32.mrb[0].mxu0
        %2032 = vmatprep.mubr.f32.mxu0 0.0
        %2033 = vmatmul.mubr.f32.gmra.mrb[0].mxu0 %v1961
        %v2034 = vpop.f32.mrb[0].mxu0
        %v2035 = vadd.f32 0.0, %v2034
        %v2036 = vpop.f32.mrb[0].mxu0
        %2037 = vdwg.mxu0
        %v2038 = vld [vmem:[%s45] sm:$0xff]
        %v2039 = vld [vmem:[%s45 + $0x8] sm:$0xff]
        %v2040 = vld [vmem:[%s45 + $0x10] sm:$0xff]
        %v2041 = vld [vmem:[%s45 + $0x18] sm:$0xff]
        %v2042 = vld [vmem:[%s45 + $0x20] sm:$0xff]
        %v2043 = vld [vmem:[%s45 + $0x28] sm:$0xff]
        %v2044 = vld [vmem:[%s45 + $0x30] sm:$0xff]
        %v2045 = vld [vmem:[%s45 + $0x38] sm:$0xff]
        %v2047 = vsel %vm1683, %v2030, 0
        %v2050 = vsel %vm1683, %v2035, 0
        %2052 = vmatprep.subr.mxu0 0.0
        %2053 = vmatpush1.msra.mxu0 %v2038
        %2054 = vmatprep.subr.mxu0 0.0
        %2055 = vmatpush1.msra.mxu0 %v2039
        %2056 = vmatprep.subr.mxu0 0.0
        %2057 = vmatpush1.msra.mxu0 %v2040
        %2058 = vmatprep.subr.mxu0 0.0
        %2059 = vmatpush1.msra.mxu0 %v2041
        %2060 = vmatprep.subr.mxu0 0.0
        %2061 = vmatpush1.msra.mxu0 %v2042
        %2062 = vmatprep.subr.mxu0 0.0
        %2063 = vmatpush1.msra.mxu0 %v2043
        %2064 = vmatprep.subr.mxu0 0.0
        %2065 = vmatpush1.msra.mxu0 %v2044
        %2066 = vmatprep.subr.mxu0 0.0
        %2067 = vmatpush1.msra.mxu0 %v2045
        %2068 = vmatprep.subr.mxu0 0.0
        %2069 = vmatpush1.msra.mxu0 0.0
        %2070 = vmatprep.subr.mxu0 0.0
        %2071 = vmatpush1.msra.mxu0 0.0
        %2072 = vmatprep.subr.mxu0 0.0
        %2073 = vmatpush1.msra.mxu0 0.0
        %2074 = vmatprep.subr.mxu0 0.0
        %2075 = vmatpush1.msra.mxu0 0.0
        %2076 = vmatprep.subr.mxu0 0.0
        %2077 = vmatpush1.msra.mxu0 0.0
        %2078 = vmatprep.subr.mxu0 0.0
        %2079 = vmatpush1.msra.mxu0 0.0
        %2080 = vmatprep.subr.mxu0 0.0
        %2081 = vmatpush1.msra.mxu0 0.0
        %2082 = vmatprep.subr.mxu0 0.0
        %2083 = vmatpush1.msra.mxu0 0.0
        %2084 = vmatprep.subr.mxu0 0.0
        %2085 = vmatpush1.msra.mxu0 0.0
        %2086 = vmatprep.subr.mxu0 0.0
        %2087 = vmatpush1.msra.mxu0 0.0
        %2088 = vmatprep.subr.mxu0 0.0
        %2089 = vmatpush1.msra.mxu0 0.0
        %2090 = vmatprep.subr.mxu0 0.0
        %2091 = vmatpush1.msra.mxu0 0.0
        %2092 = vmatprep.subr.mxu0 0.0
        %2093 = vmatpush1.msra.mxu0 0.0
        %2094 = vmatprep.subr.mxu0 0.0
        %2095 = vmatpush1.msra.mxu0 0.0
        %2096 = vmatprep.subr.mxu0 0.0
        %2097 = vmatpush1.msra.mxu0 0.0
        %2098 = vmatprep.subr.mxu0 0.0
        %2099 = vmatpush1.msra.mxu0 0.0
        %2100 = vmatprep.subr.mxu0 0.0
        %2101 = vmatpush1.msra.mxu0 0.0
        %2102 = vmatprep.subr.mxu0 0.0
        %2103 = vmatpush1.msra.mxu0 0.0
        %2104 = vmatprep.subr.mxu0 0.0
        %2105 = vmatpush1.msra.mxu0 0.0
        %2106 = vmatprep.subr.mxu0 0.0
        %2107 = vmatpush1.msra.mxu0 0.0
        %2108 = vmatprep.subr.mxu0 0.0
        %2109 = vmatpush1.msra.mxu0 0.0
        %2110 = vmatprep.subr.mxu0 0.0
        %2111 = vmatpush1.msra.mxu0 0.0
        %2112 = vmatprep.subr.mxu0 0.0
        %2113 = vmatpush1.msra.mxu0 0.0
        %2114 = vmatprep.subr.mxu0 0.0
        %2115 = vmatpush1.msra.mxu0 0.0
        %2116 = vmatprep.mubr.f32.mxu0 0.0
        %2117 = vmatmul.mubr.f32.gmra.mrb[0].mxu0 %v2047
        %v2118 = vpop.f32.mrb[0].mxu0
        %v2119 = vadd.f32 0.0, %v2118
        %v2120 = vpop.f32.mrb[0].mxu0
        %2121 = vmatprep.mubr.f32.mxu0 0.0
        %2122 = vmatmul.mubr.f32.gmra.mrb[0].mxu0 %v2050
        %v2123 = vpop.f32.mrb[0].mxu0
        %v2124 = vadd.f32 0.0, %v2123
        %v2125 = vpop.f32.mrb[0].mxu0
        %2126 = vdwg.mxu0
        %v2127 = vstv %s1953
        %v2128 = vmul.f32 %v2127, %v2119
        %v2129 = vmul.f32 %v2127, %v2124
        %v2130 = vadd.f32 %v1951, %v2128
        %v2131 = vadd.f32 %v1952, %v2129
        %vm2134 = vcmask 1040384
        %v2135 = vrot.slane %v2130, 7
        %v2136 = vrot.slane %v2131, 7
        %v2137 = vsel %vm2134, %v2135, %v2136
        %2141 = vst [vmem:[#allocation2] sm:$0xfe] %v2135
        %2142 = vst [vmem:[#allocation2 + $0x10] sm:$0xff] %v2137
        %2143 = vst [vmem:[#allocation2 + $0x20] sm:$0x1] %v2136
        %v2144 = vld [vmem:[#allocation2] sm:$0xff]
        %v2145 = vld [vmem:[#allocation2 + $0x8] sm:$0xff]
        %v2146 = vld [vmem:[#allocation2 + $0x10] sm:$0xff]
        %v2147 = vld [vmem:[#allocation2 + $0x18] sm:$0xff]
        %v2148 = vld [vmem:[%s15] sm:$0xff]
        %v2149 = vld [vmem:[%s15 + $0x8] sm:$0xff]
        %v2150 = vld [vmem:[%s15 + $0x10] sm:$0xff]
        %v2151 = vld [vmem:[%s15 + $0x18] sm:$0xff]
        %v2152 = vld [vmem:[%s15 + $0x20] sm:$0xff]
        %v2153 = vld [vmem:[%s15 + $0x28] sm:$0xff]
        %v2154 = vld [vmem:[%s15 + $0x30] sm:$0xff]
        %v2155 = vld [vmem:[%s15 + $0x38] sm:$0xff]
        %v2156 = vld [vmem:[%s15 + $0x40] sm:$0xff]
        %v2157 = vld [vmem:[%s15 + $0x48] sm:$0xff]
        %v2158 = vld [vmem:[%s15 + $0x50] sm:$0xff]
        %v2159 = vld [vmem:[%s15 + $0x58] sm:$0xff]
        %v2160 = vld [vmem:[%s15 + $0x60] sm:$0xff]
        %v2161 = vld [vmem:[%s15 + $0x68] sm:$0xff]
        %v2162 = vld [vmem:[%s15 + $0x70] sm:$0xff]
        %v2163 = vld [vmem:[%s15 + $0x78] sm:$0xff]
        %v2164 = vld [vmem:[%s15 + $0x80] sm:$0xff]
        %v2165 = vld [vmem:[%s15 + $0x88] sm:$0xff]
        %v2166 = vld [vmem:[#allocation2] sm:$0xfe]
        %v2167 = vld [vmem:[#allocation2 + $0x8] sm:$0xfe]
        %v2168 = vld [vmem:[#allocation2 + $0x20] sm:$0x1]
        %v2169 = vld [vmem:[#allocation2 + $0x28] sm:$0x1]
        %s2170 = scalar_lea.vmem %s15, 144
        %v2171 = vld [vmem:[%s2170] sm:$0xff]
        %v2172 = vld [vmem:[%s2170 + $0x8] sm:$0xff]
        %v2173 = vld [vmem:[%s2170 + $0x10] sm:$0xff]
        %v2174 = vld [vmem:[%s2170 + $0x18] sm:$0xff]
        %v2175 = vld [vmem:[%s2170 + $0x20] sm:$0xff]
        %v2176 = vld [vmem:[%s2170 + $0x28] sm:$0xff]
        %v2177 = vld [vmem:[%s2170 + $0x30] sm:$0xff]
        %v2178 = vld [vmem:[%s2170 + $0x38] sm:$0xff]
        %v2179 = vld [vmem:[%s2170 + $0x40] sm:$0xff]
        %v2180 = vld [vmem:[%s2170 + $0x48] sm:$0xff]
        %v2181 = vld [vmem:[%s2170 + $0x50] sm:$0xff]
        %v2182 = vld [vmem:[%s2170 + $0x58] sm:$0xff]
        %v2183 = vld [vmem:[%s2170 + $0x60] sm:$0xff]
        %v2184 = vld [vmem:[%s2170 + $0x68] sm:$0xff]
        %v2185 = vld [vmem:[%s2170 + $0x70] sm:$0xff]
        %v2186 = vld [vmem:[%s2170 + $0x78] sm:$0xff]
        %v2187 = vld [vmem:[%s2170 + $0x80] sm:$0xff]
        %v2188 = vld [vmem:[%s2170 + $0x88] sm:$0xff]
        %vm2195 = vcmask 1046528
        %v2196 = vrot.slane %v2166, 1
        %v2197 = vrot.slane %v2146, 1
        %v2198 = vsel %vm2195, %v2196, %v2197
        %v2199 = vrot.slane %v2167, 1
        %v2200 = vrot.slane %v2147, 1
        %v2201 = vsel %vm2195, %v2199, %v2200
        %v2202 = vrot.slane %v2168, 1
        %v2203 = vsel %vm2195, %v2197, %v2202
        %v2204 = vrot.slane %v2169, 1
        %v2205 = vsel %vm2195, %v2200, %v2204
        %v2208 = vsel %vm1084, %v2201, 0
        %v2210 = vsel %vm1084, %v2205, 0
        %2212 = vmatprep.subr.mxu0 0.0
        %2213 = vmatpush1.msra.mxu0 %v2171
        %2214 = vmatprep.subr.mxu0 0.0
        %2215 = vmatpush1.msra.mxu0 %v2172
        %2216 = vmatprep.subr.mxu0 0.0
        %2217 = vmatpush1.msra.mxu0 %v2173
        %2218 = vmatprep.subr.mxu0 0.0
        %2219 = vmatpush1.msra.mxu0 %v2174
        %2220 = vmatprep.subr.mxu0 0.0
        %2221 = vmatpush1.msra.mxu0 %v2175
        %2222 = vmatprep.subr.mxu0 0.0
        %2223 = vmatpush1.msra.mxu0 %v2176
        %2224 = vmatprep.subr.mxu0 0.0
        %2225 = vmatpush1.msra.mxu0 %v2177
        %2226 = vmatprep.subr.mxu0 0.0
        %2227 = vmatpush1.msra.mxu0 %v2178
        %2228 = vmatprep.subr.mxu0 0.0
        %2229 = vmatpush1.msra.mxu0 %v2179
        %2230 = vmatprep.subr.mxu0 0.0
        %2231 = vmatpush1.msra.mxu0 %v2180
        %2232 = vmatprep.subr.mxu0 0.0
        %2233 = vmatpush1.msra.mxu0 %v2181
        %2234 = vmatprep.subr.mxu0 0.0
        %2235 = vmatpush1.msra.mxu0 %v2182
        %2236 = vmatprep.subr.mxu0 0.0
        %2237 = vmatpush1.msra.mxu0 %v2183
        %2238 = vmatprep.subr.mxu0 0.0
        %2239 = vmatpush1.msra.mxu0 %v2184
        %2240 = vmatprep.subr.mxu0 0.0
        %2241 = vmatpush1.msra.mxu0 %v2185
        %2242 = vmatprep.subr.mxu0 0.0
        %2243 = vmatpush1.msra.mxu0 %v2186
        %2244 = vmatprep.subr.mxu0 0.0
        %2245 = vmatpush1.msra.mxu0 %v2187
        %2246 = vmatprep.subr.mxu0 0.0
        %2247 = vmatpush1.msra.mxu0 %v2188
        %2248 = vmatprep.subr.mxu0 0.0
        %2249 = vmatpush1.msra.mxu0 0.0
        %2250 = vmatprep.subr.mxu0 0.0
        %2251 = vmatpush1.msra.mxu0 0.0
        %2252 = vmatprep.subr.mxu0 0.0
        %2253 = vmatpush1.msra.mxu0 0.0
        %2254 = vmatprep.subr.mxu0 0.0
        %2255 = vmatpush1.msra.mxu0 0.0
        %2256 = vmatprep.subr.mxu0 0.0
        %2257 = vmatpush1.msra.mxu0 0.0
        %2258 = vmatprep.subr.mxu0 0.0
        %2259 = vmatpush1.msra.mxu0 0.0
        %2260 = vmatprep.subr.mxu0 0.0
        %2261 = vmatpush1.msra.mxu0 0.0
        %2262 = vmatprep.subr.mxu0 0.0
        %2263 = vmatpush1.msra.mxu0 0.0
        %2264 = vmatprep.subr.mxu0 0.0
        %2265 = vmatpush1.msra.mxu0 0.0
        %2266 = vmatprep.subr.mxu0 0.0
        %2267 = vmatpush1.msra.mxu0 0.0
        %2268 = vmatprep.subr.mxu0 0.0
        %2269 = vmatpush1.msra.mxu0 0.0
        %2270 = vmatprep.subr.mxu0 0.0
        %2271 = vmatpush1.msra.mxu0 0.0
        %2272 = vmatprep.subr.mxu0 0.0
        %2273 = vmatpush1.msra.mxu0 0.0
        %2274 = vmatprep.subr.mxu0 0.0
        %2275 = vmatpush1.msra.mxu0 0.0
        %2276 = vmatprep.mubr.f32.mxu0 %v2208
        %2277 = vmatmul.mubr.f32.gmra.mrb[0].mxu0 %v2198
        %v2278 = vpop.f32.mrb[0].mxu0
        %v2279 = vadd.f32 0.0, %v2278
        %v2280 = vpop.f32.mrb[0].mxu0
        %2281 = vmatprep.mubr.f32.mxu0 %v2210
        %2282 = vmatmul.mubr.f32.gmra.mrb[0].mxu0 %v2203
        %v2283 = vpop.f32.mrb[0].mxu0
        %v2284 = vadd.f32 0.0, %v2283
        %v2285 = vpop.f32.mrb[0].mxu0
        %2286 = vdwg.mxu0
        %v2288 = vsel %vm1084, %v2145, 0
        %v2290 = vsel %vm1084, %v2147, 0
        %2292 = vmatprep.subr.mxu0 0.0
        %2293 = vmatpush1.msra.mxu0 %v2148
        %2294 = vmatprep.subr.mxu0 0.0
        %2295 = vmatpush1.msra.mxu0 %v2149
        %2296 = vmatprep.subr.mxu0 0.0
        %2297 = vmatpush1.msra.mxu0 %v2150
        %2298 = vmatprep.subr.mxu0 0.0
        %2299 = vmatpush1.msra.mxu0 %v2151
        %2300 = vmatprep.subr.mxu0 0.0
        %2301 = vmatpush1.msra.mxu0 %v2152
        %2302 = vmatprep.subr.mxu0 0.0
        %2303 = vmatpush1.msra.mxu0 %v2153
        %2304 = vmatprep.subr.mxu0 0.0
        %2305 = vmatpush1.msra.mxu0 %v2154
        %2306 = vmatprep.subr.mxu0 0.0
        %2307 = vmatpush1.msra.mxu0 %v2155
        %2308 = vmatprep.subr.mxu0 0.0
        %2309 = vmatpush1.msra.mxu0 %v2156
        %2310 = vmatprep.subr.mxu0 0.0
        %2311 = vmatpush1.msra.mxu0 %v2157
        %2312 = vmatprep.subr.mxu0 0.0
        %2313 = vmatpush1.msra.mxu0 %v2158
        %2314 = vmatprep.subr.mxu0 0.0
        %2315 = vmatpush1.msra.mxu0 %v2159
        %2316 = vmatprep.subr.mxu0 0.0
        %2317 = vmatpush1.msra.mxu0 %v2160
        %2318 = vmatprep.subr.mxu0 0.0
        %2319 = vmatpush1.msra.mxu0 %v2161
        %2320 = vmatprep.subr.mxu0 0.0
        %2321 = vmatpush1.msra.mxu0 %v2162
        %2322 = vmatprep.subr.mxu0 0.0
        %2323 = vmatpush1.msra.mxu0 %v2163
        %2324 = vmatprep.subr.mxu0 0.0
        %2325 = vmatpush1.msra.mxu0 %v2164
        %2326 = vmatprep.subr.mxu0 0.0
        %2327 = vmatpush1.msra.mxu0 %v2165
        %2328 = vmatprep.subr.mxu0 0.0
        %2329 = vmatpush1.msra.mxu0 0.0
        %2330 = vmatprep.subr.mxu0 0.0
        %2331 = vmatpush1.msra.mxu0 0.0
        %2332 = vmatprep.subr.mxu0 0.0
        %2333 = vmatpush1.msra.mxu0 0.0
        %2334 = vmatprep.subr.mxu0 0.0
        %2335 = vmatpush1.msra.mxu0 0.0
        %2336 = vmatprep.subr.mxu0 0.0
        %2337 = vmatpush1.msra.mxu0 0.0
        %2338 = vmatprep.subr.mxu0 0.0
        %2339 = vmatpush1.msra.mxu0 0.0
        %2340 = vmatprep.subr.mxu0 0.0
        %2341 = vmatpush1.msra.mxu0 0.0
        %2342 = vmatprep.subr.mxu0 0.0
        %2343 = vmatpush1.msra.mxu0 0.0
        %2344 = vmatprep.subr.mxu0 0.0
        %2345 = vmatpush1.msra.mxu0 0.0
        %2346 = vmatprep.subr.mxu0 0.0
        %2347 = vmatpush1.msra.mxu0 0.0
        %2348 = vmatprep.subr.mxu0 0.0
        %2349 = vmatpush1.msra.mxu0 0.0
        %2350 = vmatprep.subr.mxu0 0.0
        %2351 = vmatpush1.msra.mxu0 0.0
        %2352 = vmatprep.subr.mxu0 0.0
        %2353 = vmatpush1.msra.mxu0 0.0
        %2354 = vmatprep.subr.mxu0 0.0
        %2355 = vmatpush1.msra.mxu0 0.0
        %2356 = vmatprep.mubr.f32.mxu0 %v2288
        %2357 = vmatmul.mubr.f32.gmra.mrb[0].mxu0 %v2144
        %v2358 = vpop.f32.mrb[0].mxu0
        %v2359 = vadd.f32 %v2279, %v2358
        %v2360 = vpop.f32.mrb[0].mxu0
        %2361 = vmatprep.mubr.f32.mxu0 %v2290
        %2362 = vmatmul.mubr.f32.gmra.mrb[0].mxu0 %v2146
        %v2363 = vpop.f32.mrb[0].mxu0
        %v2364 = vadd.f32 %v2284, %v2363
        %v2365 = vpop.f32.mrb[0].mxu0
        %2366 = vdwg.mxu0
        %v2367 = vld [vmem:[#allocation2] sm:$0xfc]
        %v2368 = vld [vmem:[#allocation2 + $0x8] sm:$0xfc]
        %v2369 = vld [vmem:[#allocation2 + $0x20] sm:$0x3]
        %v2370 = vld [vmem:[#allocation2 + $0x28] sm:$0x3]
        %s2371 = scalar_lea.vmem %s15, 288
        %v2372 = vld [vmem:[%s2371] sm:$0xff]
        %v2373 = vld [vmem:[%s2371 + $0x8] sm:$0xff]
        %v2374 = vld [vmem:[%s2371 + $0x10] sm:$0xff]
        %v2375 = vld [vmem:[%s2371 + $0x18] sm:$0xff]
        %v2376 = vld [vmem:[%s2371 + $0x20] sm:$0xff]
        %v2377 = vld [vmem:[%s2371 + $0x28] sm:$0xff]
        %v2378 = vld [vmem:[%s2371 + $0x30] sm:$0xff]
        %v2379 = vld [vmem:[%s2371 + $0x38] sm:$0xff]
        %v2380 = vld [vmem:[%s2371 + $0x40] sm:$0xff]
        %v2381 = vld [vmem:[%s2371 + $0x48] sm:$0xff]
        %v2382 = vld [vmem:[%s2371 + $0x50] sm:$0xff]
        %v2383 = vld [vmem:[%s2371 + $0x58] sm:$0xff]
        %v2384 = vld [vmem:[%s2371 + $0x60] sm:$0xff]
        %v2385 = vld [vmem:[%s2371 + $0x68] sm:$0xff]
        %v2386 = vld [vmem:[%s2371 + $0x70] sm:$0xff]
        %v2387 = vld [vmem:[%s2371 + $0x78] sm:$0xff]
        %v2388 = vld [vmem:[%s2371 + $0x80] sm:$0xff]
        %v2389 = vld [vmem:[%s2371 + $0x88] sm:$0xff]
        %vm2394 = vcmask 1045504
        %v2395 = vrot.slane %v2367, 2
        %v2396 = vrot.slane %v2146, 2
        %v2397 = vsel %vm2394, %v2395, %v2396
        %v2398 = vrot.slane %v2368, 2
        %v2399 = vrot.slane %v2147, 2
        %v2400 = vsel %vm2394, %v2398, %v2399
        %v2401 = vrot.slane %v2369, 2
        %v2402 = vsel %vm2394, %v2396, %v2401
        %v2403 = vrot.slane %v2370, 2
        %v2404 = vsel %vm2394, %v2399, %v2403
        %v2407 = vsel %vm1084, %v2400, 0
        %v2409 = vsel %vm1084, %v2404, 0
        %2411 = vmatprep.subr.mxu0 0.0
        %2412 = vmatpush1.msra.mxu0 %v2372
        %2413 = vmatprep.subr.mxu0 0.0
        %2414 = vmatpush1.msra.mxu0 %v2373
        %2415 = vmatprep.subr.mxu0 0.0
        %2416 = vmatpush1.msra.mxu0 %v2374
        %2417 = vmatprep.subr.mxu0 0.0
        %2418 = vmatpush1.msra.mxu0 %v2375
        %2419 = vmatprep.subr.mxu0 0.0
        %2420 = vmatpush1.msra.mxu0 %v2376
        %2421 = vmatprep.subr.mxu0 0.0
        %2422 = vmatpush1.msra.mxu0 %v2377
        %2423 = vmatprep.subr.mxu0 0.0
        %2424 = vmatpush1.msra.mxu0 %v2378
        %2425 = vmatprep.subr.mxu0 0.0
        %2426 = vmatpush1.msra.mxu0 %v2379
        %2427 = vmatprep.subr.mxu0 0.0
        %2428 = vmatpush1.msra.mxu0 %v2380
        %2429 = vmatprep.subr.mxu0 0.0
        %2430 = vmatpush1.msra.mxu0 %v2381
        %2431 = vmatprep.subr.mxu0 0.0
        %2432 = vmatpush1.msra.mxu0 %v2382
        %2433 = vmatprep.subr.mxu0 0.0
        %2434 = vmatpush1.msra.mxu0 %v2383
        %2435 = vmatprep.subr.mxu0 0.0
        %2436 = vmatpush1.msra.mxu0 %v2384
        %2437 = vmatprep.subr.mxu0 0.0
        %2438 = vmatpush1.msra.mxu0 %v2385
        %2439 = vmatprep.subr.mxu0 0.0
        %2440 = vmatpush1.msra.mxu0 %v2386
        %2441 = vmatprep.subr.mxu0 0.0
        %2442 = vmatpush1.msra.mxu0 %v2387
        %2443 = vmatprep.subr.mxu0 0.0
        %2444 = vmatpush1.msra.mxu0 %v2388
        %2445 = vmatprep.subr.mxu0 0.0
        %2446 = vmatpush1.msra.mxu0 %v2389
        %2447 = vmatprep.subr.mxu0 0.0
        %2448 = vmatpush1.msra.mxu0 0.0
        %2449 = vmatprep.subr.mxu0 0.0
        %2450 = vmatpush1.msra.mxu0 0.0
        %2451 = vmatprep.subr.mxu0 0.0
        %2452 = vmatpush1.msra.mxu0 0.0
        %2453 = vmatprep.subr.mxu0 0.0
        %2454 = vmatpush1.msra.mxu0 0.0
        %2455 = vmatprep.subr.mxu0 0.0
        %2456 = vmatpush1.msra.mxu0 0.0
        %2457 = vmatprep.subr.mxu0 0.0
        %2458 = vmatpush1.msra.mxu0 0.0
        %2459 = vmatprep.subr.mxu0 0.0
        %2460 = vmatpush1.msra.mxu0 0.0
        %2461 = vmatprep.subr.mxu0 0.0
        %2462 = vmatpush1.msra.mxu0 0.0
        %2463 = vmatprep.subr.mxu0 0.0
        %2464 = vmatpush1.msra.mxu0 0.0
        %2465 = vmatprep.subr.mxu0 0.0
        %2466 = vmatpush1.msra.mxu0 0.0
        %2467 = vmatprep.subr.mxu0 0.0
        %2468 = vmatpush1.msra.mxu0 0.0
        %2469 = vmatprep.subr.mxu0 0.0
        %2470 = vmatpush1.msra.mxu0 0.0
        %2471 = vmatprep.subr.mxu0 0.0
        %2472 = vmatpush1.msra.mxu0 0.0
        %2473 = vmatprep.subr.mxu0 0.0
        %2474 = vmatpush1.msra.mxu0 0.0
        %2475 = vmatprep.mubr.f32.mxu0 %v2407
        %2476 = vmatmul.mubr.f32.gmra.mrb[0].mxu0 %v2397
        %v2477 = vpop.f32.mrb[0].mxu0
        %v2478 = vadd.f32 0.0, %v2477
        %v2479 = vpop.f32.mrb[0].mxu0
        %2480 = vmatprep.mubr.f32.mxu0 %v2409
        %2481 = vmatmul.mubr.f32.gmra.mrb[0].mxu0 %v2402
        %v2482 = vpop.f32.mrb[0].mxu0
        %v2483 = vadd.f32 0.0, %v2482
        %v2484 = vpop.f32.mrb[0].mxu0
        %2485 = vdwg.mxu0
        %v2486 = vadd.f32 %v2359, %v2478
        %v2487 = vadd.f32 %v2364, %v2483
        %v2488 = vld [vmem:[%s27] sm:$0x1]
        %v2490 = vlaneseq
        %v2491 = vshrl.u32 %v2490, 7
        %v2492 = vsub.s32 0, %v2491
        %v2493 = vrot.slane %v2488, %v2492
        %v2495 = vadd.f32 %v2486, %v2493
        %v2496 = vadd.f32 %v2487, %v2493
        %v2497 = vmax.f32 %v2495, 0.0
        %v2498 = vmax.f32 %v2496, 0.0
        %2499 = vst [vmem:[%s1070] sm:$0xff] %v2497
        %2500 = vst [vmem:[%s1070 + $0x8] sm:$0xff] %v2498
        %s2501 = sld [smem:[#allocation6 + $0x6]]
        %v2502 = vstv %s2501
        %v2503 = vmul.f32 %v2502, %v1101
        %s2504 = sld [smem:[#allocation6 + $0x7]]
        %v2505 = vstv %s2504
        %v2506 = vmul.f32 %v2505, %v1948
        %v2507 = vadd.f32 %v2503, %v2506
        %s2508 = sld [smem:[#allocation6 + $0x8]]
        %v2509 = vld [vmem:[%s47] sm:$0xff]
        %v2511 = vsel %vm1084, %v2509, 0
        %2513 = vmatprep.subr.mxu0 0.0
        %2514 = vmatpush1.msra.mxu0 %v2497
        %2515 = vmatprep.subr.mxu0 0.0
        %2516 = vmatpush1.msra.mxu0 %v2498
        %2517 = vmatprep.subr.mxu0 0.0
        %2518 = vmatpush1.msra.mxu0 0.0
        %2519 = vmatprep.subr.mxu0 0.0
        %2520 = vmatpush1.msra.mxu0 0.0
        %2521 = vmatprep.subr.mxu0 0.0
        %2522 = vmatpush1.msra.mxu0 0.0
        %2523 = vmatprep.subr.mxu0 0.0
        %2524 = vmatpush1.msra.mxu0 0.0
        %2525 = vmatprep.subr.mxu0 0.0
        %2526 = vmatpush1.msra.mxu0 0.0
        %2527 = vmatprep.subr.mxu0 0.0
        %2528 = vmatpush1.msra.mxu0 0.0
        %2529 = vmatprep.subr.mxu0 0.0
        %2530 = vmatpush1.msra.mxu0 0.0
        %2531 = vmatprep.subr.mxu0 0.0
        %2532 = vmatpush1.msra.mxu0 0.0
        %2533 = vmatprep.subr.mxu0 0.0
        %2534 = vmatpush1.msra.mxu0 0.0
        %2535 = vmatprep.subr.mxu0 0.0
        %2536 = vmatpush1.msra.mxu0 0.0
        %2537 = vmatprep.subr.mxu0 0.0
        %2538 = vmatpush1.msra.mxu0 0.0
        %2539 = vmatprep.subr.mxu0 0.0
        %2540 = vmatpush1.msra.mxu0 0.0
        %2541 = vmatprep.subr.mxu0 0.0
        %2542 = vmatpush1.msra.mxu0 0.0
        %2543 = vmatprep.subr.mxu0 0.0
        %2544 = vmatpush1.msra.mxu0 0.0
        %2545 = vmatprep.subr.mxu0 0.0
        %2546 = vmatpush1.msra.mxu0 0.0
        %2547 = vmatprep.subr.mxu0 0.0
        %2548 = vmatpush1.msra.mxu0 0.0
        %2549 = vmatprep.subr.mxu0 0.0
        %2550 = vmatpush1.msra.mxu0 0.0
        %2551 = vmatprep.subr.mxu0 0.0
        %2552 = vmatpush1.msra.mxu0 0.0
        %2553 = vmatprep.subr.mxu0 0.0
        %2554 = vmatpush1.msra.mxu0 0.0
        %2555 = vmatprep.subr.mxu0 0.0
        %2556 = vmatpush1.msra.mxu0 0.0
        %2557 = vmatprep.subr.mxu0 0.0
        %2558 = vmatpush1.msra.mxu0 0.0
        %2559 = vmatprep.subr.mxu0 0.0
        %2560 = vmatpush1.msra.mxu0 0.0
        %2561 = vmatprep.subr.mxu0 0.0
        %2562 = vmatpush1.msra.mxu0 0.0
        %2563 = vmatprep.subr.mxu0 0.0
        %2564 = vmatpush1.msra.mxu0 0.0
        %2565 = vmatprep.subr.mxu0 0.0
        %2566 = vmatpush1.msra.mxu0 0.0
        %2567 = vmatprep.subr.mxu0 0.0
        %2568 = vmatpush1.msra.mxu0 0.0
        %2569 = vmatprep.subr.mxu0 0.0
        %2570 = vmatpush1.msra.mxu0 0.0
        %2571 = vmatprep.subr.mxu0 0.0
        %2572 = vmatpush1.msra.mxu0 0.0
        %2573 = vmatprep.subr.mxu0 0.0
        %2574 = vmatpush1.msra.mxu0 0.0
        %2575 = vmatprep.subr.mxu0 0.0
        %2576 = vmatpush1.msra.mxu0 0.0
        %2577 = vmatprep.mubr.f32.mxu0 0.0
        %2578 = vmatmul.mubr.f32.gmra.mrb[0].mxu0 %v2511
        %v2579 = vpop.f32.mrb[0].mxu0
        %v2580 = vadd.f32 0.0, %v2579
        %v2581 = vpop.f32.mrb[0].mxu0
        %2582 = vdwg.mxu0
        %v2583 = vld [vmem:[%s49] sm:$0xff]
        %v2584 = vld [vmem:[%s49 + $0x8] sm:$0xff]
        %v2585 = vld [vmem:[%s49 + $0x10] sm:$0xff]
        %v2586 = vld [vmem:[%s49 + $0x18] sm:$0xff]
        %v2587 = vld [vmem:[%s49 + $0x20] sm:$0xff]
        %v2588 = vld [vmem:[%s49 + $0x28] sm:$0xff]
        %v2589 = vld [vmem:[%s49 + $0x30] sm:$0xff]
        %v2590 = vld [vmem:[%s49 + $0x38] sm:$0xff]
        %v2591 = vld [vmem:[%s49 + $0x40] sm:$0xff]
        %v2592 = vld [vmem:[%s49 + $0x48] sm:$0xff]
        %v2593 = vld [vmem:[%s49 + $0x50] sm:$0xff]
        %v2594 = vld [vmem:[%s49 + $0x58] sm:$0xff]
        %v2595 = vld [vmem:[%s49 + $0x60] sm:$0xff]
        %v2596 = vld [vmem:[%s49 + $0x68] sm:$0xff]
        %v2597 = vld [vmem:[%s49 + $0x70] sm:$0xff]
        %v2598 = vld [vmem:[%s49 + $0x78] sm:$0xff]
        %2599 = vmatprep.subr.mxu0 0.0
        %2600 = vmatpush1.msra.mxu0 %v2583
        %2601 = vmatprep.subr.mxu0 0.0
        %2602 = vmatpush1.msra.mxu0 %v2584
        %2603 = vmatprep.subr.mxu0 0.0
        %2604 = vmatpush1.msra.mxu0 %v2585
        %2605 = vmatprep.subr.mxu0 0.0
        %2606 = vmatpush1.msra.mxu0 %v2586
        %2607 = vmatprep.subr.mxu0 0.0
        %2608 = vmatpush1.msra.mxu0 %v2587
        %2609 = vmatprep.subr.mxu0 0.0
        %2610 = vmatpush1.msra.mxu0 %v2588
        %2611 = vmatprep.subr.mxu0 0.0
        %2612 = vmatpush1.msra.mxu0 %v2589
        %2613 = vmatprep.subr.mxu0 0.0
        %2614 = vmatpush1.msra.mxu0 %v2590
        %2615 = vmatprep.subr.mxu0 0.0
        %2616 = vmatpush1.msra.mxu0 %v2591
        %2617 = vmatprep.subr.mxu0 0.0
        %2618 = vmatpush1.msra.mxu0 %v2592
        %2619 = vmatprep.subr.mxu0 0.0
        %2620 = vmatpush1.msra.mxu0 %v2593
        %2621 = vmatprep.subr.mxu0 0.0
        %2622 = vmatpush1.msra.mxu0 %v2594
        %2623 = vmatprep.subr.mxu0 0.0
        %2624 = vmatpush1.msra.mxu0 %v2595
        %2625 = vmatprep.subr.mxu0 0.0
        %2626 = vmatpush1.msra.mxu0 %v2596
        %2627 = vmatprep.subr.mxu0 0.0
        %2628 = vmatpush1.msra.mxu0 %v2597
        %2629 = vmatprep.subr.mxu0 0.0
        %2630 = vmatpush1.msra.mxu0 %v2598
        %2631 = vmatprep.subr.mxu0 0.0
        %2632 = vmatpush1.msra.mxu0 0.0
        %2633 = vmatprep.subr.mxu0 0.0
        %2634 = vmatpush1.msra.mxu0 0.0
        %2635 = vmatprep.subr.mxu0 0.0
        %2636 = vmatpush1.msra.mxu0 0.0
        %2637 = vmatprep.subr.mxu0 0.0
        %2638 = vmatpush1.msra.mxu0 0.0
        %2639 = vmatprep.subr.mxu0 0.0
        %2640 = vmatpush1.msra.mxu0 0.0
        %2641 = vmatprep.subr.mxu0 0.0
        %2642 = vmatpush1.msra.mxu0 0.0
        %2643 = vmatprep.subr.mxu0 0.0
        %2644 = vmatpush1.msra.mxu0 0.0
        %2645 = vmatprep.subr.mxu0 0.0
        %2646 = vmatpush1.msra.mxu0 0.0
        %2647 = vmatprep.subr.mxu0 0.0
        %2648 = vmatpush1.msra.mxu0 0.0
        %2649 = vmatprep.subr.mxu0 0.0
        %2650 = vmatpush1.msra.mxu0 0.0
        %2651 = vmatprep.subr.mxu0 0.0
        %2652 = vmatpush1.msra.mxu0 0.0
        %2653 = vmatprep.subr.mxu0 0.0
        %2654 = vmatpush1.msra.mxu0 0.0
        %2655 = vmatprep.subr.mxu0 0.0
        %2656 = vmatpush1.msra.mxu0 0.0
        %2657 = vmatprep.subr.mxu0 0.0
        %2658 = vmatpush1.msra.mxu0 0.0
        %2659 = vmatprep.subr.mxu0 0.0
        %2660 = vmatpush1.msra.mxu0 0.0
        %2661 = vmatprep.subr.mxu0 0.0
        %2662 = vmatpush1.msra.mxu0 0.0
        %2663 = vmatprep.mubr.f32.mxu0 0.0
        %2664 = vmatmul.mubr.f32.gmra.mrb[0].mxu0 %v2580
        %v2665 = vpop.f32.mrb[0].mxu0
        %v2666 = vadd.f32 0.0, %v2665
        %v2667 = vpop.f32.mrb[0].mxu0
        %2668 = vdwg.mxu0
        %v2669 = vstv %s2508
        %v2670 = vmul.f32 %v2669, %v2666
        %v2671 = vadd.f32 %v2507, %v2670
        %2672 = vst.msk [vmem:[#allocation3 + $0x1] sm:$0xff] %vm1683, %v2671
        %v2673 = vld [vmem:[#allocation3] sm:$0xff]
        %v2674 = vld [vmem:[%s17] sm:$0xff]
        %v2675 = vld [vmem:[%s17 + $0x8] sm:$0xff]
        %v2676 = vld [vmem:[%s17 + $0x10] sm:$0xff]
        %v2677 = vld [vmem:[%s17 + $0x18] sm:$0xff]
        %v2678 = vld [vmem:[%s17 + $0x20] sm:$0xff]
        %v2679 = vld [vmem:[%s17 + $0x28] sm:$0xff]
        %v2680 = vld [vmem:[%s17 + $0x30] sm:$0xff]
        %v2681 = vld [vmem:[%s17 + $0x38] sm:$0xff]
        %v2682 = vld [vmem:[%s17 + $0x40] sm:$0xff]
        %v2683 = vld [vmem:[%s17 + $0x48] sm:$0xff]
        %v2684 = vld [vmem:[#allocation3 + $0x1] sm:$0xff]
        %s2685 = scalar_lea.vmem %s17, 80
        %v2686 = vld [vmem:[%s2685] sm:$0xff]
        %v2687 = vld [vmem:[%s2685 + $0x8] sm:$0xff]
        %v2688 = vld [vmem:[%s2685 + $0x10] sm:$0xff]
        %v2689 = vld [vmem:[%s2685 + $0x18] sm:$0xff]
        %v2690 = vld [vmem:[%s2685 + $0x20] sm:$0xff]
        %v2691 = vld [vmem:[%s2685 + $0x28] sm:$0xff]
        %v2692 = vld [vmem:[%s2685 + $0x30] sm:$0xff]
        %v2693 = vld [vmem:[%s2685 + $0x38] sm:$0xff]
        %v2694 = vld [vmem:[%s2685 + $0x40] sm:$0xff]
        %v2695 = vld [vmem:[%s2685 + $0x48] sm:$0xff]
        %v2697 = vsel %vm1091, %v2684, 0
        %2699 = vmatprep.subr.mxu0 0.0
        %2700 = vmatpush1.msra.mxu0 %v2686
        %2701 = vmatprep.subr.mxu0 0.0
        %2702 = vmatpush1.msra.mxu0 %v2687
        %2703 = vmatprep.subr.mxu0 0.0
        %2704 = vmatpush1.msra.mxu0 %v2688
        %2705 = vmatprep.subr.mxu0 0.0
        %2706 = vmatpush1.msra.mxu0 %v2689
        %2707 = vmatprep.subr.mxu0 0.0
        %2708 = vmatpush1.msra.mxu0 %v2690
        %2709 = vmatprep.subr.mxu0 0.0
        %2710 = vmatpush1.msra.mxu0 %v2691
        %2711 = vmatprep.subr.mxu0 0.0
        %2712 = vmatpush1.msra.mxu0 %v2692
        %2713 = vmatprep.subr.mxu0 0.0
        %2714 = vmatpush1.msra.mxu0 %v2693
        %2715 = vmatprep.subr.mxu0 0.0
        %2716 = vmatpush1.msra.mxu0 %v2694
        %2717 = vmatprep.subr.mxu0 0.0
        %2718 = vmatpush1.msra.mxu0 %v2695
        %2719 = vmatprep.subr.mxu0 0.0
        %2720 = vmatpush1.msra.mxu0 0.0
        %2721 = vmatprep.subr.mxu0 0.0
        %2722 = vmatpush1.msra.mxu0 0.0
        %2723 = vmatprep.subr.mxu0 0.0
        %2724 = vmatpush1.msra.mxu0 0.0
        %2725 = vmatprep.subr.mxu0 0.0
        %2726 = vmatpush1.msra.mxu0 0.0
        %2727 = vmatprep.subr.mxu0 0.0
        %2728 = vmatpush1.msra.mxu0 0.0
        %2729 = vmatprep.subr.mxu0 0.0
        %2730 = vmatpush1.msra.mxu0 0.0
        %2731 = vmatprep.subr.mxu0 0.0
        %2732 = vmatpush1.msra.mxu0 0.0
        %2733 = vmatprep.subr.mxu0 0.0
        %2734 = vmatpush1.msra.mxu0 0.0
        %2735 = vmatprep.subr.mxu0 0.0
        %2736 = vmatpush1.msra.mxu0 0.0
        %2737 = vmatprep.subr.mxu0 0.0
        %2738 = vmatpush1.msra.mxu0 0.0
        %2739 = vmatprep.subr.mxu0 0.0
        %2740 = vmatpush1.msra.mxu0 0.0
        %2741 = vmatprep.subr.mxu0 0.0
        %2742 = vmatpush1.msra.mxu0 0.0
        %2743 = vmatprep.subr.mxu0 0.0
        %2744 = vmatpush1.msra.mxu0 0.0
        %2745 = vmatprep.subr.mxu0 0.0
        %2746 = vmatpush1.msra.mxu0 0.0
        %2747 = vmatprep.subr.mxu0 0.0
        %2748 = vmatpush1.msra.mxu0 0.0
        %2749 = vmatprep.subr.mxu0 0.0
        %2750 = vmatpush1.msra.mxu0 0.0
        %2751 = vmatprep.subr.mxu0 0.0
        %2752 = vmatpush1.msra.mxu0 0.0
        %2753 = vmatprep.subr.mxu0 0.0
        %2754 = vmatpush1.msra.mxu0 0.0
        %2755 = vmatprep.subr.mxu0 0.0
        %2756 = vmatpush1.msra.mxu0 0.0
        %2757 = vmatprep.subr.mxu0 0.0
        %2758 = vmatpush1.msra.mxu0 0.0
        %2759 = vmatprep.subr.mxu0 0.0
        %2760 = vmatpush1.msra.mxu0 0.0
        %2761 = vmatprep.subr.mxu0 0.0
        %2762 = vmatpush1.msra.mxu0 0.0
        %2763 = vmatprep.mubr.f32.mxu0 0.0
        %2764 = vmatmul.mubr.f32.gmra.mrb[0].mxu0 %v2697
        %v2765 = vpop.f32.mrb[0].mxu0
        %v2766 = vadd.f32 0.0, %v2765
        %v2767 = vpop.f32.mrb[0].mxu0
        %2768 = vdwg.mxu0
        %v2770 = vsel %vm1091, %v2673, 0
        %2772 = vmatprep.subr.mxu0 0.0
        %2773 = vmatpush1.msra.mxu0 %v2674
        %2774 = vmatprep.subr.mxu0 0.0
        %2775 = vmatpush1.msra.mxu0 %v2675
        %2776 = vmatprep.subr.mxu0 0.0
        %2777 = vmatpush1.msra.mxu0 %v2676
        %2778 = vmatprep.subr.mxu0 0.0
        %2779 = vmatpush1.msra.mxu0 %v2677
        %2780 = vmatprep.subr.mxu0 0.0
        %2781 = vmatpush1.msra.mxu0 %v2678
        %2782 = vmatprep.subr.mxu0 0.0
        %2783 = vmatpush1.msra.mxu0 %v2679
        %2784 = vmatprep.subr.mxu0 0.0
        %2785 = vmatpush1.msra.mxu0 %v2680
        %2786 = vmatprep.subr.mxu0 0.0
        %2787 = vmatpush1.msra.mxu0 %v2681
        %2788 = vmatprep.subr.mxu0 0.0
        %2789 = vmatpush1.msra.mxu0 %v2682
        %2790 = vmatprep.subr.mxu0 0.0
        %2791 = vmatpush1.msra.mxu0 %v2683
        %2792 = vmatprep.subr.mxu0 0.0
        %2793 = vmatpush1.msra.mxu0 0.0
        %2794 = vmatprep.subr.mxu0 0.0
        %2795 = vmatpush1.msra.mxu0 0.0
        %2796 = vmatprep.subr.mxu0 0.0
        %2797 = vmatpush1.msra.mxu0 0.0
        %2798 = vmatprep.subr.mxu0 0.0
        %2799 = vmatpush1.msra.mxu0 0.0
        %2800 = vmatprep.subr.mxu0 0.0
        %2801 = vmatpush1.msra.mxu0 0.0
        %2802 = vmatprep.subr.mxu0 0.0
        %2803 = vmatpush1.msra.mxu0 0.0
        %2804 = vmatprep.subr.mxu0 0.0
        %2805 = vmatpush1.msra.mxu0 0.0
        %2806 = vmatprep.subr.mxu0 0.0
        %2807 = vmatpush1.msra.mxu0 0.0
        %2808 = vmatprep.subr.mxu0 0.0
        %2809 = vmatpush1.msra.mxu0 0.0
        %2810 = vmatprep.subr.mxu0 0.0
        %2811 = vmatpush1.msra.mxu0 0.0
        %2812 = vmatprep.subr.mxu0 0.0
        %2813 = vmatpush1.msra.mxu0 0.0
        %2814 = vmatprep.subr.mxu0 0.0
        %2815 = vmatpush1.msra.mxu0 0.0
        %2816 = vmatprep.subr.mxu0 0.0
        %2817 = vmatpush1.msra.mxu0 0.0
        %2818 = vmatprep.subr.mxu0 0.0
        %2819 = vmatpush1.msra.mxu0 0.0
        %2820 = vmatprep.subr.mxu0 0.0
        %2821 = vmatpush1.msra.mxu0 0.0
        %2822 = vmatprep.subr.mxu0 0.0
        %2823 = vmatpush1.msra.mxu0 0.0
        %2824 = vmatprep.subr.mxu0 0.0
        %2825 = vmatpush1.msra.mxu0 0.0
        %2826 = vmatprep.subr.mxu0 0.0
        %2827 = vmatpush1.msra.mxu0 0.0
        %2828 = vmatprep.subr.mxu0 0.0
        %2829 = vmatpush1.msra.mxu0 0.0
        %2830 = vmatprep.subr.mxu0 0.0
        %2831 = vmatpush1.msra.mxu0 0.0
        %2832 = vmatprep.subr.mxu0 0.0
        %2833 = vmatpush1.msra.mxu0 0.0
        %2834 = vmatprep.subr.mxu0 0.0
        %2835 = vmatpush1.msra.mxu0 0.0
        %2836 = vmatprep.mubr.f32.mxu0 0.0
        %2837 = vmatmul.mubr.f32.gmra.mrb[0].mxu0 %v2770
        %v2838 = vpop.f32.mrb[0].mxu0
        %v2839 = vadd.f32 %v2766, %v2838
        %v2840 = vpop.f32.mrb[0].mxu0
        %2841 = vdwg.mxu0
        %v2842 = vld [vmem:[#allocation3 + $0x2] sm:$0xff]
        %s2843 = scalar_lea.vmem %s17, 160
        %v2844 = vld [vmem:[%s2843] sm:$0xff]
        %v2845 = vld [vmem:[%s2843 + $0x8] sm:$0xff]
        %v2846 = vld [vmem:[%s2843 + $0x10] sm:$0xff]
        %v2847 = vld [vmem:[%s2843 + $0x18] sm:$0xff]
        %v2848 = vld [vmem:[%s2843 + $0x20] sm:$0xff]
        %v2849 = vld [vmem:[%s2843 + $0x28] sm:$0xff]
        %v2850 = vld [vmem:[%s2843 + $0x30] sm:$0xff]
        %v2851 = vld [vmem:[%s2843 + $0x38] sm:$0xff]
        %v2852 = vld [vmem:[%s2843 + $0x40] sm:$0xff]
        %v2853 = vld [vmem:[%s2843 + $0x48] sm:$0xff]
        %v2855 = vsel %vm1091, %v2842, 0
        %2857 = vmatprep.subr.mxu0 0.0
        %2858 = vmatpush1.msra.mxu0 %v2844
        %2859 = vmatprep.subr.mxu0 0.0
        %2860 = vmatpush1.msra.mxu0 %v2845
        %2861 = vmatprep.subr.mxu0 0.0
        %2862 = vmatpush1.msra.mxu0 %v2846
        %2863 = vmatprep.subr.mxu0 0.0
        %2864 = vmatpush1.msra.mxu0 %v2847
        %2865 = vmatprep.subr.mxu0 0.0
        %2866 = vmatpush1.msra.mxu0 %v2848
        %2867 = vmatprep.subr.mxu0 0.0
        %2868 = vmatpush1.msra.mxu0 %v2849
        %2869 = vmatprep.subr.mxu0 0.0
        %2870 = vmatpush1.msra.mxu0 %v2850
        %2871 = vmatprep.subr.mxu0 0.0
        %2872 = vmatpush1.msra.mxu0 %v2851
        %2873 = vmatprep.subr.mxu0 0.0
        %2874 = vmatpush1.msra.mxu0 %v2852
        %2875 = vmatprep.subr.mxu0 0.0
        %2876 = vmatpush1.msra.mxu0 %v2853
        %2877 = vmatprep.subr.mxu0 0.0
        %2878 = vmatpush1.msra.mxu0 0.0
        %2879 = vmatprep.subr.mxu0 0.0
        %2880 = vmatpush1.msra.mxu0 0.0
        %2881 = vmatprep.subr.mxu0 0.0
        %2882 = vmatpush1.msra.mxu0 0.0
        %2883 = vmatprep.subr.mxu0 0.0
        %2884 = vmatpush1.msra.mxu0 0.0
        %2885 = vmatprep.subr.mxu0 0.0
        %2886 = vmatpush1.msra.mxu0 0.0
        %2887 = vmatprep.subr.mxu0 0.0
        %2888 = vmatpush1.msra.mxu0 0.0
        %2889 = vmatprep.subr.mxu0 0.0
        %2890 = vmatpush1.msra.mxu0 0.0
        %2891 = vmatprep.subr.mxu0 0.0
        %2892 = vmatpush1.msra.mxu0 0.0
        %2893 = vmatprep.subr.mxu0 0.0
        %2894 = vmatpush1.msra.mxu0 0.0
        %2895 = vmatprep.subr.mxu0 0.0
        %2896 = vmatpush1.msra.mxu0 0.0
        %2897 = vmatprep.subr.mxu0 0.0
        %2898 = vmatpush1.msra.mxu0 0.0
        %2899 = vmatprep.subr.mxu0 0.0
        %2900 = vmatpush1.msra.mxu0 0.0
        %2901 = vmatprep.subr.mxu0 0.0
        %2902 = vmatpush1.msra.mxu0 0.0
        %2903 = vmatprep.subr.mxu0 0.0
        %2904 = vmatpush1.msra.mxu0 0.0
        %2905 = vmatprep.subr.mxu0 0.0
        %2906 = vmatpush1.msra.mxu0 0.0
        %2907 = vmatprep.subr.mxu0 0.0
        %2908 = vmatpush1.msra.mxu0 0.0
        %2909 = vmatprep.subr.mxu0 0.0
        %2910 = vmatpush1.msra.mxu0 0.0
        %2911 = vmatprep.subr.mxu0 0.0
        %2912 = vmatpush1.msra.mxu0 0.0
        %2913 = vmatprep.subr.mxu0 0.0
        %2914 = vmatpush1.msra.mxu0 0.0
        %2915 = vmatprep.subr.mxu0 0.0
        %2916 = vmatpush1.msra.mxu0 0.0
        %2917 = vmatprep.subr.mxu0 0.0
        %2918 = vmatpush1.msra.mxu0 0.0
        %2919 = vmatprep.subr.mxu0 0.0
        %2920 = vmatpush1.msra.mxu0 0.0
        %2921 = vmatprep.mubr.f32.mxu0 0.0
        %2922 = vmatmul.mubr.f32.gmra.mrb[0].mxu0 %v2855
        %v2923 = vpop.f32.mrb[0].mxu0
        %v2924 = vadd.f32 0.0, %v2923
        %v2925 = vpop.f32.mrb[0].mxu0
        %2926 = vdwg.mxu0
        %v2927 = vadd.f32 %v2839, %v2924
        %v2928 = vld [vmem:[%s29] sm:$0x1]
        %v2930 = vlaneseq
        %v2931 = vshrl.u32 %v2930, 7
        %v2932 = vsub.s32 0, %v2931
        %v2933 = vrot.slane %v2928, %v2932
        %v2935 = vadd.f32 %v2927, %v2933
        %v2936 = vmax.f32 %v2935, 0.0
        %2937 = vst.msk [vmem:[%s1074] sm:$0xff] %vm1683, %v2936
        %s2938 = sld [smem:[#allocation6 + $0x9]]
        %v2939 = vstv %s2938
        %v2940 = vmul.f32 %v2939, %v1102
        %s2941 = sld [smem:[#allocation6 + $0xa]]
        %v2942 = vstv %s2941
        %v2943 = vmul.f32 %v2942, %v1518
        %v2944 = vadd.f32 %v2940, %v2943
        %s2945 = sld [smem:[#allocation6 + $0xb]]
        %v2946 = vld [vmem:[%s51] sm:$0xf]
        %v2948 = vsel %vm1956, %v2946, 0
        %2950 = vmatprep.subr.mxu0 0.0
        %2951 = vmatpush1.msra.mxu0 %v2936
        %2952 = vmatprep.subr.mxu0 0.0
        %2953 = vmatpush1.msra.mxu0 0.0
        %2954 = vmatprep.subr.mxu0 0.0
        %2955 = vmatpush1.msra.mxu0 0.0
        %2956 = vmatprep.subr.mxu0 0.0
        %2957 = vmatpush1.msra.mxu0 0.0
        %2958 = vmatprep.subr.mxu0 0.0
        %2959 = vmatpush1.msra.mxu0 0.0
        %2960 = vmatprep.subr.mxu0 0.0
        %2961 = vmatpush1.msra.mxu0 0.0
        %2962 = vmatprep.subr.mxu0 0.0
        %2963 = vmatpush1.msra.mxu0 0.0
        %2964 = vmatprep.subr.mxu0 0.0
        %2965 = vmatpush1.msra.mxu0 0.0
        %2966 = vmatprep.subr.mxu0 0.0
        %2967 = vmatpush1.msra.mxu0 0.0
        %2968 = vmatprep.subr.mxu0 0.0
        %2969 = vmatpush1.msra.mxu0 0.0
        %2970 = vmatprep.subr.mxu0 0.0
        %2971 = vmatpush1.msra.mxu0 0.0
        %2972 = vmatprep.subr.mxu0 0.0
        %2973 = vmatpush1.msra.mxu0 0.0
        %2974 = vmatprep.subr.mxu0 0.0
        %2975 = vmatpush1.msra.mxu0 0.0
        %2976 = vmatprep.subr.mxu0 0.0
        %2977 = vmatpush1.msra.mxu0 0.0
        %2978 = vmatprep.subr.mxu0 0.0
        %2979 = vmatpush1.msra.mxu0 0.0
        %2980 = vmatprep.subr.mxu0 0.0
        %2981 = vmatpush1.msra.mxu0 0.0
        %2982 = vmatprep.subr.mxu0 0.0
        %2983 = vmatpush1.msra.mxu0 0.0
        %2984 = vmatprep.subr.mxu0 0.0
        %2985 = vmatpush1.msra.mxu0 0.0
        %2986 = vmatprep.subr.mxu0 0.0
        %2987 = vmatpush1.msra.mxu0 0.0
        %2988 = vmatprep.subr.mxu0 0.0
        %2989 = vmatpush1.msra.mxu0 0.0
        %2990 = vmatprep.subr.mxu0 0.0
        %2991 = vmatpush1.msra.mxu0 0.0
        %2992 = vmatprep.subr.mxu0 0.0
        %2993 = vmatpush1.msra.mxu0 0.0
        %2994 = vmatprep.subr.mxu0 0.0
        %2995 = vmatpush1.msra.mxu0 0.0
        %2996 = vmatprep.subr.mxu0 0.0
        %2997 = vmatpush1.msra.mxu0 0.0
        %2998 = vmatprep.subr.mxu0 0.0
        %2999 = vmatpush1.msra.mxu0 0.0
        %3000 = vmatprep.subr.mxu0 0.0
        %3001 = vmatpush1.msra.mxu0 0.0
        %3002 = vmatprep.subr.mxu0 0.0
        %3003 = vmatpush1.msra.mxu0 0.0
        %3004 = vmatprep.subr.mxu0 0.0
        %3005 = vmatpush1.msra.mxu0 0.0
        %3006 = vmatprep.subr.mxu0 0.0
        %3007 = vmatpush1.msra.mxu0 0.0
        %3008 = vmatprep.subr.mxu0 0.0
        %3009 = vmatpush1.msra.mxu0 0.0
        %3010 = vmatprep.subr.mxu0 0.0
        %3011 = vmatpush1.msra.mxu0 0.0
        %3012 = vmatprep.subr.mxu0 0.0
        %3013 = vmatpush1.msra.mxu0 0.0
        %3014 = vmatprep.mubr.f32.mxu0 0.0
        %3015 = vmatmul.mubr.f32.gmra.mrb[0].mxu0 %v2948
        %v3016 = vpop.f32.mrb[0].mxu0
        %v3017 = vadd.f32 0.0, %v3016
        %v3018 = vpop.f32.mrb[0].mxu0
        %3019 = vdwg.mxu0
        %v3020 = vld [vmem:[%s53] sm:$0xff]
        %v3021 = vld [vmem:[%s53 + $0x8] sm:$0xff]
        %v3022 = vld [vmem:[%s53 + $0x10] sm:$0xff]
        %v3023 = vld [vmem:[%s53 + $0x18] sm:$0xff]
        %v3024 = vld [vmem:[%s53 + $0x20] sm:$0xff]
        %v3025 = vld [vmem:[%s53 + $0x28] sm:$0xff]
        %v3026 = vld [vmem:[%s53 + $0x30] sm:$0xff]
        %v3027 = vld [vmem:[%s53 + $0x38] sm:$0xff]
        %v3029 = vsel %vm1683, %v3017, 0
        %3031 = vmatprep.subr.mxu0 0.0
        %3032 = vmatpush1.msra.mxu0 %v3020
        %3033 = vmatprep.subr.mxu0 0.0
        %3034 = vmatpush1.msra.mxu0 %v3021
        %3035 = vmatprep.subr.mxu0 0.0
        %3036 = vmatpush1.msra.mxu0 %v3022
        %3037 = vmatprep.subr.mxu0 0.0
        %3038 = vmatpush1.msra.mxu0 %v3023
        %3039 = vmatprep.subr.mxu0 0.0
        %3040 = vmatpush1.msra.mxu0 %v3024
        %3041 = vmatprep.subr.mxu0 0.0
        %3042 = vmatpush1.msra.mxu0 %v3025
        %3043 = vmatprep.subr.mxu0 0.0
        %3044 = vmatpush1.msra.mxu0 %v3026
        %3045 = vmatprep.subr.mxu0 0.0
        %3046 = vmatpush1.msra.mxu0 %v3027
        %3047 = vmatprep.subr.mxu0 0.0
        %3048 = vmatpush1.msra.mxu0 0.0
        %3049 = vmatprep.subr.mxu0 0.0
        %3050 = vmatpush1.msra.mxu0 0.0
        %3051 = vmatprep.subr.mxu0 0.0
        %3052 = vmatpush1.msra.mxu0 0.0
        %3053 = vmatprep.subr.mxu0 0.0
        %3054 = vmatpush1.msra.mxu0 0.0
        %3055 = vmatprep.subr.mxu0 0.0
        %3056 = vmatpush1.msra.mxu0 0.0
        %3057 = vmatprep.subr.mxu0 0.0
        %3058 = vmatpush1.msra.mxu0 0.0
        %3059 = vmatprep.subr.mxu0 0.0
        %3060 = vmatpush1.msra.mxu0 0.0
        %3061 = vmatprep.subr.mxu0 0.0
        %3062 = vmatpush1.msra.mxu0 0.0
        %3063 = vmatprep.subr.mxu0 0.0
        %3064 = vmatpush1.msra.mxu0 0.0
        %3065 = vmatprep.subr.mxu0 0.0
        %3066 = vmatpush1.msra.mxu0 0.0
        %3067 = vmatprep.subr.mxu0 0.0
        %3068 = vmatpush1.msra.mxu0 0.0
        %3069 = vmatprep.subr.mxu0 0.0
        %3070 = vmatpush1.msra.mxu0 0.0
        %3071 = vmatprep.subr.mxu0 0.0
        %3072 = vmatpush1.msra.mxu0 0.0
        %3073 = vmatprep.subr.mxu0 0.0
        %3074 = vmatpush1.msra.mxu0 0.0
        %3075 = vmatprep.subr.mxu0 0.0
        %3076 = vmatpush1.msra.mxu0 0.0
        %3077 = vmatprep.subr.mxu0 0.0
        %3078 = vmatpush1.msra.mxu0 0.0
        %3079 = vmatprep.subr.mxu0 0.0
        %3080 = vmatpush1.msra.mxu0 0.0
        %3081 = vmatprep.subr.mxu0 0.0
        %3082 = vmatpush1.msra.mxu0 0.0
        %3083 = vmatprep.subr.mxu0 0.0
        %3084 = vmatpush1.msra.mxu0 0.0
        %3085 = vmatprep.subr.mxu0 0.0
        %3086 = vmatpush1.msra.mxu0 0.0
        %3087 = vmatprep.subr.mxu0 0.0
        %3088 = vmatpush1.msra.mxu0 0.0
        %3089 = vmatprep.subr.mxu0 0.0
        %3090 = vmatpush1.msra.mxu0 0.0
        %3091 = vmatprep.subr.mxu0 0.0
        %3092 = vmatpush1.msra.mxu0 0.0
        %3093 = vmatprep.subr.mxu0 0.0
        %3094 = vmatpush1.msra.mxu0 0.0
        %3095 = vmatprep.mubr.f32.mxu0 0.0
        %3096 = vmatmul.mubr.f32.gmra.mrb[0].mxu0 %v3029
        %v3097 = vpop.f32.mrb[0].mxu0
        %v3098 = vadd.f32 0.0, %v3097
        %v3099 = vpop.f32.mrb[0].mxu0
        %3100 = vdwg.mxu0
        %v3101 = vstv %s2945
        %v3102 = vmul.f32 %v3101, %v3098
        %v3103 = vadd.f32 %v2944, %v3102
        %3104 = vst.msk [vmem:[#allocation4 + $0x1] sm:$0xf] %vm1097, %v3103
        %v3105 = vld [vmem:[#allocation4] sm:$0xf]
        %v3106 = vld [vmem:[%s19] sm:$0xff]
        %v3107 = vld [vmem:[%s19 + $0x8] sm:$0xff]
        %v3108 = vld [vmem:[%s19 + $0x10] sm:$0xff]
        %v3109 = vld [vmem:[%s19 + $0x18] sm:$0xff]
        %v3110 = vld [vmem:[%s19 + $0x20] sm:$0xff]
        %v3111 = vld [vmem:[%s19 + $0x28] sm:$0xff]
        %v3112 = vld [vmem:[#allocation4 + $0x1] sm:$0xf]
        %s3113 = scalar_lea.vmem %s19, 48
        %v3114 = vld [vmem:[%s3113] sm:$0xff]
        %v3115 = vld [vmem:[%s3113 + $0x8] sm:$0xff]
        %v3116 = vld [vmem:[%s3113 + $0x10] sm:$0xff]
        %v3117 = vld [vmem:[%s3113 + $0x18] sm:$0xff]
        %v3118 = vld [vmem:[%s3113 + $0x20] sm:$0xff]
        %v3119 = vld [vmem:[%s3113 + $0x28] sm:$0xff]
        %v3121 = vsel %vm1281, %v3112, 0
        %3123 = vmatprep.subr.mxu0 0.0
        %3124 = vmatpush1.msra.mxu0 %v3114
        %3125 = vmatprep.subr.mxu0 0.0
        %3126 = vmatpush1.msra.mxu0 %v3115
        %3127 = vmatprep.subr.mxu0 0.0
        %3128 = vmatpush1.msra.mxu0 %v3116
        %3129 = vmatprep.subr.mxu0 0.0
        %3130 = vmatpush1.msra.mxu0 %v3117
        %3131 = vmatprep.subr.mxu0 0.0
        %3132 = vmatpush1.msra.mxu0 %v3118
        %3133 = vmatprep.subr.mxu0 0.0
        %3134 = vmatpush1.msra.mxu0 %v3119
        %3135 = vmatprep.subr.mxu0 0.0
        %3136 = vmatpush1.msra.mxu0 0.0
        %3137 = vmatprep.subr.mxu0 0.0
        %3138 = vmatpush1.msra.mxu0 0.0
        %3139 = vmatprep.subr.mxu0 0.0
        %3140 = vmatpush1.msra.mxu0 0.0
        %3141 = vmatprep.subr.mxu0 0.0
        %3142 = vmatpush1.msra.mxu0 0.0
        %3143 = vmatprep.subr.mxu0 0.0
        %3144 = vmatpush1.msra.mxu0 0.0
        %3145 = vmatprep.subr.mxu0 0.0
        %3146 = vmatpush1.msra.mxu0 0.0
        %3147 = vmatprep.subr.mxu0 0.0
        %3148 = vmatpush1.msra.mxu0 0.0
        %3149 = vmatprep.subr.mxu0 0.0
        %3150 = vmatpush1.msra.mxu0 0.0
        %3151 = vmatprep.subr.mxu0 0.0
        %3152 = vmatpush1.msra.mxu0 0.0
        %3153 = vmatprep.subr.mxu0 0.0
        %3154 = vmatpush1.msra.mxu0 0.0
        %3155 = vmatprep.subr.mxu0 0.0
        %3156 = vmatpush1.msra.mxu0 0.0
        %3157 = vmatprep.subr.mxu0 0.0
        %3158 = vmatpush1.msra.mxu0 0.0
        %3159 = vmatprep.subr.mxu0 0.0
        %3160 = vmatpush1.msra.mxu0 0.0
        %3161 = vmatprep.subr.mxu0 0.0
        %3162 = vmatpush1.msra.mxu0 0.0
        %3163 = vmatprep.subr.mxu0 0.0
        %3164 = vmatpush1.msra.mxu0 0.0
        %3165 = vmatprep.subr.mxu0 0.0
        %3166 = vmatpush1.msra.mxu0 0.0
        %3167 = vmatprep.subr.mxu0 0.0
        %3168 = vmatpush1.msra.mxu0 0.0
        %3169 = vmatprep.subr.mxu0 0.0
        %3170 = vmatpush1.msra.mxu0 0.0
        %3171 = vmatprep.subr.mxu0 0.0
        %3172 = vmatpush1.msra.mxu0 0.0
        %3173 = vmatprep.subr.mxu0 0.0
        %3174 = vmatpush1.msra.mxu0 0.0
        %3175 = vmatprep.subr.mxu0 0.0
        %3176 = vmatpush1.msra.mxu0 0.0
        %3177 = vmatprep.subr.mxu0 0.0
        %3178 = vmatpush1.msra.mxu0 0.0
        %3179 = vmatprep.subr.mxu0 0.0
        %3180 = vmatpush1.msra.mxu0 0.0
        %3181 = vmatprep.subr.mxu0 0.0
        %3182 = vmatpush1.msra.mxu0 0.0
        %3183 = vmatprep.subr.mxu0 0.0
        %3184 = vmatpush1.msra.mxu0 0.0
        %3185 = vmatprep.subr.mxu0 0.0
        %3186 = vmatpush1.msra.mxu0 0.0
        %3187 = vmatprep.mubr.f32.mxu0 0.0
        %3188 = vmatmul.mubr.f32.gmra.mrb[0].mxu0 %v3121
        %v3189 = vpop.f32.mrb[0].mxu0
        %v3190 = vadd.f32 0.0, %v3189
        %v3191 = vpop.f32.mrb[0].mxu0
        %3192 = vdwg.mxu0
        %v3194 = vsel %vm1281, %v3105, 0
        %3196 = vmatprep.subr.mxu0 0.0
        %3197 = vmatpush1.msra.mxu0 %v3106
        %3198 = vmatprep.subr.mxu0 0.0
        %3199 = vmatpush1.msra.mxu0 %v3107
        %3200 = vmatprep.subr.mxu0 0.0
        %3201 = vmatpush1.msra.mxu0 %v3108
        %3202 = vmatprep.subr.mxu0 0.0
        %3203 = vmatpush1.msra.mxu0 %v3109
        %3204 = vmatprep.subr.mxu0 0.0
        %3205 = vmatpush1.msra.mxu0 %v3110
        %3206 = vmatprep.subr.mxu0 0.0
        %3207 = vmatpush1.msra.mxu0 %v3111
        %3208 = vmatprep.subr.mxu0 0.0
        %3209 = vmatpush1.msra.mxu0 0.0
        %3210 = vmatprep.subr.mxu0 0.0
        %3211 = vmatpush1.msra.mxu0 0.0
        %3212 = vmatprep.subr.mxu0 0.0
        %3213 = vmatpush1.msra.mxu0 0.0
        %3214 = vmatprep.subr.mxu0 0.0
        %3215 = vmatpush1.msra.mxu0 0.0
        %3216 = vmatprep.subr.mxu0 0.0
        %3217 = vmatpush1.msra.mxu0 0.0
        %3218 = vmatprep.subr.mxu0 0.0
        %3219 = vmatpush1.msra.mxu0 0.0
        %3220 = vmatprep.subr.mxu0 0.0
        %3221 = vmatpush1.msra.mxu0 0.0
        %3222 = vmatprep.subr.mxu0 0.0
        %3223 = vmatpush1.msra.mxu0 0.0
        %3224 = vmatprep.subr.mxu0 0.0
        %3225 = vmatpush1.msra.mxu0 0.0
        %3226 = vmatprep.subr.mxu0 0.0
        %3227 = vmatpush1.msra.mxu0 0.0
        %3228 = vmatprep.subr.mxu0 0.0
        %3229 = vmatpush1.msra.mxu0 0.0
        %3230 = vmatprep.subr.mxu0 0.0
        %3231 = vmatpush1.msra.mxu0 0.0
        %3232 = vmatprep.subr.mxu0 0.0
        %3233 = vmatpush1.msra.mxu0 0.0
        %3234 = vmatprep.subr.mxu0 0.0
        %3235 = vmatpush1.msra.mxu0 0.0
        %3236 = vmatprep.subr.mxu0 0.0
        %3237 = vmatpush1.msra.mxu0 0.0
        %3238 = vmatprep.subr.mxu0 0.0
        %3239 = vmatpush1.msra.mxu0 0.0
        %3240 = vmatprep.subr.mxu0 0.0
        %3241 = vmatpush1.msra.mxu0 0.0
        %3242 = vmatprep.subr.mxu0 0.0
        %3243 = vmatpush1.msra.mxu0 0.0
        %3244 = vmatprep.subr.mxu0 0.0
        %3245 = vmatpush1.msra.mxu0 0.0
        %3246 = vmatprep.subr.mxu0 0.0
        %3247 = vmatpush1.msra.mxu0 0.0
        %3248 = vmatprep.subr.mxu0 0.0
        %3249 = vmatpush1.msra.mxu0 0.0
        %3250 = vmatprep.subr.mxu0 0.0
        %3251 = vmatpush1.msra.mxu0 0.0
        %3252 = vmatprep.subr.mxu0 0.0
        %3253 = vmatpush1.msra.mxu0 0.0
        %3254 = vmatprep.subr.mxu0 0.0
        %3255 = vmatpush1.msra.mxu0 0.0
        %3256 = vmatprep.subr.mxu0 0.0
        %3257 = vmatpush1.msra.mxu0 0.0
        %3258 = vmatprep.subr.mxu0 0.0
        %3259 = vmatpush1.msra.mxu0 0.0
        %3260 = vmatprep.mubr.f32.mxu0 0.0
        %3261 = vmatmul.mubr.f32.gmra.mrb[0].mxu0 %v3194
        %v3262 = vpop.f32.mrb[0].mxu0
        %v3263 = vadd.f32 %v3190, %v3262
        %v3264 = vpop.f32.mrb[0].mxu0
        %3265 = vdwg.mxu0
        %v3266 = vld [vmem:[#allocation4 + $0x2] sm:$0xf]
        %s3267 = scalar_lea.vmem %s19, 96
        %v3268 = vld [vmem:[%s3267] sm:$0xff]
        %v3269 = vld [vmem:[%s3267 + $0x8] sm:$0xff]
        %v3270 = vld [vmem:[%s3267 + $0x10] sm:$0xff]
        %v3271 = vld [vmem:[%s3267 + $0x18] sm:$0xff]
        %v3272 = vld [vmem:[%s3267 + $0x20] sm:$0xff]
        %v3273 = vld [vmem:[%s3267 + $0x28] sm:$0xff]
        %v3275 = vsel %vm1281, %v3266, 0
        %3277 = vmatprep.subr.mxu0 0.0
        %3278 = vmatpush1.msra.mxu0 %v3268
        %3279 = vmatprep.subr.mxu0 0.0
        %3280 = vmatpush1.msra.mxu0 %v3269
        %3281 = vmatprep.subr.mxu0 0.0
        %3282 = vmatpush1.msra.mxu0 %v3270
        %3283 = vmatprep.subr.mxu0 0.0
        %3284 = vmatpush1.msra.mxu0 %v3271
        %3285 = vmatprep.subr.mxu0 0.0
        %3286 = vmatpush1.msra.mxu0 %v3272
        %3287 = vmatprep.subr.mxu0 0.0
        %3288 = vmatpush1.msra.mxu0 %v3273
        %3289 = vmatprep.subr.mxu0 0.0
        %3290 = vmatpush1.msra.mxu0 0.0
        %3291 = vmatprep.subr.mxu0 0.0
        %3292 = vmatpush1.msra.mxu0 0.0
        %3293 = vmatprep.subr.mxu0 0.0
        %3294 = vmatpush1.msra.mxu0 0.0
        %3295 = vmatprep.subr.mxu0 0.0
        %3296 = vmatpush1.msra.mxu0 0.0
        %3297 = vmatprep.subr.mxu0 0.0
        %3298 = vmatpush1.msra.mxu0 0.0
        %3299 = vmatprep.subr.mxu0 0.0
        %3300 = vmatpush1.msra.mxu0 0.0
        %3301 = vmatprep.subr.mxu0 0.0
        %3302 = vmatpush1.msra.mxu0 0.0
        %3303 = vmatprep.subr.mxu0 0.0
        %3304 = vmatpush1.msra.mxu0 0.0
        %3305 = vmatprep.subr.mxu0 0.0
        %3306 = vmatpush1.msra.mxu0 0.0
        %3307 = vmatprep.subr.mxu0 0.0
        %3308 = vmatpush1.msra.mxu0 0.0
        %3309 = vmatprep.subr.mxu0 0.0
        %3310 = vmatpush1.msra.mxu0 0.0
        %3311 = vmatprep.subr.mxu0 0.0
        %3312 = vmatpush1.msra.mxu0 0.0
        %3313 = vmatprep.subr.mxu0 0.0
        %3314 = vmatpush1.msra.mxu0 0.0
        %3315 = vmatprep.subr.mxu0 0.0
        %3316 = vmatpush1.msra.mxu0 0.0
        %3317 = vmatprep.subr.mxu0 0.0
        %3318 = vmatpush1.msra.mxu0 0.0
        %3319 = vmatprep.subr.mxu0 0.0
        %3320 = vmatpush1.msra.mxu0 0.0
        %3321 = vmatprep.subr.mxu0 0.0
        %3322 = vmatpush1.msra.mxu0 0.0
        %3323 = vmatprep.subr.mxu0 0.0
        %3324 = vmatpush1.msra.mxu0 0.0
        %3325 = vmatprep.subr.mxu0 0.0
        %3326 = vmatpush1.msra.mxu0 0.0
        %3327 = vmatprep.subr.mxu0 0.0
        %3328 = vmatpush1.msra.mxu0 0.0
        %3329 = vmatprep.subr.mxu0 0.0
        %3330 = vmatpush1.msra.mxu0 0.0
        %3331 = vmatprep.subr.mxu0 0.0
        %3332 = vmatpush1.msra.mxu0 0.0
        %3333 = vmatprep.subr.mxu0 0.0
        %3334 = vmatpush1.msra.mxu0 0.0
        %3335 = vmatprep.subr.mxu0 0.0
        %3336 = vmatpush1.msra.mxu0 0.0
        %3337 = vmatprep.subr.mxu0 0.0
        %3338 = vmatpush1.msra.mxu0 0.0
        %3339 = vmatprep.subr.mxu0 0.0
        %3340 = vmatpush1.msra.mxu0 0.0
        %3341 = vmatprep.mubr.f32.mxu0 0.0
        %3342 = vmatmul.mubr.f32.gmra.mrb[0].mxu0 %v3275
        %v3343 = vpop.f32.mrb[0].mxu0
        %v3344 = vadd.f32 0.0, %v3343
        %v3345 = vpop.f32.mrb[0].mxu0
        %3346 = vdwg.mxu0
        %v3347 = vadd.f32 %v3263, %v3344
        %v3348 = vld [vmem:[%s31] sm:$0x1]
        %v3350 = vlaneseq
        %v3351 = vshrl.u32 %v3350, 7
        %v3352 = vsub.s32 0, %v3351
        %v3353 = vrot.slane %v3348, %v3352
        %v3355 = vadd.f32 %v3347, %v3353
        %v3356 = vmax.f32 %v3355, 0.0
        %3357 = vst.msk [vmem:[%s1078] sm:$0xf] %vm1097, %v3356
        %s3358 = sld [smem:[#allocation6 + $0xc]]
        %v3359 = vstv %s3358
        %v3360 = vmul.f32 %v3359, %v1103
        %s3361 = sld [smem:[#allocation6 + $0xd]]
        %v3362 = vld [vmem:[%s55] sm:$0x3]
        %v3364 = vsel %vm1524, %v3362, 0
        %v3367 = vsel %vm1528, %v3356, 0
        %3369 = vmatprep.subr.mxu0 0.0
        %3370 = vmatpush1.msra.mxu0 %v3367
        %3371 = vmatprep.subr.mxu0 0.0
        %3372 = vmatpush1.msra.mxu0 0.0
        %3373 = vmatprep.subr.mxu0 0.0
        %3374 = vmatpush1.msra.mxu0 0.0
        %3375 = vmatprep.subr.mxu0 0.0
        %3376 = vmatpush1.msra.mxu0 0.0
        %3377 = vmatprep.subr.mxu0 0.0
        %3378 = vmatpush1.msra.mxu0 0.0
        %3379 = vmatprep.subr.mxu0 0.0
        %3380 = vmatpush1.msra.mxu0 0.0
        %3381 = vmatprep.subr.mxu0 0.0
        %3382 = vmatpush1.msra.mxu0 0.0
        %3383 = vmatprep.subr.mxu0 0.0
        %3384 = vmatpush1.msra.mxu0 0.0
        %3385 = vmatprep.subr.mxu0 0.0
        %3386 = vmatpush1.msra.mxu0 0.0
        %3387 = vmatprep.subr.mxu0 0.0
        %3388 = vmatpush1.msra.mxu0 0.0
        %3389 = vmatprep.subr.mxu0 0.0
        %3390 = vmatpush1.msra.mxu0 0.0
        %3391 = vmatprep.subr.mxu0 0.0
        %3392 = vmatpush1.msra.mxu0 0.0
        %3393 = vmatprep.subr.mxu0 0.0
        %3394 = vmatpush1.msra.mxu0 0.0
        %3395 = vmatprep.subr.mxu0 0.0
        %3396 = vmatpush1.msra.mxu0 0.0
        %3397 = vmatprep.subr.mxu0 0.0
        %3398 = vmatpush1.msra.mxu0 0.0
        %3399 = vmatprep.subr.mxu0 0.0
        %3400 = vmatpush1.msra.mxu0 0.0
        %3401 = vmatprep.subr.mxu0 0.0
        %3402 = vmatpush1.msra.mxu0 0.0
        %3403 = vmatprep.subr.mxu0 0.0
        %3404 = vmatpush1.msra.mxu0 0.0
        %3405 = vmatprep.subr.mxu0 0.0
        %3406 = vmatpush1.msra.mxu0 0.0
        %3407 = vmatprep.subr.mxu0 0.0
        %3408 = vmatpush1.msra.mxu0 0.0
        %3409 = vmatprep.subr.mxu0 0.0
        %3410 = vmatpush1.msra.mxu0 0.0
        %3411 = vmatprep.subr.mxu0 0.0
        %3412 = vmatpush1.msra.mxu0 0.0
        %3413 = vmatprep.subr.mxu0 0.0
        %3414 = vmatpush1.msra.mxu0 0.0
        %3415 = vmatprep.subr.mxu0 0.0
        %3416 = vmatpush1.msra.mxu0 0.0
        %3417 = vmatprep.subr.mxu0 0.0
        %3418 = vmatpush1.msra.mxu0 0.0
        %3419 = vmatprep.subr.mxu0 0.0
        %3420 = vmatpush1.msra.mxu0 0.0
        %3421 = vmatprep.subr.mxu0 0.0
        %3422 = vmatpush1.msra.mxu0 0.0
        %3423 = vmatprep.subr.mxu0 0.0
        %3424 = vmatpush1.msra.mxu0 0.0
        %3425 = vmatprep.subr.mxu0 0.0
        %3426 = vmatpush1.msra.mxu0 0.0
        %3427 = vmatprep.subr.mxu0 0.0
        %3428 = vmatpush1.msra.mxu0 0.0
        %3429 = vmatprep.subr.mxu0 0.0
        %3430 = vmatpush1.msra.mxu0 0.0
        %3431 = vmatprep.subr.mxu0 0.0
        %3432 = vmatpush1.msra.mxu0 0.0
        %3433 = vmatprep.mubr.f32.mxu0 0.0
        %3434 = vmatmul.mubr.f32.gmra.mrb[0].mxu0 %v3364
        %v3435 = vpop.f32.mrb[0].mxu0
        %v3436 = vadd.f32 0.0, %v3435
        %v3437 = vpop.f32.mrb[0].mxu0
        %3438 = vdwg.mxu0
        %v3439 = vld [vmem:[%s57] sm:$0xff]
        %v3440 = vld [vmem:[%s57 + $0x8] sm:$0xff]
        %v3441 = vld [vmem:[%s57 + $0x10] sm:$0xff]
        %v3442 = vld [vmem:[%s57 + $0x18] sm:$0xff]
        %v3444 = vsel %vm1606, %v3436, 0
        %3446 = vmatprep.subr.mxu0 0.0
        %3447 = vmatpush1.msra.mxu0 %v3439
        %3448 = vmatprep.subr.mxu0 0.0
        %3449 = vmatpush1.msra.mxu0 %v3440
        %3450 = vmatprep.subr.mxu0 0.0
        %3451 = vmatpush1.msra.mxu0 %v3441
        %3452 = vmatprep.subr.mxu0 0.0
        %3453 = vmatpush1.msra.mxu0 %v3442
        %3454 = vmatprep.subr.mxu0 0.0
        %3455 = vmatpush1.msra.mxu0 0.0
        %3456 = vmatprep.subr.mxu0 0.0
        %3457 = vmatpush1.msra.mxu0 0.0
        %3458 = vmatprep.subr.mxu0 0.0
        %3459 = vmatpush1.msra.mxu0 0.0
        %3460 = vmatprep.subr.mxu0 0.0
        %3461 = vmatpush1.msra.mxu0 0.0
        %3462 = vmatprep.subr.mxu0 0.0
        %3463 = vmatpush1.msra.mxu0 0.0
        %3464 = vmatprep.subr.mxu0 0.0
        %3465 = vmatpush1.msra.mxu0 0.0
        %3466 = vmatprep.subr.mxu0 0.0
        %3467 = vmatpush1.msra.mxu0 0.0
        %3468 = vmatprep.subr.mxu0 0.0
        %3469 = vmatpush1.msra.mxu0 0.0
        %3470 = vmatprep.subr.mxu0 0.0
        %3471 = vmatpush1.msra.mxu0 0.0
        %3472 = vmatprep.subr.mxu0 0.0
        %3473 = vmatpush1.msra.mxu0 0.0
        %3474 = vmatprep.subr.mxu0 0.0
        %3475 = vmatpush1.msra.mxu0 0.0
        %3476 = vmatprep.subr.mxu0 0.0
        %3477 = vmatpush1.msra.mxu0 0.0
        %3478 = vmatprep.subr.mxu0 0.0
        %3479 = vmatpush1.msra.mxu0 0.0
        %3480 = vmatprep.subr.mxu0 0.0
        %3481 = vmatpush1.msra.mxu0 0.0
        %3482 = vmatprep.subr.mxu0 0.0
        %3483 = vmatpush1.msra.mxu0 0.0
        %3484 = vmatprep.subr.mxu0 0.0
        %3485 = vmatpush1.msra.mxu0 0.0
        %3486 = vmatprep.subr.mxu0 0.0
        %3487 = vmatpush1.msra.mxu0 0.0
        %3488 = vmatprep.subr.mxu0 0.0
        %3489 = vmatpush1.msra.mxu0 0.0
        %3490 = vmatprep.subr.mxu0 0.0
        %3491 = vmatpush1.msra.mxu0 0.0
        %3492 = vmatprep.subr.mxu0 0.0
        %3493 = vmatpush1.msra.mxu0 0.0
        %3494 = vmatprep.subr.mxu0 0.0
        %3495 = vmatpush1.msra.mxu0 0.0
        %3496 = vmatprep.subr.mxu0 0.0
        %3497 = vmatpush1.msra.mxu0 0.0
        %3498 = vmatprep.subr.mxu0 0.0
        %3499 = vmatpush1.msra.mxu0 0.0
        %3500 = vmatprep.subr.mxu0 0.0
        %3501 = vmatpush1.msra.mxu0 0.0
        %3502 = vmatprep.subr.mxu0 0.0
        %3503 = vmatpush1.msra.mxu0 0.0
        %3504 = vmatprep.subr.mxu0 0.0
        %3505 = vmatpush1.msra.mxu0 0.0
        %3506 = vmatprep.subr.mxu0 0.0
        %3507 = vmatpush1.msra.mxu0 0.0
        %3508 = vmatprep.subr.mxu0 0.0
        %3509 = vmatpush1.msra.mxu0 0.0
        %3510 = vmatprep.mubr.f32.mxu0 0.0
        %3511 = vmatmul.mubr.f32.gmra.mrb[0].mxu0 %v3444
        %v3512 = vpop.f32.mrb[0].mxu0
        %v3513 = vadd.f32 0.0, %v3512
        %v3514 = vpop.f32.mrb[0].mxu0
        %3515 = vdwg.mxu0
        %v3516 = vstv %s3361
        %v3517 = vmul.f32 %v3516, %v3513
        %v3518 = vadd.f32 %v3360, %v3517
        %3519 = vst.msk [vmem:[#allocation5 + $0x1] sm:$0x3] %vm1089, %v3518
        %v3520 = vld [vmem:[#allocation5] sm:$0x3]
        %v3521 = vld [vmem:[%s21] sm:$0xff]
        %v3522 = vld [vmem:[%s21 + $0x8] sm:$0xff]
        %v3523 = vld [vmem:[%s21 + $0x10] sm:$0xff]
        %v3524 = vld [vmem:[%s21 + $0x18] sm:$0xff]
        %v3525 = vld [vmem:[#allocation5 + $0x1] sm:$0x3]
        %s3526 = scalar_lea.vmem %s21, 32
        %v3527 = vld [vmem:[%s3526] sm:$0xff]
        %v3528 = vld [vmem:[%s3526 + $0x8] sm:$0xff]
        %v3529 = vld [vmem:[%s3526 + $0x10] sm:$0xff]
        %v3530 = vld [vmem:[%s3526 + $0x18] sm:$0xff]
        %v3532 = vsel %vm1606, %v3525, 0
        %3534 = vmatprep.subr.mxu0 0.0
        %3535 = vmatpush1.msra.mxu0 %v3527
        %3536 = vmatprep.subr.mxu0 0.0
        %3537 = vmatpush1.msra.mxu0 %v3528
        %3538 = vmatprep.subr.mxu0 0.0
        %3539 = vmatpush1.msra.mxu0 %v3529
        %3540 = vmatprep.subr.mxu0 0.0
        %3541 = vmatpush1.msra.mxu0 %v3530
        %3542 = vmatprep.subr.mxu0 0.0
        %3543 = vmatpush1.msra.mxu0 0.0
        %3544 = vmatprep.subr.mxu0 0.0
        %3545 = vmatpush1.msra.mxu0 0.0
        %3546 = vmatprep.subr.mxu0 0.0
        %3547 = vmatpush1.msra.mxu0 0.0
        %3548 = vmatprep.subr.mxu0 0.0
        %3549 = vmatpush1.msra.mxu0 0.0
        %3550 = vmatprep.subr.mxu0 0.0
        %3551 = vmatpush1.msra.mxu0 0.0
        %3552 = vmatprep.subr.mxu0 0.0
        %3553 = vmatpush1.msra.mxu0 0.0
        %3554 = vmatprep.subr.mxu0 0.0
        %3555 = vmatpush1.msra.mxu0 0.0
        %3556 = vmatprep.subr.mxu0 0.0
        %3557 = vmatpush1.msra.mxu0 0.0
        %3558 = vmatprep.subr.mxu0 0.0
        %3559 = vmatpush1.msra.mxu0 0.0
        %3560 = vmatprep.subr.mxu0 0.0
        %3561 = vmatpush1.msra.mxu0 0.0
        %3562 = vmatprep.subr.mxu0 0.0
        %3563 = vmatpush1.msra.mxu0 0.0
        %3564 = vmatprep.subr.mxu0 0.0
        %3565 = vmatpush1.msra.mxu0 0.0
        %3566 = vmatprep.subr.mxu0 0.0
        %3567 = vmatpush1.msra.mxu0 0.0
        %3568 = vmatprep.subr.mxu0 0.0
        %3569 = vmatpush1.msra.mxu0 0.0
        %3570 = vmatprep.subr.mxu0 0.0
        %3571 = vmatpush1.msra.mxu0 0.0
        %3572 = vmatprep.subr.mxu0 0.0
        %3573 = vmatpush1.msra.mxu0 0.0
        %3574 = vmatprep.subr.mxu0 0.0
        %3575 = vmatpush1.msra.mxu0 0.0
        %3576 = vmatprep.subr.mxu0 0.0
        %3577 = vmatpush1.msra.mxu0 0.0
        %3578 = vmatprep.subr.mxu0 0.0
        %3579 = vmatpush1.msra.mxu0 0.0
        %3580 = vmatprep.subr.mxu0 0.0
        %3581 = vmatpush1.msra.mxu0 0.0
        %3582 = vmatprep.subr.mxu0 0.0
        %3583 = vmatpush1.msra.mxu0 0.0
        %3584 = vmatprep.subr.mxu0 0.0
        %3585 = vmatpush1.msra.mxu0 0.0
        %3586 = vmatprep.subr.mxu0 0.0
        %3587 = vmatpush1.msra.mxu0 0.0
        %3588 = vmatprep.subr.mxu0 0.0
        %3589 = vmatpush1.msra.mxu0 0.0
        %3590 = vmatprep.subr.mxu0 0.0
        %3591 = vmatpush1.msra.mxu0 0.0
        %3592 = vmatprep.subr.mxu0 0.0
        %3593 = vmatpush1.msra.mxu0 0.0
        %3594 = vmatprep.subr.mxu0 0.0
        %3595 = vmatpush1.msra.mxu0 0.0
        %3596 = vmatprep.subr.mxu0 0.0
        %3597 = vmatpush1.msra.mxu0 0.0
        %3598 = vmatprep.mubr.f32.mxu0 0.0
        %3599 = vmatmul.mubr.f32.gmra.mrb[0].mxu0 %v3532
        %v3600 = vpop.f32.mrb[0].mxu0
        %v3601 = vadd.f32 0.0, %v3600
        %v3602 = vpop.f32.mrb[0].mxu0
        %3603 = vdwg.mxu0
        %v3605 = vsel %vm1606, %v3520, 0
        %3607 = vmatprep.subr.mxu0 0.0
        %3608 = vmatpush1.msra.mxu0 %v3521
        %3609 = vmatprep.subr.mxu0 0.0
        %3610 = vmatpush1.msra.mxu0 %v3522
        %3611 = vmatprep.subr.mxu0 0.0
        %3612 = vmatpush1.msra.mxu0 %v3523
        %3613 = vmatprep.subr.mxu0 0.0
        %3614 = vmatpush1.msra.mxu0 %v3524
        %3615 = vmatprep.subr.mxu0 0.0
        %3616 = vmatpush1.msra.mxu0 0.0
        %3617 = vmatprep.subr.mxu0 0.0
        %3618 = vmatpush1.msra.mxu0 0.0
        %3619 = vmatprep.subr.mxu0 0.0
        %3620 = vmatpush1.msra.mxu0 0.0
        %3621 = vmatprep.subr.mxu0 0.0
        %3622 = vmatpush1.msra.mxu0 0.0
        %3623 = vmatprep.subr.mxu0 0.0
        %3624 = vmatpush1.msra.mxu0 0.0
        %3625 = vmatprep.subr.mxu0 0.0
        %3626 = vmatpush1.msra.mxu0 0.0
        %3627 = vmatprep.subr.mxu0 0.0
        %3628 = vmatpush1.msra.mxu0 0.0
        %3629 = vmatprep.subr.mxu0 0.0
        %3630 = vmatpush1.msra.mxu0 0.0
        %3631 = vmatprep.subr.mxu0 0.0
        %3632 = vmatpush1.msra.mxu0 0.0
        %3633 = vmatprep.subr.mxu0 0.0
        %3634 = vmatpush1.msra.mxu0 0.0
        %3635 = vmatprep.subr.mxu0 0.0
        %3636 = vmatpush1.msra.mxu0 0.0
        %3637 = vmatprep.subr.mxu0 0.0
        %3638 = vmatpush1.msra.mxu0 0.0
        %3639 = vmatprep.subr.mxu0 0.0
        %3640 = vmatpush1.msra.mxu0 0.0
        %3641 = vmatprep.subr.mxu0 0.0
        %3642 = vmatpush1.msra.mxu0 0.0
        %3643 = vmatprep.subr.mxu0 0.0
        %3644 = vmatpush1.msra.mxu0 0.0
        %3645 = vmatprep.subr.mxu0 0.0
        %3646 = vmatpush1.msra.mxu0 0.0
        %3647 = vmatprep.subr.mxu0 0.0
        %3648 = vmatpush1.msra.mxu0 0.0
        %3649 = vmatprep.subr.mxu0 0.0
        %3650 = vmatpush1.msra.mxu0 0.0
        %3651 = vmatprep.subr.mxu0 0.0
        %3652 = vmatpush1.msra.mxu0 0.0
        %3653 = vmatprep.subr.mxu0 0.0
        %3654 = vmatpush1.msra.mxu0 0.0
        %3655 = vmatprep.subr.mxu0 0.0
        %3656 = vmatpush1.msra.mxu0 0.0
        %3657 = vmatprep.subr.mxu0 0.0
        %3658 = vmatpush1.msra.mxu0 0.0
        %3659 = vmatprep.subr.mxu0 0.0
        %3660 = vmatpush1.msra.mxu0 0.0
        %3661 = vmatprep.subr.mxu0 0.0
        %3662 = vmatpush1.msra.mxu0 0.0
        %3663 = vmatprep.subr.mxu0 0.0
        %3664 = vmatpush1.msra.mxu0 0.0
        %3665 = vmatprep.subr.mxu0 0.0
        %3666 = vmatpush1.msra.mxu0 0.0
        %3667 = vmatprep.subr.mxu0 0.0
        %3668 = vmatpush1.msra.mxu0 0.0
        %3669 = vmatprep.subr.mxu0 0.0
        %3670 = vmatpush1.msra.mxu0 0.0
        %3671 = vmatprep.mubr.f32.mxu0 0.0
        %3672 = vmatmul.mubr.f32.gmra.mrb[0].mxu0 %v3605
        %v3673 = vpop.f32.mrb[0].mxu0
        %v3674 = vadd.f32 %v3601, %v3673
        %v3675 = vpop.f32.mrb[0].mxu0
        %3676 = vdwg.mxu0
        %v3677 = vld [vmem:[#allocation5 + $0x2] sm:$0x3]
        %s3678 = scalar_lea.vmem %s21, 64
        %v3679 = vld [vmem:[%s3678] sm:$0xff]
        %v3680 = vld [vmem:[%s3678 + $0x8] sm:$0xff]
        %v3681 = vld [vmem:[%s3678 + $0x10] sm:$0xff]
        %v3682 = vld [vmem:[%s3678 + $0x18] sm:$0xff]
        %v3684 = vsel %vm1606, %v3677, 0
        %3686 = vmatprep.subr.mxu0 0.0
        %3687 = vmatpush1.msra.mxu0 %v3679
        %3688 = vmatprep.subr.mxu0 0.0
        %3689 = vmatpush1.msra.mxu0 %v3680
        %3690 = vmatprep.subr.mxu0 0.0
        %3691 = vmatpush1.msra.mxu0 %v3681
        %3692 = vmatprep.subr.mxu0 0.0
        %3693 = vmatpush1.msra.mxu0 %v3682
        %3694 = vmatprep.subr.mxu0 0.0
        %3695 = vmatpush1.msra.mxu0 0.0
        %3696 = vmatprep.subr.mxu0 0.0
        %3697 = vmatpush1.msra.mxu0 0.0
        %3698 = vmatprep.subr.mxu0 0.0
        %3699 = vmatpush1.msra.mxu0 0.0
        %3700 = vmatprep.subr.mxu0 0.0
        %3701 = vmatpush1.msra.mxu0 0.0
        %3702 = vmatprep.subr.mxu0 0.0
        %3703 = vmatpush1.msra.mxu0 0.0
        %3704 = vmatprep.subr.mxu0 0.0
        %3705 = vmatpush1.msra.mxu0 0.0
        %3706 = vmatprep.subr.mxu0 0.0
        %3707 = vmatpush1.msra.mxu0 0.0
        %3708 = vmatprep.subr.mxu0 0.0
        %3709 = vmatpush1.msra.mxu0 0.0
        %3710 = vmatprep.subr.mxu0 0.0
        %3711 = vmatpush1.msra.mxu0 0.0
        %3712 = vmatprep.subr.mxu0 0.0
        %3713 = vmatpush1.msra.mxu0 0.0
        %3714 = vmatprep.subr.mxu0 0.0
        %3715 = vmatpush1.msra.mxu0 0.0
        %3716 = vmatprep.subr.mxu0 0.0
        %3717 = vmatpush1.msra.mxu0 0.0
        %3718 = vmatprep.subr.mxu0 0.0
        %3719 = vmatpush1.msra.mxu0 0.0
        %3720 = vmatprep.subr.mxu0 0.0
        %3721 = vmatpush1.msra.mxu0 0.0
        %3722 = vmatprep.subr.mxu0 0.0
        %3723 = vmatpush1.msra.mxu0 0.0
        %3724 = vmatprep.subr.mxu0 0.0
        %3725 = vmatpush1.msra.mxu0 0.0
        %3726 = vmatprep.subr.mxu0 0.0
        %3727 = vmatpush1.msra.mxu0 0.0
        %3728 = vmatprep.subr.mxu0 0.0
        %3729 = vmatpush1.msra.mxu0 0.0
        %3730 = vmatprep.subr.mxu0 0.0
        %3731 = vmatpush1.msra.mxu0 0.0
        %3732 = vmatprep.subr.mxu0 0.0
        %3733 = vmatpush1.msra.mxu0 0.0
        %3734 = vmatprep.subr.mxu0 0.0
        %3735 = vmatpush1.msra.mxu0 0.0
        %3736 = vmatprep.subr.mxu0 0.0
        %3737 = vmatpush1.msra.mxu0 0.0
        %3738 = vmatprep.subr.mxu0 0.0
        %3739 = vmatpush1.msra.mxu0 0.0
        %3740 = vmatprep.subr.mxu0 0.0
        %3741 = vmatpush1.msra.mxu0 0.0
        %3742 = vmatprep.subr.mxu0 0.0
        %3743 = vmatpush1.msra.mxu0 0.0
        %3744 = vmatprep.subr.mxu0 0.0
        %3745 = vmatpush1.msra.mxu0 0.0
        %3746 = vmatprep.subr.mxu0 0.0
        %3747 = vmatpush1.msra.mxu0 0.0
        %3748 = vmatprep.subr.mxu0 0.0
        %3749 = vmatpush1.msra.mxu0 0.0
        %3750 = vmatprep.mubr.f32.mxu0 0.0
        %3751 = vmatmul.mubr.f32.gmra.mrb[0].mxu0 %v3684
        %v3752 = vpop.f32.mrb[0].mxu0
        %v3753 = vadd.f32 0.0, %v3752
        %v3754 = vpop.f32.mrb[0].mxu0
        %3755 = vdwg.mxu0
        %v3756 = vadd.f32 %v3674, %v3753
        %v3757 = vld [vmem:[%s33] sm:$0x1]
        %v3759 = vlaneseq
        %v3760 = vshrl.u32 %v3759, 7
        %v3761 = vsub.s32 0, %v3760
        %v3762 = vrot.slane %v3757, %v3761
        %v3764 = vadd.f32 %v3756, %v3762
        %v3765 = vmax.f32 %v3764, 0.0
        %3766 = vst.msk [vmem:[%s1082] sm:$0x3] %vm1089, %v3765
        %p3767 = scmp.lt.s32.totalorder %s78, 1
        %s3768 = scalar_select %p3767, %s78, 1
        %s3769 = smul.addr %s3768, 2
        %s3770 = smul.addr %s3769, 8
        %s3771 = scalar_lea.vmem %s59, %s3770
        %p3772 = scmp.lt.s32.totalorder %s78, 1
        %s3773 = scalar_select %p3772, %s78, 1
        %s3774 = smul.addr %s3773, 8
        %s3775 = scalar_lea.vmem %s61, %s3774
        %p3776 = scmp.lt.s32.totalorder %s78, 1
        %s3777 = scalar_select %p3776, %s78, 1
        %s3778 = smul.addr %s3777, 4
        %s3779 = scalar_lea.vmem %s63, %s3778
        %p3780 = scmp.lt.s32.totalorder %s78, 1
        %s3781 = scalar_select %p3780, %s78, 1
        %s3782 = smul.addr %s3781, 2
        %s3783 = scalar_lea.vmem %s65, %s3782
        // Predicated region
        $region141: #{bifpn_pallas.1} parent=135 // pred_check
          %p3784 = pneg %p725
        $region142: #{bifpn_pallas.1} parent=135 // pred_check_branch
          %3786 = sbr.rel (%p3784) target = $region144
        $region143: #{bifpn_pallas.1} parent=135 // pred_region
          _
        $region144: #{bifpn_pallas.1} parent=135 // pred_fallthru
          _
        // Predicated region
        $region145: #{bifpn_pallas.1} parent=135 // pred_check
          %p3787 = pneg %p751
        $region146: #{bifpn_pallas.1} parent=135 // pred_check_branch
          %3789 = sbr.rel (%p3787) target = $region148
        $region147: #{bifpn_pallas.1} parent=135 // pred_region
          _
        $region148: #{bifpn_pallas.1} parent=135 // pred_fallthru
          _
        // Predicated region
        $region149: #{bifpn_pallas.1} parent=135 // pred_check
          %p3790 = pneg %p777
        $region150: #{bifpn_pallas.1} parent=135 // pred_check_branch
          %3792 = sbr.rel (%p3790) target = $region152
        $region151: #{bifpn_pallas.1} parent=135 // pred_region
          _
        $region152: #{bifpn_pallas.1} parent=135 // pred_fallthru
          _
        // Predicated region
        $region153: #{bifpn_pallas.1} parent=135 // pred_check
          %p3793 = pneg %p803
        $region154: #{bifpn_pallas.1} parent=135 // pred_check_branch
          %3795 = sbr.rel (%p3793) target = $region156
        $region155: #{bifpn_pallas.1} parent=135 // pred_region
          _
        $region156: #{bifpn_pallas.1} parent=135 // pred_fallthru
          _
      $region136: #{bifpn_pallas.1} parent=5 // pred_fallthru
        _
      %p3796 = scmp.le.s32.totalorder 2, %s73
      // Predicated region
      $region157: #{bifpn_pallas.1} parent=5 // pred_check
        %p3797 = pneg %p3796
      $region158: #{bifpn_pallas.1} parent=5 // pred_check_branch
        %3799 = sbr.rel (%p3797) target = $region160
      $region159: #{bifpn_pallas.1} parent=5 // pred_region
        %s3800 = ssub.s32 %s73, 2
        // Predicated region
        $region161: #{bifpn_pallas.1} parent=159 // pred_check
          %p3801 = pneg %p731
        $region162: #{bifpn_pallas.1} parent=159 // pred_check_branch
          %3803 = sbr.rel (%p3801) target = $region164
        $region163: #{bifpn_pallas.1} parent=159 // pred_region
          %p3804 = scmp.lt.s32.totalorder %s79, 1
          %s3805 = scalar_select %p3804, %s79, 1
          %s3806 = smul.addr %s3805, 2
          %s3807 = smul.addr %s3806, 8
          %s3808 = scalar_lea.vmem %s59, %s3807
        $region164: #{bifpn_pallas.1} parent=159 // pred_fallthru
          _
        // Predicated region
        $region165: #{bifpn_pallas.1} parent=159 // pred_check
          %p3809 = pneg %p757
        $region166: #{bifpn_pallas.1} parent=159 // pred_check_branch
          %3811 = sbr.rel (%p3809) target = $region168
        $region167: #{bifpn_pallas.1} parent=159 // pred_region
          %p3812 = scmp.lt.s32.totalorder %s79, 1
          %s3813 = scalar_select %p3812, %s79, 1
          %s3814 = smul.addr %s3813, 8
          %s3815 = scalar_lea.vmem %s61, %s3814
        $region168: #{bifpn_pallas.1} parent=159 // pred_fallthru
          _
        // Predicated region
        $region169: #{bifpn_pallas.1} parent=159 // pred_check
          %p3816 = pneg %p783
        $region170: #{bifpn_pallas.1} parent=159 // pred_check_branch
          %3818 = sbr.rel (%p3816) target = $region172
        $region171: #{bifpn_pallas.1} parent=159 // pred_region
          %p3819 = scmp.lt.s32.totalorder %s79, 1
          %s3820 = scalar_select %p3819, %s79, 1
          %s3821 = smul.addr %s3820, 4
          %s3822 = scalar_lea.vmem %s63, %s3821
        $region172: #{bifpn_pallas.1} parent=159 // pred_fallthru
          _
        // Predicated region
        $region173: #{bifpn_pallas.1} parent=159 // pred_check
          %p3823 = pneg %p809
        $region174: #{bifpn_pallas.1} parent=159 // pred_check_branch
          %3825 = sbr.rel (%p3823) target = $region176
        $region175: #{bifpn_pallas.1} parent=159 // pred_region
          %p3826 = scmp.lt.s32.totalorder %s79, 1
          %s3827 = scalar_select %p3826, %s79, 1
          %s3828 = smul.addr %s3827, 2
          %s3829 = scalar_lea.vmem %s65, %s3828
        $region176: #{bifpn_pallas.1} parent=159 // pred_fallthru
          _
      $region160: #{bifpn_pallas.1} parent=5 // pred_fallthru
        _
    $region6: #{bifpn_pallas.1} parent=1 // loop_footer
      %s77 = sadd.s32 1, %s73
    $region7: #{bifpn_pallas.1} parent=1 // loop_footer_branch
      %72 = sbr.rel target = $region3
    $region8: #{bifpn_pallas.1} parent=1 // loop_exit
      _
    %3830 = vsyncpa [#allocation7], 1
    %s3831 = scalar_lea.sflag [#allocation7], 1
    %3832 = vsyncpa %s3831, 1

</llo_original>
